<compile_context>
chip_gen: v6e
topology: v6e:2x2x1
jax: 0.10.0
libtpu: 0.0.40
codegen_flags: <defaults>
</compile_context>

<pallas_src>
from functools import partial

import numpy as np
import jax
import jax.numpy as jnp
from jax.experimental import pallas as pl
from jax.experimental.pallas import tpu as pltpu


# ----------------------------------------------------------------------------
# Pallas kernel: fused 3-head, 3-layer MLP
#   f (TM, K_pad) bf16  @ W1 (K_pad, 768) bf16  -> +b1, ReLU   (f32 accum)
#                       @ W2 (768, 768)   bf16  -> +b2, ReLU   (block-diag)
#                       @ W3 (768, 128)   bf16  -> +b3          (lane-dense out)
# ----------------------------------------------------------------------------
def _fused_mlp_kernel(f_ref, w1_ref, b1_ref, w2_ref, b2_ref, w3_ref, b3_ref,
                      o_ref):
    h = jnp.dot(f_ref[...], w1_ref[...], preferred_element_type=jnp.float32)
    h = jnp.maximum(h + b1_ref[...], 0.0).astype(jnp.bfloat16)
    h = jnp.dot(h, w2_ref[...], preferred_element_type=jnp.float32)
    h = jnp.maximum(h + b2_ref[...], 0.0).astype(jnp.bfloat16)
    o_ref[...] = (
        jnp.dot(h, w3_ref[...], preferred_element_type=jnp.float32)
        + b3_ref[...]
    )


def _fused_heads_call(f_bf16, packed, tm):
    """f_bf16: (N_pad, K_pad) bf16. Returns (N_pad, OUT_PAD) f32."""
    n_pad, k_pad = f_bf16.shape
    hid = packed["w1"].shape[1]
    out_pad = packed["w3"].shape[1]
    grid = (n_pad // tm,)
    return pl.pallas_call(
        _fused_mlp_kernel,
        out_shape=jax.ShapeDtypeStruct((n_pad, out_pad), jnp.float32),
        grid_spec=pltpu.PrefetchScalarGridSpec(
            num_scalar_prefetch=0,
            grid=grid,
            in_specs=[
                pl.BlockSpec((tm, k_pad), lambda i: (i, 0)),       # activations
                pl.BlockSpec((k_pad, hid), lambda i: (0, 0)),      # W1 resident
                pl.BlockSpec((1, hid), lambda i: (0, 0)),          # b1 resident
                pl.BlockSpec((hid, hid), lambda i: (0, 0)),        # W2 resident
                pl.BlockSpec((1, hid), lambda i: (0, 0)),          # b2 resident
                pl.BlockSpec((hid, out_pad), lambda i: (0, 0)),    # W3 resident
                pl.BlockSpec((1, out_pad), lambda i: (0, 0)),      # b3 resident
            ],
            out_specs=pl.BlockSpec((tm, out_pad), lambda i: (i, 0)),
        ),
        compiler_params=pltpu.CompilerParams(
            dimension_semantics=("parallel",)),
    )(f_bf16, packed["w1"], packed["b1"], packed["w2"], packed["b2"],
      packed["w3"], packed["b3"])


# ----------------------------------------------------------------------------
# roi_align recast as a dense matmul (torchvision semantics:
# spatial_scale applied by caller, sampling_ratio=-1 adaptive, aligned=False).
# Builds per-ROI separable bilinear interpolation weights with pure arithmetic
# (comparisons only — no gather), so the pooling itself is one MXU matmul.
# ----------------------------------------------------------------------------
def _axis_interp_weights(start, bin_sz, grid_n, size, out_size, cap):
    """Returns (N, out_size, size) summed-sample bilinear weights for one axis."""
    pidx = jnp.arange(out_size, dtype=jnp.float32)
    sidx = jnp.arange(cap, dtype=jnp.float32)
    c = (start[:, None, None]
         + pidx[None, :, None] * bin_sz[:, None, None]
         + (sidx[None, None, :] + 0.5)
         * bin_sz[:, None, None] / grid_n[:, None, None])          # (N, out, cap)
    smask = (sidx[None, None, :] < grid_n[:, None, None]).astype(jnp.float32)
    valid = ((c >= -1.0) & (c <= float(size))).astype(jnp.float32)
    cc = jnp.clip(c, 0.0, None)
    low = jnp.floor(cc).astype(jnp.int32)
    hi_cond = low >= size - 1
    lo = jnp.where(hi_cond, size - 1, low)
    hi = jnp.where(hi_cond, size - 1, low + 1)
    cv = jnp.where(hi_cond, jnp.float32(size - 1), cc)
    l = cv - lo.astype(jnp.float32)
    h = 1.0 - l
    idx = jnp.arange(size)
    onehot_lo = (idx[None, None, None, :] == lo[..., None]).astype(jnp.float32)
    onehot_hi = (idx[None, None, None, :] == hi[..., None]).astype(jnp.float32)
    w = h[..., None] * onehot_lo + l[..., None] * onehot_hi        # (N,out,cap,size)
    w = w * (smask * valid)[..., None]
    return w.sum(axis=2)                                           # (N, out, size)


def _roi_interp_matrix(rois, img_onehot, H, W, out_size, cap):
    """rois: (N,4) [x1,y1,x2,y2] already spatially scaled; img_onehot: (N,B).
    Returns (N*out_size*out_size, B*H*W) f32 interpolation-weight matrix."""
    N = rois.shape[0]
    B = img_onehot.shape[1]
    x1, y1, x2, y2 = rois[:, 0], rois[:, 1], rois[:, 2], rois[:, 3]
    roi_w = jnp.maximum(x2 - x1, 1.0)
    roi_h = jnp.maximum(y2 - y1, 1.0)
    bin_w = roi_w / out_size
    bin_h = roi_h / out_size
    grid_h = jnp.ceil(roi_h / out_size)     # adaptive sampling_ratio (per ROI)
    grid_w = jnp.ceil(roi_w / out_size)
    count = jnp.maximum(grid_h * grid_w, 1.0)

    Ay = _axis_interp_weights(y1, bin_h, grid_h, H, out_size, cap)  # (N, 7, H)
    Ax = _axis_interp_weights(x1, bin_w, grid_w, W, out_size, cap)  # (N, 7, W)

    Wfull = (img_onehot[:, None, None, :, None, None]
             * Ay[:, :, None, None, :, None]
             * Ax[:, None, :, None, None, :]
             / count[:, None, None, None, None, None])   # (N,7,7,B,H,W)
    return Wfull.reshape(N * out_size * out_size, B * H * W)


# ----------------------------------------------------------------------------
# jitted forward core: roi-align-as-matmul (XLA/MXU) + fused Pallas MLP heads
# ----------------------------------------------------------------------------
@partial(jax.jit, static_argnames=("out_size", "cap", "n_pad", "tm"))
def _forward_core(feature, rois, img_onehot, packed, out_size, cap, n_pad, tm):
    B, C, H, W = feature.shape
    n = rois.shape[0]
    k = C * out_size * out_size
    k_pad = packed["w1"].shape[0]

    wmat = _roi_interp_matrix(rois, img_onehot, H, W, out_size, cap)
    feat_flat = jnp.transpose(feature, (0, 2, 3, 1)).reshape(B * H * W, C)
    pooled = jnp.dot(wmat, feat_flat, preferred_element_type=jnp.float32)
    # (N*49, C) -> (N, 49*C); the torch (C,49) ordering is absorbed into W1's
    # row permutation at pack time, so this is a plain row-major flatten.
    f = pooled.reshape(n, k)
    f = jnp.pad(f, ((0, n_pad - n), (0, k_pad - k))).astype(jnp.bfloat16)
    return _fused_heads_call(f, packed, tm)        # (n_pad, 128) f32


def _choose_tiles(ntot):
    """Static ROI-axis padding / tile size (multiple-of-16 sublane friendly)."""
    if ntot <= 256:
        n_pad = max(16, ((ntot + 15) // 16) * 16)
        return n_pad, n_pad
    n_pad = ((ntot + 255) // 256) * 256
    return n_pad, 256


# ----------------------------------------------------------------------------
# Parameter init (PyTorch nn.Linear default U(-1/sqrt(fan_in), +)) and packing
# ----------------------------------------------------------------------------
def init_linear(key, fan_in, fan_out):
    k = 1.0 / np.sqrt(fan_in)
    kw, kb = jax.random.split(key)
    w = jax.random.uniform(kw, (fan_in, fan_out), jnp.float32, -k, k)
    b = jax.random.uniform(kb, (fan_out,), jnp.float32, -k, k)
    return w, b


def init_head_params(key, in_dim, out_dim):
    k1, k2, k3 = jax.random.split(key, 3)
    w1, b1 = init_linear(k1, in_dim, 256)
    w2, b2 = init_linear(k2, 256, 256)
    w3, b3 = init_linear(k3, 256, out_dim)
    return (w1, b1, w2, b2, w3, b3)


def pack_params(params, channels):
    """Fuse the 3 heads into one block-structured MLP (done once, off hot path).
    W1 rows are permuted so the kernel consumes (N, 49*C)-ordered pooled rows
    directly (matches torch's .view(-1, C*7*7) without an activation transpose).
    """
    C = channels
    K = C * 49
    K_pad = ((K + 127) // 128) * 128        # pad K once (v5e-friendly layout)
    HID = 3 * 256
    OUT_PAD = 128                            # lane-dense output slab
    out_cols = [(0, 2), (2, 3), (3, 5)]      # xy | z | conf

    W1 = jnp.zeros((K_pad, HID), jnp.float32)
    W2 = jnp.zeros((HID, HID), jnp.float32)
    W3 = jnp.zeros((HID, OUT_PAD), jnp.float32)
    b1 = jnp.zeros((1, HID), jnp.float32)
    b2 = jnp.zeros((1, HID), jnp.float32)
    b3 = jnp.zeros((1, OUT_PAD), jnp.float32)

    for h, name in enumerate(("xy", "z", "conf")):
        w1, bb1, w2, bb2, w3, bb3 = params[name]
        # row c*49+p  ->  row p*C+c
        w1p = w1.reshape(C, 49, 256).transpose(1, 0, 2).reshape(49 * C, 256)
        W1 = W1.at[:K, h * 256:(h + 1) * 256].set(w1p)
        b1 = b1.at[0, h * 256:(h + 1) * 256].set(bb1)
        W2 = W2.at[h * 256:(h + 1) * 256, h * 256:(h + 1) * 256].set(w2)
        b2 = b2.at[0, h * 256:(h + 1) * 256].set(bb2)
        c0, c1 = out_cols[h]
        W3 = W3.at[h * 256:(h + 1) * 256, c0:c1].set(w3)
        b3 = b3.at[0, c0:c1].set(bb3)

    return dict(w1=W1.astype(jnp.bfloat16), b1=b1,
                w2=W2.astype(jnp.bfloat16), b2=b2,
                w3=W3.astype(jnp.bfloat16), b3=b3)


# ----------------------------------------------------------------------------
# WDM3DPredictorHead forward
# ----------------------------------------------------------------------------
def wdm3d_predictor_head_forward(feature, bbox_list, packed, channels):
    """feature: (B, C, H, W); bbox_list: list of (Ni, >=4) boxes in pixel coords.
    Returns (location_xy list, location_z list, orientation_conf list)."""
    B, C, H, W = feature.shape
    out_size = 7
    # Static adaptive-sampling cap from the feature-map size (no host sync).
    # Valid for boxes inside the image; boxes larger than the image would need
    # a bigger cap.
    cap = max(1, int(np.ceil(max(H, W) / out_size)))

    counts = [int(b.shape[0]) for b in bbox_list]
    ntot = sum(counts)
    rois = jnp.concatenate(
        [jnp.asarray(b)[:, :4] for b in bbox_list], axis=0) / 16.0
    img_ids = np.concatenate(
        [np.full(n, i, np.int32) for i, n in enumerate(counts)])
    img_onehot = jnp.asarray(np.eye(B, dtype=np.float32)[img_ids])

    n_pad, tm = _choose_tiles(ntot)
    out = _forward_core(feature, rois, img_onehot, packed,
                        out_size=out_size, cap=cap, n_pad=n_pad, tm=tm)

    location_xy, location_z, orientation_conf = [], [], []
    start = 0
    for n in counts:
        sl = out[start:start + n]
        location_xy.append(sl[:, 0:2])
        location_z.append(sl[:, 2:3])
        orientation_conf.append(sl[:, 3:5])
        start += n
    return location_xy, location_z, orientation_conf


# ----------------------------------------------------------------------------
if __name__ == "__main__":
    key = jax.random.PRNGKey(0)
    B, C, H, W = 2, 8, 16, 16           # small synthetic shapes (channels=8)
    N_ROIS = 3
    IN_DIM = C * 7 * 7

    k_feat, k_box, k_xy, k_z, k_conf = jax.random.split(key, 5)

    feature = jax.random.normal(k_feat, (B, C, H, W), jnp.float32)

    # boxes in pixel coords (image ~ 16*16 = 256 px); 5 columns exercise [:, :4]
    bbox_list = []
    kb = k_box
    for i in range(B):
        kb, k1, k2, k3 = jax.random.split(kb, 4)
        xy0 = jax.random.uniform(k1, (N_ROIS, 2), jnp.float32, 0.0, 150.0)
        wh = jax.random.uniform(k2, (N_ROIS, 2), jnp.float32, 20.0, 100.0)
        score = jax.random.uniform(k3, (N_ROIS, 1), jnp.float32)
        boxes = jnp.concatenate(
            [xy0, jnp.minimum(xy0 + wh, 255.0), score], axis=1)  # (N_ROIS, 5)
        bbox_list.append(boxes)

    params = {
        "xy": init_head_params(k_xy, IN_DIM, 2),
        "z": init_head_params(k_z, IN_DIM, 1),
        "conf": init_head_params(k_conf, IN_DIM, 2),
    }
    packed = pack_params(params, channels=C)

    loc_xy, loc_z, ori_conf = wdm3d_predictor_head_forward(
        feature, bbox_list, packed, channels=C
    )

    for outs, d in ((loc_xy, 2), (loc_z, 1), (ori_conf, 2)):
        for o in outs:
            jax.block_until_ready(o)
            assert o.shape == (N_ROIS, d), o.shape
            assert o.dtype == jnp.float32

    print("KERNEL_OK")
</pallas_src>

<mosaic_0001>
module attributes {stable_mosaic.version = 11 : i64} {
  func.func @_fused_mlp_kernel(%arg0: i32, %arg1: memref<16x512xbf16, #tpu.memory_space<vmem>>, %arg2: memref<512x768xbf16, #tpu.memory_space<vmem>>, %arg3: memref<1x768xf32, #tpu.memory_space<vmem>>, %arg4: memref<768x768xbf16, #tpu.memory_space<vmem>>, %arg5: memref<1x768xf32, #tpu.memory_space<vmem>>, %arg6: memref<768x128xbf16, #tpu.memory_space<vmem>>, %arg7: memref<1x128xf32, #tpu.memory_space<vmem>>, %arg8: memref<16x128xf32, #tpu.memory_space<vmem>>) attributes {dimension_semantics = [#tpu.dimension_semantics<parallel>], iteration_bounds = array<i64: 1>, scalar_prefetch = 0 : i64, scratch_operands = 0 : i64, tpu.core_type = #tpu.core_type<tc>, window_params = [{transform_indices = @transform_0, window_bounds = array<i64: 16, 512>}, {pipeline_mode = #tpu.pipeline_mode<synchronous>, transform_indices = @transform_1, window_bounds = array<i64: 512, 768>}, {pipeline_mode = #tpu.pipeline_mode<synchronous>, transform_indices = @transform_2, window_bounds = array<i64: 1, 768>}, {pipeline_mode = #tpu.pipeline_mode<synchronous>, transform_indices = @transform_3, window_bounds = array<i64: 768, 768>}, {pipeline_mode = #tpu.pipeline_mode<synchronous>, transform_indices = @transform_4, window_bounds = array<i64: 1, 768>}, {pipeline_mode = #tpu.pipeline_mode<synchronous>, transform_indices = @transform_5, window_bounds = array<i64: 768, 128>}, {pipeline_mode = #tpu.pipeline_mode<synchronous>, transform_indices = @transform_6, window_bounds = array<i64: 1, 128>}, {transform_indices = @transform_7, window_bounds = array<i64: 16, 128>}]} {
    %c0 = arith.constant 0 : index
    %c0_0 = arith.constant 0 : index
    %0 = vector.load %arg1[%c0, %c0_0] : memref<16x512xbf16, #tpu.memory_space<vmem>>, vector<16x512xbf16>
    %c0_1 = arith.constant 0 : index
    %c0_2 = arith.constant 0 : index
    %1 = vector.load %arg2[%c0_1, %c0_2] : memref<512x768xbf16, #tpu.memory_space<vmem>>, vector<512x768xbf16>
    %cst = arith.constant dense<0.000000e+00> : vector<16x768xf32>
    %2 = tpu.matmul %0, %1, %cst {dimension_numbers = #tpu.dot_dimension_numbers<[1], [0], [0], [1], [0, 0, 1, 1], [], []>} : vector<16x512xbf16>, vector<512x768xbf16>, vector<16x768xf32> -> vector<16x768xf32>
    %c0_3 = arith.constant 0 : index
    %c0_4 = arith.constant 0 : index
    %3 = vector.load %arg3[%c0_3, %c0_4] : memref<1x768xf32, #tpu.memory_space<vmem>>, vector<1x768xf32>
    %4 = vector.broadcast %3 : vector<1x768xf32> to vector<16x768xf32>
    %5 = arith.addf %2, %4 : vector<16x768xf32>
    %cst_5 = arith.constant 0.000000e+00 : f32
    %6 = vector.broadcast %cst_5 : f32 to vector<16x768xf32>
    %7 = arith.maximumf %5, %6 : vector<16x768xf32>
    %8 = arith.truncf %7 : vector<16x768xf32> to vector<16x768xbf16>
    %c0_6 = arith.constant 0 : index
    %c0_7 = arith.constant 0 : index
    %9 = vector.load %arg4[%c0_6, %c0_7] : memref<768x768xbf16, #tpu.memory_space<vmem>>, vector<768x768xbf16>
    %cst_8 = arith.constant dense<0.000000e+00> : vector<16x768xf32>
    %10 = tpu.matmul %8, %9, %cst_8 {dimension_numbers = #tpu.dot_dimension_numbers<[1], [0], [0], [1], [0, 0, 1, 1], [], []>} : vector<16x768xbf16>, vector<768x768xbf16>, vector<16x768xf32> -> vector<16x768xf32>
    %c0_9 = arith.constant 0 : index
    %c0_10 = arith.constant 0 : index
    %11 = vector.load %arg5[%c0_9, %c0_10] : memref<1x768xf32, #tpu.memory_space<vmem>>, vector<1x768xf32>
    %12 = vector.broadcast %11 : vector<1x768xf32> to vector<16x768xf32>
    %13 = arith.addf %10, %12 : vector<16x768xf32>
    %cst_11 = arith.constant 0.000000e+00 : f32
    %14 = vector.broadcast %cst_11 : f32 to vector<16x768xf32>
    %15 = arith.maximumf %13, %14 : vector<16x768xf32>
    %16 = arith.truncf %15 : vector<16x768xf32> to vector<16x768xbf16>
    %c0_12 = arith.constant 0 : index
    %c0_13 = arith.constant 0 : index
    %17 = vector.load %arg6[%c0_12, %c0_13] : memref<768x128xbf16, #tpu.memory_space<vmem>>, vector<768x128xbf16>
    %cst_14 = arith.constant dense<0.000000e+00> : vector<16x128xf32>
    %18 = tpu.matmul %16, %17, %cst_14 {dimension_numbers = #tpu.dot_dimension_numbers<[1], [0], [0], [1], [0, 0, 1, 1], [], []>} : vector<16x768xbf16>, vector<768x128xbf16>, vector<16x128xf32> -> vector<16x128xf32>
    %c0_15 = arith.constant 0 : index
    %c0_16 = arith.constant 0 : index
    %19 = vector.load %arg7[%c0_15, %c0_16] : memref<1x128xf32, #tpu.memory_space<vmem>>, vector<1x128xf32>
    %20 = vector.broadcast %19 : vector<1x128xf32> to vector<16x128xf32>
    %21 = arith.addf %18, %20 : vector<16x128xf32>
    %c0_17 = arith.constant 0 : index
    %c0_18 = arith.constant 0 : index
    %22 = vector.load %arg8[%c0_17, %c0_18] : memref<16x128xf32, #tpu.memory_space<vmem>>, vector<16x128xf32>
    tpu.vector_store %arg8[%c0_17, %c0_18], %21 {strides = array<i32>} : memref<16x128xf32, #tpu.memory_space<vmem>>, vector<16x128xf32>,
    return
  }
  func.func @transform_0(%arg0: i32) -> (i32, i32) {
    %c0_i32 = arith.constant 0 : i32
    %c0_i32_0 = arith.constant 0 : i32
    return %arg0, %c0_i32 : i32, i32
  }
  func.func @transform_1(%arg0: i32) -> (i32, i32) {
    %c0_i32 = arith.constant 0 : i32
    %c0_i32_0 = arith.constant 0 : i32
    %c0_i32_1 = arith.constant 0 : i32
    return %c0_i32, %c0_i32_0 : i32, i32
  }
  func.func @transform_2(%arg0: i32) -> (i32, i32) {
    %c0_i32 = arith.constant 0 : i32
    %c0_i32_0 = arith.constant 0 : i32
    %c0_i32_1 = arith.constant 0 : i32
    return %c0_i32, %c0_i32_0 : i32, i32
  }
  func.func @transform_3(%arg0: i32) -> (i32, i32) {
    %c0_i32 = arith.constant 0 : i32
    %c0_i32_0 = arith.constant 0 : i32
    %c0_i32_1 = arith.constant 0 : i32
    return %c0_i32, %c0_i32_0 : i32, i32
  }
  func.func @transform_4(%arg0: i32) -> (i32, i32) {
    %c0_i32 = arith.constant 0 : i32
    %c0_i32_0 = arith.constant 0 : i32
    %c0_i32_1 = arith.constant 0 : i32
    return %c0_i32, %c0_i32_0 : i32, i32
  }
  func.func @transform_5(%arg0: i32) -> (i32, i32) {
    %c0_i32 = arith.constant 0 : i32
    %c0_i32_0 = arith.constant 0 : i32
    %c0_i32_1 = arith.constant 0 : i32
    return %c0_i32, %c0_i32_0 : i32, i32
  }
  func.func @transform_6(%arg0: i32) -> (i32, i32) {
    %c0_i32 = arith.constant 0 : i32
    %c0_i32_0 = arith.constant 0 : i32
    %c0_i32_1 = arith.constant 0 : i32
    return %c0_i32, %c0_i32_0 : i32, i32
  }
  func.func @transform_7(%arg0: i32) -> (i32, i32) {
    %c0_i32 = arith.constant 0 : i32
    %c0_i32_0 = arith.constant 0 : i32
    return %arg0, %c0_i32 : i32, i32
  }
}

</mosaic_0001>

<llo_original>
// kernel: _forward_core.1
$region0: #{_forward_core.1}
  #allocation0 [shape = 'u32[]', space=smem, size = 0x4, offset = 0x4, fixed_abs, tag = 'smem constant byte address 0x4 - core index']
  #allocation1 [shape = 'u32[144,128]{1,0:T(1,128)}', space=vmem, size = 0x12000, scoped, tag = 'internal scratch']
  %s0 = inlined_call_operand.vmem [shape: bf16[16,512], index: 0, kind: input, shape index: {}]
  %s1 = inlined_call_operand.vmem [shape: bf16[512,768], index: 1, kind: input, shape index: {}]
  %s2 = inlined_call_operand.vmem [shape: f32[1,768], index: 2, kind: input, shape index: {}]
  %s3 = inlined_call_operand.vmem [shape: bf16[768,768], index: 3, kind: input, shape index: {}]
  %s4 = inlined_call_operand.vmem [shape: f32[1,768], index: 4, kind: input, shape index: {}]
  %s5 = inlined_call_operand.vmem [shape: bf16[768,128], index: 5, kind: input, shape index: {}]
  %s6 = inlined_call_operand.vmem [shape: f32[1,128], index: 6, kind: input, shape index: {}]
  %s7 = inlined_call_operand.hbm [shape: f32[16,128], index: 7, kind: output, shape index: {}]
  %s8 = sld [smem:[#allocation0]]
  $region38: #{_forward_core.1} parent=0
    _
  %s10 = ssub.s32 1, %s8
  %s11 = scalar_select 0, %s10, %s8
  $region1: #{_forward_core.1} parent=0
    #allocation2 [shape = 'u8[8192]{0}', space=vmem, size = 0x2000, scoped, tag = 'output window, operand 0, single buffered']
    #allocation3 [shape = 's32[1]{0}', space=sflag, size = 0x4, scoped, tag = 'scoped memory for _forward_core.1']
    %12 = vsyncpa [#allocation3], 0
    // Predicated region
    $region2: #{_forward_core.1} parent=1 // pred_check
      _
    $region3: #{_forward_core.1} parent=1 // pred_check_branch
      %14 = sbr.rel (0) target = $region5
    $region4: #{_forward_core.1} parent=1 // pred_region
      _
    $region5: #{_forward_core.1} parent=1 // pred_fallthru
      _
    // Predicated region
    $region6: #{_forward_core.1} parent=1 // pred_check
      _
    $region7: #{_forward_core.1} parent=1 // pred_check_branch
      %16 = sbr.rel (0) target = $region9
    $region8: #{_forward_core.1} parent=1 // pred_region
      _
    $region9: #{_forward_core.1} parent=1 // pred_fallthru
      _
    // Predicated region
    $region10: #{_forward_core.1} parent=1 // pred_check
      _
    $region11: #{_forward_core.1} parent=1 // pred_check_branch
      %18 = sbr.rel (0) target = $region13
    $region12: #{_forward_core.1} parent=1 // pred_region
      _
    $region13: #{_forward_core.1} parent=1 // pred_fallthru
      _
    // Predicated region
    $region14: #{_forward_core.1} parent=1 // pred_check
      _
    $region15: #{_forward_core.1} parent=1 // pred_check_branch
      %20 = sbr.rel (0) target = $region17
    $region16: #{_forward_core.1} parent=1 // pred_region
      _
    $region17: #{_forward_core.1} parent=1 // pred_fallthru
      _
    // Predicated region
    $region18: #{_forward_core.1} parent=1 // pred_check
      _
    $region19: #{_forward_core.1} parent=1 // pred_check_branch
      %22 = sbr.rel (0) target = $region21
    $region20: #{_forward_core.1} parent=1 // pred_region
      _
    $region21: #{_forward_core.1} parent=1 // pred_fallthru
      _
    // Predicated region
    $region22: #{_forward_core.1} parent=1 // pred_check
      _
    $region23: #{_forward_core.1} parent=1 // pred_check_branch
      %24 = sbr.rel (0) target = $region25
    $region24: #{_forward_core.1} parent=1 // pred_region
      _
    $region25: #{_forward_core.1} parent=1 // pred_fallthru
      _
    // Predicated region
    $region26: #{_forward_core.1} parent=1 // pred_check
      _
    $region27: #{_forward_core.1} parent=1 // pred_check_branch
      %26 = sbr.rel (0) target = $region29
    $region28: #{_forward_core.1} parent=1 // pred_region
      _
    $region29: #{_forward_core.1} parent=1 // pred_fallthru
      _
    %v28 = vld [vmem:[%s0] sm:$0xff]
    %v29 = vld [vmem:[%s0 + $0x8] sm:$0xff]
    %v30 = vld [vmem:[%s0 + $0x10] sm:$0xff]
    %v31 = vld [vmem:[%s0 + $0x18] sm:$0xff]
    %v32 = vld [vmem:[%s1] sm:$0xff]
    %v33 = vld [vmem:[%s1 + $0x8] sm:$0xff]
    %v34 = vld [vmem:[%s1 + $0x10] sm:$0xff]
    %v35 = vld [vmem:[%s1 + $0x18] sm:$0xff]
    %v36 = vld [vmem:[%s1 + $0x20] sm:$0xff]
    %v37 = vld [vmem:[%s1 + $0x28] sm:$0xff]
    %v38 = vld [vmem:[%s1 + $0x30] sm:$0xff]
    %v39 = vld [vmem:[%s1 + $0x38] sm:$0xff]
    %v40 = vld [vmem:[%s1 + $0x40] sm:$0xff]
    %v41 = vld [vmem:[%s1 + $0x48] sm:$0xff]
    %v42 = vld [vmem:[%s1 + $0x50] sm:$0xff]
    %v43 = vld [vmem:[%s1 + $0x58] sm:$0xff]
    %v44 = vld [vmem:[%s1 + $0x60] sm:$0xff]
    %v45 = vld [vmem:[%s1 + $0x68] sm:$0xff]
    %v46 = vld [vmem:[%s1 + $0x70] sm:$0xff]
    %v47 = vld [vmem:[%s1 + $0x78] sm:$0xff]
    %v48 = vld [vmem:[%s1 + $0x80] sm:$0xff]
    %v49 = vld [vmem:[%s1 + $0x88] sm:$0xff]
    %v50 = vld [vmem:[%s1 + $0x90] sm:$0xff]
    %v51 = vld [vmem:[%s1 + $0x98] sm:$0xff]
    %v52 = vld [vmem:[%s1 + $0xa0] sm:$0xff]
    %v53 = vld [vmem:[%s1 + $0xa8] sm:$0xff]
    %v54 = vld [vmem:[%s1 + $0xb0] sm:$0xff]
    %v55 = vld [vmem:[%s1 + $0xb8] sm:$0xff]
    %v56 = vld [vmem:[%s1 + $0xc0] sm:$0xff]
    %v57 = vld [vmem:[%s1 + $0xc8] sm:$0xff]
    %v58 = vld [vmem:[%s1 + $0xd0] sm:$0xff]
    %v59 = vld [vmem:[%s1 + $0xd8] sm:$0xff]
    %v60 = vld [vmem:[%s1 + $0xe0] sm:$0xff]
    %v61 = vld [vmem:[%s1 + $0xe8] sm:$0xff]
    %v62 = vld [vmem:[%s1 + $0xf0] sm:$0xff]
    %v63 = vld [vmem:[%s1 + $0xf8] sm:$0xff]
    %v64 = vld [vmem:[%s1 + $0x100] sm:$0xff]
    %v65 = vld [vmem:[%s1 + $0x108] sm:$0xff]
    %v66 = vld [vmem:[%s1 + $0x110] sm:$0xff]
    %v67 = vld [vmem:[%s1 + $0x118] sm:$0xff]
    %v68 = vld [vmem:[%s1 + $0x120] sm:$0xff]
    %v69 = vld [vmem:[%s1 + $0x128] sm:$0xff]
    %v70 = vld [vmem:[%s1 + $0x130] sm:$0xff]
    %v71 = vld [vmem:[%s1 + $0x138] sm:$0xff]
    %v72 = vld [vmem:[%s1 + $0x140] sm:$0xff]
    %v73 = vld [vmem:[%s1 + $0x148] sm:$0xff]
    %v74 = vld [vmem:[%s1 + $0x150] sm:$0xff]
    %v75 = vld [vmem:[%s1 + $0x158] sm:$0xff]
    %v76 = vld [vmem:[%s1 + $0x160] sm:$0xff]
    %v77 = vld [vmem:[%s1 + $0x168] sm:$0xff]
    %v78 = vld [vmem:[%s1 + $0x170] sm:$0xff]
    %v79 = vld [vmem:[%s1 + $0x178] sm:$0xff]
    %v80 = vld [vmem:[%s1 + $0x180] sm:$0xff]
    %v81 = vld [vmem:[%s1 + $0x188] sm:$0xff]
    %v82 = vld [vmem:[%s1 + $0x190] sm:$0xff]
    %v83 = vld [vmem:[%s1 + $0x198] sm:$0xff]
    %v84 = vld [vmem:[%s1 + $0x1a0] sm:$0xff]
    %v85 = vld [vmem:[%s1 + $0x1a8] sm:$0xff]
    %v86 = vld [vmem:[%s1 + $0x1b0] sm:$0xff]
    %v87 = vld [vmem:[%s1 + $0x1b8] sm:$0xff]
    %v88 = vld [vmem:[%s1 + $0x1c0] sm:$0xff]
    %v89 = vld [vmem:[%s1 + $0x1c8] sm:$0xff]
    %v90 = vld [vmem:[%s1 + $0x1d0] sm:$0xff]
    %v91 = vld [vmem:[%s1 + $0x1d8] sm:$0xff]
    %v92 = vld [vmem:[%s1 + $0x1e0] sm:$0xff]
    %v93 = vld [vmem:[%s1 + $0x1e8] sm:$0xff]
    %v94 = vld [vmem:[%s1 + $0x1f0] sm:$0xff]
    %v95 = vld [vmem:[%s1 + $0x1f8] sm:$0xff]
    %v96 = vld [vmem:[%s1 + $0x200] sm:$0xff]
    %v97 = vld [vmem:[%s1 + $0x208] sm:$0xff]
    %v98 = vld [vmem:[%s1 + $0x210] sm:$0xff]
    %v99 = vld [vmem:[%s1 + $0x218] sm:$0xff]
    %v100 = vld [vmem:[%s1 + $0x220] sm:$0xff]
    %v101 = vld [vmem:[%s1 + $0x228] sm:$0xff]
    %v102 = vld [vmem:[%s1 + $0x230] sm:$0xff]
    %v103 = vld [vmem:[%s1 + $0x238] sm:$0xff]
    %v104 = vld [vmem:[%s1 + $0x240] sm:$0xff]
    %v105 = vld [vmem:[%s1 + $0x248] sm:$0xff]
    %v106 = vld [vmem:[%s1 + $0x250] sm:$0xff]
    %v107 = vld [vmem:[%s1 + $0x258] sm:$0xff]
    %v108 = vld [vmem:[%s1 + $0x260] sm:$0xff]
    %v109 = vld [vmem:[%s1 + $0x268] sm:$0xff]
    %v110 = vld [vmem:[%s1 + $0x270] sm:$0xff]
    %v111 = vld [vmem:[%s1 + $0x278] sm:$0xff]
    %v112 = vld [vmem:[%s1 + $0x280] sm:$0xff]
    %v113 = vld [vmem:[%s1 + $0x288] sm:$0xff]
    %v114 = vld [vmem:[%s1 + $0x290] sm:$0xff]
    %v115 = vld [vmem:[%s1 + $0x298] sm:$0xff]
    %v116 = vld [vmem:[%s1 + $0x2a0] sm:$0xff]
    %v117 = vld [vmem:[%s1 + $0x2a8] sm:$0xff]
    %v118 = vld [vmem:[%s1 + $0x2b0] sm:$0xff]
    %v119 = vld [vmem:[%s1 + $0x2b8] sm:$0xff]
    %v120 = vld [vmem:[%s1 + $0x2c0] sm:$0xff]
    %v121 = vld [vmem:[%s1 + $0x2c8] sm:$0xff]
    %v122 = vld [vmem:[%s1 + $0x2d0] sm:$0xff]
    %v123 = vld [vmem:[%s1 + $0x2d8] sm:$0xff]
    %v124 = vld [vmem:[%s1 + $0x2e0] sm:$0xff]
    %v125 = vld [vmem:[%s1 + $0x2e8] sm:$0xff]
    %v126 = vld [vmem:[%s1 + $0x2f0] sm:$0xff]
    %v127 = vld [vmem:[%s1 + $0x2f8] sm:$0xff]
    %v128 = vld [vmem:[%s1 + $0x300] sm:$0xff]
    %v129 = vld [vmem:[%s1 + $0x308] sm:$0xff]
    %v130 = vld [vmem:[%s1 + $0x310] sm:$0xff]
    %v131 = vld [vmem:[%s1 + $0x318] sm:$0xff]
    %v132 = vld [vmem:[%s1 + $0x320] sm:$0xff]
    %v133 = vld [vmem:[%s1 + $0x328] sm:$0xff]
    %v134 = vld [vmem:[%s1 + $0x330] sm:$0xff]
    %v135 = vld [vmem:[%s1 + $0x338] sm:$0xff]
    %v136 = vld [vmem:[%s1 + $0x340] sm:$0xff]
    %v137 = vld [vmem:[%s1 + $0x348] sm:$0xff]
    %v138 = vld [vmem:[%s1 + $0x350] sm:$0xff]
    %v139 = vld [vmem:[%s1 + $0x358] sm:$0xff]
    %v140 = vld [vmem:[%s1 + $0x360] sm:$0xff]
    %v141 = vld [vmem:[%s1 + $0x368] sm:$0xff]
    %v142 = vld [vmem:[%s1 + $0x370] sm:$0xff]
    %v143 = vld [vmem:[%s1 + $0x378] sm:$0xff]
    %v144 = vld [vmem:[%s1 + $0x380] sm:$0xff]
    %v145 = vld [vmem:[%s1 + $0x388] sm:$0xff]
    %v146 = vld [vmem:[%s1 + $0x390] sm:$0xff]
    %v147 = vld [vmem:[%s1 + $0x398] sm:$0xff]
    %v148 = vld [vmem:[%s1 + $0x3a0] sm:$0xff]
    %v149 = vld [vmem:[%s1 + $0x3a8] sm:$0xff]
    %v150 = vld [vmem:[%s1 + $0x3b0] sm:$0xff]
    %v151 = vld [vmem:[%s1 + $0x3b8] sm:$0xff]
    %v152 = vld [vmem:[%s1 + $0x3c0] sm:$0xff]
    %v153 = vld [vmem:[%s1 + $0x3c8] sm:$0xff]
    %v154 = vld [vmem:[%s1 + $0x3d0] sm:$0xff]
    %v155 = vld [vmem:[%s1 + $0x3d8] sm:$0xff]
    %v156 = vld [vmem:[%s1 + $0x3e0] sm:$0xff]
    %v157 = vld [vmem:[%s1 + $0x3e8] sm:$0xff]
    %v158 = vld [vmem:[%s1 + $0x3f0] sm:$0xff]
    %v159 = vld [vmem:[%s1 + $0x3f8] sm:$0xff]
    %v160 = vld [vmem:[%s1 + $0x400] sm:$0xff]
    %v161 = vld [vmem:[%s1 + $0x408] sm:$0xff]
    %v162 = vld [vmem:[%s1 + $0x410] sm:$0xff]
    %v163 = vld [vmem:[%s1 + $0x418] sm:$0xff]
    %v164 = vld [vmem:[%s1 + $0x420] sm:$0xff]
    %v165 = vld [vmem:[%s1 + $0x428] sm:$0xff]
    %v166 = vld [vmem:[%s1 + $0x430] sm:$0xff]
    %v167 = vld [vmem:[%s1 + $0x438] sm:$0xff]
    %v168 = vld [vmem:[%s1 + $0x440] sm:$0xff]
    %v169 = vld [vmem:[%s1 + $0x448] sm:$0xff]
    %v170 = vld [vmem:[%s1 + $0x450] sm:$0xff]
    %v171 = vld [vmem:[%s1 + $0x458] sm:$0xff]
    %v172 = vld [vmem:[%s1 + $0x460] sm:$0xff]
    %v173 = vld [vmem:[%s1 + $0x468] sm:$0xff]
    %v174 = vld [vmem:[%s1 + $0x470] sm:$0xff]
    %v175 = vld [vmem:[%s1 + $0x478] sm:$0xff]
    %v176 = vld [vmem:[%s1 + $0x480] sm:$0xff]
    %v177 = vld [vmem:[%s1 + $0x488] sm:$0xff]
    %v178 = vld [vmem:[%s1 + $0x490] sm:$0xff]
    %v179 = vld [vmem:[%s1 + $0x498] sm:$0xff]
    %v180 = vld [vmem:[%s1 + $0x4a0] sm:$0xff]
    %v181 = vld [vmem:[%s1 + $0x4a8] sm:$0xff]
    %v182 = vld [vmem:[%s1 + $0x4b0] sm:$0xff]
    %v183 = vld [vmem:[%s1 + $0x4b8] sm:$0xff]
    %v184 = vld [vmem:[%s1 + $0x4c0] sm:$0xff]
    %v185 = vld [vmem:[%s1 + $0x4c8] sm:$0xff]
    %v186 = vld [vmem:[%s1 + $0x4d0] sm:$0xff]
    %v187 = vld [vmem:[%s1 + $0x4d8] sm:$0xff]
    %v188 = vld [vmem:[%s1 + $0x4e0] sm:$0xff]
    %v189 = vld [vmem:[%s1 + $0x4e8] sm:$0xff]
    %v190 = vld [vmem:[%s1 + $0x4f0] sm:$0xff]
    %v191 = vld [vmem:[%s1 + $0x4f8] sm:$0xff]
    %v192 = vld [vmem:[%s1 + $0x500] sm:$0xff]
    %v193 = vld [vmem:[%s1 + $0x508] sm:$0xff]
    %v194 = vld [vmem:[%s1 + $0x510] sm:$0xff]
    %v195 = vld [vmem:[%s1 + $0x518] sm:$0xff]
    %v196 = vld [vmem:[%s1 + $0x520] sm:$0xff]
    %v197 = vld [vmem:[%s1 + $0x528] sm:$0xff]
    %v198 = vld [vmem:[%s1 + $0x530] sm:$0xff]
    %v199 = vld [vmem:[%s1 + $0x538] sm:$0xff]
    %v200 = vld [vmem:[%s1 + $0x540] sm:$0xff]
    %v201 = vld [vmem:[%s1 + $0x548] sm:$0xff]
    %v202 = vld [vmem:[%s1 + $0x550] sm:$0xff]
    %v203 = vld [vmem:[%s1 + $0x558] sm:$0xff]
    %v204 = vld [vmem:[%s1 + $0x560] sm:$0xff]
    %v205 = vld [vmem:[%s1 + $0x568] sm:$0xff]
    %v206 = vld [vmem:[%s1 + $0x570] sm:$0xff]
    %v207 = vld [vmem:[%s1 + $0x578] sm:$0xff]
    %v208 = vld [vmem:[%s1 + $0x580] sm:$0xff]
    %v209 = vld [vmem:[%s1 + $0x588] sm:$0xff]
    %v210 = vld [vmem:[%s1 + $0x590] sm:$0xff]
    %v211 = vld [vmem:[%s1 + $0x598] sm:$0xff]
    %v212 = vld [vmem:[%s1 + $0x5a0] sm:$0xff]
    %v213 = vld [vmem:[%s1 + $0x5a8] sm:$0xff]
    %v214 = vld [vmem:[%s1 + $0x5b0] sm:$0xff]
    %v215 = vld [vmem:[%s1 + $0x5b8] sm:$0xff]
    %v216 = vld [vmem:[%s1 + $0x5c0] sm:$0xff]
    %v217 = vld [vmem:[%s1 + $0x5c8] sm:$0xff]
    %v218 = vld [vmem:[%s1 + $0x5d0] sm:$0xff]
    %v219 = vld [vmem:[%s1 + $0x5d8] sm:$0xff]
    %v220 = vld [vmem:[%s1 + $0x5e0] sm:$0xff]
    %v221 = vld [vmem:[%s1 + $0x5e8] sm:$0xff]
    %v222 = vld [vmem:[%s1 + $0x5f0] sm:$0xff]
    %v223 = vld [vmem:[%s1 + $0x5f8] sm:$0xff]
    %v224 = vld [vmem:[%s2] sm:$0x3f]
    %v226 = vlaneseq
    %v227 = vshrl.u32 %v226, 7
    %v228 = vsub.s32 0, %v227
    %v229 = vrot.slane %v224, %v228
    %v230 = vlaneseq
    %v231 = vshrl.u32 %v230, 7
    %v232 = vsub.s32 1, %v231
    %v233 = vrot.slane %v224, %v232
    %v234 = vlaneseq
    %v235 = vshrl.u32 %v234, 7
    %v236 = vsub.s32 2, %v235
    %v237 = vrot.slane %v224, %v236
    %v238 = vlaneseq
    %v239 = vshrl.u32 %v238, 7
    %v240 = vsub.s32 3, %v239
    %v241 = vrot.slane %v224, %v240
    %v242 = vlaneseq
    %v243 = vshrl.u32 %v242, 7
    %v244 = vsub.s32 4, %v243
    %v245 = vrot.slane %v224, %v244
    %v246 = vlaneseq
    %v247 = vshrl.u32 %v246, 7
    %v248 = vsub.s32 5, %v247
    %v249 = vrot.slane %v224, %v248
    %v260 = vunpack.c.l.b16 %v28
    %v261 = vunpack.c.h.b16 %v28
    %v262 = vunpack.c.l.b16 %v29
    %v263 = vunpack.c.h.b16 %v29
    %v264 = vunpack.c.l.b16 %v30
    %v265 = vunpack.c.h.b16 %v30
    %v266 = vunpack.c.l.b16 %v31
    %v267 = vunpack.c.h.b16 %v31
    %v268 = vpack.c.b16 %v264, %v260
    %v269 = vpack.c.b16 %v265, %v261
    %v270 = vpack.c.b16 %v266, %v262
    %v271 = vpack.c.b16 %v267, %v263
    %v468 = vunpack.c.l.b16 %v32
    %v469 = vunpack.c.h.b16 %v32
    %v470 = vunpack.c.l.b16 %v33
    %v471 = vunpack.c.h.b16 %v33
    %v472 = vunpack.c.l.b16 %v34
    %v473 = vunpack.c.h.b16 %v34
    %v474 = vunpack.c.l.b16 %v35
    %v475 = vunpack.c.h.b16 %v35
    %v476 = vunpack.c.l.b16 %v36
    %v477 = vunpack.c.h.b16 %v36
    %v478 = vunpack.c.l.b16 %v37
    %v479 = vunpack.c.h.b16 %v37
    %v480 = vunpack.c.l.b16 %v38
    %v481 = vunpack.c.h.b16 %v38
    %v482 = vunpack.c.l.b16 %v39
    %v483 = vunpack.c.h.b16 %v39
    %v484 = vunpack.c.l.b16 %v40
    %v485 = vunpack.c.h.b16 %v40
    %v486 = vunpack.c.l.b16 %v41
    %v487 = vunpack.c.h.b16 %v41
    %v488 = vunpack.c.l.b16 %v42
    %v489 = vunpack.c.h.b16 %v42
    %v490 = vunpack.c.l.b16 %v43
    %v491 = vunpack.c.h.b16 %v43
    %v492 = vunpack.c.l.b16 %v44
    %v493 = vunpack.c.h.b16 %v44
    %v494 = vunpack.c.l.b16 %v45
    %v495 = vunpack.c.h.b16 %v45
    %v496 = vunpack.c.l.b16 %v46
    %v497 = vunpack.c.h.b16 %v46
    %v498 = vunpack.c.l.b16 %v47
    %v499 = vunpack.c.h.b16 %v47
    %v500 = vunpack.c.l.b16 %v48
    %v501 = vunpack.c.h.b16 %v48
    %v502 = vunpack.c.l.b16 %v49
    %v503 = vunpack.c.h.b16 %v49
    %v504 = vunpack.c.l.b16 %v50
    %v505 = vunpack.c.h.b16 %v50
    %v506 = vunpack.c.l.b16 %v51
    %v507 = vunpack.c.h.b16 %v51
    %v508 = vunpack.c.l.b16 %v52
    %v509 = vunpack.c.h.b16 %v52
    %v510 = vunpack.c.l.b16 %v53
    %v511 = vunpack.c.h.b16 %v53
    %v512 = vunpack.c.l.b16 %v54
    %v513 = vunpack.c.h.b16 %v54
    %v514 = vunpack.c.l.b16 %v55
    %v515 = vunpack.c.h.b16 %v55
    %v516 = vunpack.c.l.b16 %v56
    %v517 = vunpack.c.h.b16 %v56
    %v518 = vunpack.c.l.b16 %v57
    %v519 = vunpack.c.h.b16 %v57
    %v520 = vunpack.c.l.b16 %v58
    %v521 = vunpack.c.h.b16 %v58
    %v522 = vunpack.c.l.b16 %v59
    %v523 = vunpack.c.h.b16 %v59
    %v524 = vunpack.c.l.b16 %v60
    %v525 = vunpack.c.h.b16 %v60
    %v526 = vunpack.c.l.b16 %v61
    %v527 = vunpack.c.h.b16 %v61
    %v528 = vunpack.c.l.b16 %v62
    %v529 = vunpack.c.h.b16 %v62
    %v530 = vunpack.c.l.b16 %v63
    %v531 = vunpack.c.h.b16 %v63
    %v532 = vunpack.c.l.b16 %v64
    %v533 = vunpack.c.h.b16 %v64
    %v534 = vunpack.c.l.b16 %v65
    %v535 = vunpack.c.h.b16 %v65
    %v536 = vunpack.c.l.b16 %v66
    %v537 = vunpack.c.h.b16 %v66
    %v538 = vunpack.c.l.b16 %v67
    %v539 = vunpack.c.h.b16 %v67
    %v540 = vunpack.c.l.b16 %v68
    %v541 = vunpack.c.h.b16 %v68
    %v542 = vunpack.c.l.b16 %v69
    %v543 = vunpack.c.h.b16 %v69
    %v544 = vunpack.c.l.b16 %v70
    %v545 = vunpack.c.h.b16 %v70
    %v546 = vunpack.c.l.b16 %v71
    %v547 = vunpack.c.h.b16 %v71
    %v548 = vunpack.c.l.b16 %v72
    %v549 = vunpack.c.h.b16 %v72
    %v550 = vunpack.c.l.b16 %v73
    %v551 = vunpack.c.h.b16 %v73
    %v552 = vunpack.c.l.b16 %v74
    %v553 = vunpack.c.h.b16 %v74
    %v554 = vunpack.c.l.b16 %v75
    %v555 = vunpack.c.h.b16 %v75
    %v556 = vunpack.c.l.b16 %v76
    %v557 = vunpack.c.h.b16 %v76
    %v558 = vunpack.c.l.b16 %v77
    %v559 = vunpack.c.h.b16 %v77
    %v560 = vunpack.c.l.b16 %v78
    %v561 = vunpack.c.h.b16 %v78
    %v562 = vunpack.c.l.b16 %v79
    %v563 = vunpack.c.h.b16 %v79
    %v564 = vunpack.c.l.b16 %v80
    %v565 = vunpack.c.h.b16 %v80
    %v566 = vunpack.c.l.b16 %v81
    %v567 = vunpack.c.h.b16 %v81
    %v568 = vunpack.c.l.b16 %v82
    %v569 = vunpack.c.h.b16 %v82
    %v570 = vunpack.c.l.b16 %v83
    %v571 = vunpack.c.h.b16 %v83
    %v572 = vunpack.c.l.b16 %v84
    %v573 = vunpack.c.h.b16 %v84
    %v574 = vunpack.c.l.b16 %v85
    %v575 = vunpack.c.h.b16 %v85
    %v576 = vunpack.c.l.b16 %v86
    %v577 = vunpack.c.h.b16 %v86
    %v578 = vunpack.c.l.b16 %v87
    %v579 = vunpack.c.h.b16 %v87
    %v580 = vunpack.c.l.b16 %v88
    %v581 = vunpack.c.h.b16 %v88
    %v582 = vunpack.c.l.b16 %v89
    %v583 = vunpack.c.h.b16 %v89
    %v584 = vunpack.c.l.b16 %v90
    %v585 = vunpack.c.h.b16 %v90
    %v586 = vunpack.c.l.b16 %v91
    %v587 = vunpack.c.h.b16 %v91
    %v588 = vunpack.c.l.b16 %v92
    %v589 = vunpack.c.h.b16 %v92
    %v590 = vunpack.c.l.b16 %v93
    %v591 = vunpack.c.h.b16 %v93
    %v592 = vunpack.c.l.b16 %v94
    %v593 = vunpack.c.h.b16 %v94
    %v594 = vunpack.c.l.b16 %v95
    %v595 = vunpack.c.h.b16 %v95
    %v596 = vunpack.c.l.b16 %v96
    %v597 = vunpack.c.h.b16 %v96
    %v598 = vunpack.c.l.b16 %v97
    %v599 = vunpack.c.h.b16 %v97
    %v600 = vunpack.c.l.b16 %v98
    %v601 = vunpack.c.h.b16 %v98
    %v602 = vunpack.c.l.b16 %v99
    %v603 = vunpack.c.h.b16 %v99
    %v604 = vunpack.c.l.b16 %v100
    %v605 = vunpack.c.h.b16 %v100
    %v606 = vunpack.c.l.b16 %v101
    %v607 = vunpack.c.h.b16 %v101
    %v608 = vunpack.c.l.b16 %v102
    %v609 = vunpack.c.h.b16 %v102
    %v610 = vunpack.c.l.b16 %v103
    %v611 = vunpack.c.h.b16 %v103
    %v612 = vunpack.c.l.b16 %v104
    %v613 = vunpack.c.h.b16 %v104
    %v614 = vunpack.c.l.b16 %v105
    %v615 = vunpack.c.h.b16 %v105
    %v616 = vunpack.c.l.b16 %v106
    %v617 = vunpack.c.h.b16 %v106
    %v618 = vunpack.c.l.b16 %v107
    %v619 = vunpack.c.h.b16 %v107
    %v620 = vunpack.c.l.b16 %v108
    %v621 = vunpack.c.h.b16 %v108
    %v622 = vunpack.c.l.b16 %v109
    %v623 = vunpack.c.h.b16 %v109
    %v624 = vunpack.c.l.b16 %v110
    %v625 = vunpack.c.h.b16 %v110
    %v626 = vunpack.c.l.b16 %v111
    %v627 = vunpack.c.h.b16 %v111
    %v628 = vunpack.c.l.b16 %v112
    %v629 = vunpack.c.h.b16 %v112
    %v630 = vunpack.c.l.b16 %v113
    %v631 = vunpack.c.h.b16 %v113
    %v632 = vunpack.c.l.b16 %v114
    %v633 = vunpack.c.h.b16 %v114
    %v634 = vunpack.c.l.b16 %v115
    %v635 = vunpack.c.h.b16 %v115
    %v636 = vunpack.c.l.b16 %v116
    %v637 = vunpack.c.h.b16 %v116
    %v638 = vunpack.c.l.b16 %v117
    %v639 = vunpack.c.h.b16 %v117
    %v640 = vunpack.c.l.b16 %v118
    %v641 = vunpack.c.h.b16 %v118
    %v642 = vunpack.c.l.b16 %v119
    %v643 = vunpack.c.h.b16 %v119
    %v644 = vunpack.c.l.b16 %v120
    %v645 = vunpack.c.h.b16 %v120
    %v646 = vunpack.c.l.b16 %v121
    %v647 = vunpack.c.h.b16 %v121
    %v648 = vunpack.c.l.b16 %v122
    %v649 = vunpack.c.h.b16 %v122
    %v650 = vunpack.c.l.b16 %v123
    %v651 = vunpack.c.h.b16 %v123
    %v652 = vunpack.c.l.b16 %v124
    %v653 = vunpack.c.h.b16 %v124
    %v654 = vunpack.c.l.b16 %v125
    %v655 = vunpack.c.h.b16 %v125
    %v656 = vunpack.c.l.b16 %v126
    %v657 = vunpack.c.h.b16 %v126
    %v658 = vunpack.c.l.b16 %v127
    %v659 = vunpack.c.h.b16 %v127
    %v660 = vunpack.c.l.b16 %v128
    %v661 = vunpack.c.h.b16 %v128
    %v662 = vunpack.c.l.b16 %v129
    %v663 = vunpack.c.h.b16 %v129
    %v664 = vunpack.c.l.b16 %v130
    %v665 = vunpack.c.h.b16 %v130
    %v666 = vunpack.c.l.b16 %v131
    %v667 = vunpack.c.h.b16 %v131
    %v668 = vunpack.c.l.b16 %v132
    %v669 = vunpack.c.h.b16 %v132
    %v670 = vunpack.c.l.b16 %v133
    %v671 = vunpack.c.h.b16 %v133
    %v672 = vunpack.c.l.b16 %v134
    %v673 = vunpack.c.h.b16 %v134
    %v674 = vunpack.c.l.b16 %v135
    %v675 = vunpack.c.h.b16 %v135
    %v676 = vunpack.c.l.b16 %v136
    %v677 = vunpack.c.h.b16 %v136
    %v678 = vunpack.c.l.b16 %v137
    %v679 = vunpack.c.h.b16 %v137
    %v680 = vunpack.c.l.b16 %v138
    %v681 = vunpack.c.h.b16 %v138
    %v682 = vunpack.c.l.b16 %v139
    %v683 = vunpack.c.h.b16 %v139
    %v684 = vunpack.c.l.b16 %v140
    %v685 = vunpack.c.h.b16 %v140
    %v686 = vunpack.c.l.b16 %v141
    %v687 = vunpack.c.h.b16 %v141
    %v688 = vunpack.c.l.b16 %v142
    %v689 = vunpack.c.h.b16 %v142
    %v690 = vunpack.c.l.b16 %v143
    %v691 = vunpack.c.h.b16 %v143
    %v692 = vunpack.c.l.b16 %v144
    %v693 = vunpack.c.h.b16 %v144
    %v694 = vunpack.c.l.b16 %v145
    %v695 = vunpack.c.h.b16 %v145
    %v696 = vunpack.c.l.b16 %v146
    %v697 = vunpack.c.h.b16 %v146
    %v698 = vunpack.c.l.b16 %v147
    %v699 = vunpack.c.h.b16 %v147
    %v700 = vunpack.c.l.b16 %v148
    %v701 = vunpack.c.h.b16 %v148
    %v702 = vunpack.c.l.b16 %v149
    %v703 = vunpack.c.h.b16 %v149
    %v704 = vunpack.c.l.b16 %v150
    %v705 = vunpack.c.h.b16 %v150
    %v706 = vunpack.c.l.b16 %v151
    %v707 = vunpack.c.h.b16 %v151
    %v708 = vunpack.c.l.b16 %v152
    %v709 = vunpack.c.h.b16 %v152
    %v710 = vunpack.c.l.b16 %v153
    %v711 = vunpack.c.h.b16 %v153
    %v712 = vunpack.c.l.b16 %v154
    %v713 = vunpack.c.h.b16 %v154
    %v714 = vunpack.c.l.b16 %v155
    %v715 = vunpack.c.h.b16 %v155
    %v716 = vunpack.c.l.b16 %v156
    %v717 = vunpack.c.h.b16 %v156
    %v718 = vunpack.c.l.b16 %v157
    %v719 = vunpack.c.h.b16 %v157
    %v720 = vunpack.c.l.b16 %v158
    %v721 = vunpack.c.h.b16 %v158
    %v722 = vunpack.c.l.b16 %v159
    %v723 = vunpack.c.h.b16 %v159
    %v724 = vunpack.c.l.b16 %v160
    %v725 = vunpack.c.h.b16 %v160
    %v726 = vunpack.c.l.b16 %v161
    %v727 = vunpack.c.h.b16 %v161
    %v728 = vunpack.c.l.b16 %v162
    %v729 = vunpack.c.h.b16 %v162
    %v730 = vunpack.c.l.b16 %v163
    %v731 = vunpack.c.h.b16 %v163
    %v732 = vunpack.c.l.b16 %v164
    %v733 = vunpack.c.h.b16 %v164
    %v734 = vunpack.c.l.b16 %v165
    %v735 = vunpack.c.h.b16 %v165
    %v736 = vunpack.c.l.b16 %v166
    %v737 = vunpack.c.h.b16 %v166
    %v738 = vunpack.c.l.b16 %v167
    %v739 = vunpack.c.h.b16 %v167
    %v740 = vunpack.c.l.b16 %v168
    %v741 = vunpack.c.h.b16 %v168
    %v742 = vunpack.c.l.b16 %v169
    %v743 = vunpack.c.h.b16 %v169
    %v744 = vunpack.c.l.b16 %v170
    %v745 = vunpack.c.h.b16 %v170
    %v746 = vunpack.c.l.b16 %v171
    %v747 = vunpack.c.h.b16 %v171
    %v748 = vunpack.c.l.b16 %v172
    %v749 = vunpack.c.h.b16 %v172
    %v750 = vunpack.c.l.b16 %v173
    %v751 = vunpack.c.h.b16 %v173
    %v752 = vunpack.c.l.b16 %v174
    %v753 = vunpack.c.h.b16 %v174
    %v754 = vunpack.c.l.b16 %v175
    %v755 = vunpack.c.h.b16 %v175
    %v756 = vunpack.c.l.b16 %v176
    %v757 = vunpack.c.h.b16 %v176
    %v758 = vunpack.c.l.b16 %v177
    %v759 = vunpack.c.h.b16 %v177
    %v760 = vunpack.c.l.b16 %v178
    %v761 = vunpack.c.h.b16 %v178
    %v762 = vunpack.c.l.b16 %v179
    %v763 = vunpack.c.h.b16 %v179
    %v764 = vunpack.c.l.b16 %v180
    %v765 = vunpack.c.h.b16 %v180
    %v766 = vunpack.c.l.b16 %v181
    %v767 = vunpack.c.h.b16 %v181
    %v768 = vunpack.c.l.b16 %v182
    %v769 = vunpack.c.h.b16 %v182
    %v770 = vunpack.c.l.b16 %v183
    %v771 = vunpack.c.h.b16 %v183
    %v772 = vunpack.c.l.b16 %v184
    %v773 = vunpack.c.h.b16 %v184
    %v774 = vunpack.c.l.b16 %v185
    %v775 = vunpack.c.h.b16 %v185
    %v776 = vunpack.c.l.b16 %v186
    %v777 = vunpack.c.h.b16 %v186
    %v778 = vunpack.c.l.b16 %v187
    %v779 = vunpack.c.h.b16 %v187
    %v780 = vunpack.c.l.b16 %v188
    %v781 = vunpack.c.h.b16 %v188
    %v782 = vunpack.c.l.b16 %v189
    %v783 = vunpack.c.h.b16 %v189
    %v784 = vunpack.c.l.b16 %v190
    %v785 = vunpack.c.h.b16 %v190
    %v786 = vunpack.c.l.b16 %v191
    %v787 = vunpack.c.h.b16 %v191
    %v788 = vunpack.c.l.b16 %v192
    %v789 = vunpack.c.h.b16 %v192
    %v790 = vunpack.c.l.b16 %v193
    %v791 = vunpack.c.h.b16 %v193
    %v792 = vunpack.c.l.b16 %v194
    %v793 = vunpack.c.h.b16 %v194
    %v794 = vunpack.c.l.b16 %v195
    %v795 = vunpack.c.h.b16 %v195
    %v796 = vunpack.c.l.b16 %v196
    %v797 = vunpack.c.h.b16 %v196
    %v798 = vunpack.c.l.b16 %v197
    %v799 = vunpack.c.h.b16 %v197
    %v800 = vunpack.c.l.b16 %v198
    %v801 = vunpack.c.h.b16 %v198
    %v802 = vunpack.c.l.b16 %v199
    %v803 = vunpack.c.h.b16 %v199
    %v804 = vunpack.c.l.b16 %v200
    %v805 = vunpack.c.h.b16 %v200
    %v806 = vunpack.c.l.b16 %v201
    %v807 = vunpack.c.h.b16 %v201
    %v808 = vunpack.c.l.b16 %v202
    %v809 = vunpack.c.h.b16 %v202
    %v810 = vunpack.c.l.b16 %v203
    %v811 = vunpack.c.h.b16 %v203
    %v812 = vunpack.c.l.b16 %v204
    %v813 = vunpack.c.h.b16 %v204
    %v814 = vunpack.c.l.b16 %v205
    %v815 = vunpack.c.h.b16 %v205
    %v816 = vunpack.c.l.b16 %v206
    %v817 = vunpack.c.h.b16 %v206
    %v818 = vunpack.c.l.b16 %v207
    %v819 = vunpack.c.h.b16 %v207
    %v820 = vunpack.c.l.b16 %v208
    %v821 = vunpack.c.h.b16 %v208
    %v822 = vunpack.c.l.b16 %v209
    %v823 = vunpack.c.h.b16 %v209
    %v824 = vunpack.c.l.b16 %v210
    %v825 = vunpack.c.h.b16 %v210
    %v826 = vunpack.c.l.b16 %v211
    %v827 = vunpack.c.h.b16 %v211
    %v828 = vunpack.c.l.b16 %v212
    %v829 = vunpack.c.h.b16 %v212
    %v830 = vunpack.c.l.b16 %v213
    %v831 = vunpack.c.h.b16 %v213
    %v832 = vunpack.c.l.b16 %v214
    %v833 = vunpack.c.h.b16 %v214
    %v834 = vunpack.c.l.b16 %v215
    %v835 = vunpack.c.h.b16 %v215
    %v836 = vunpack.c.l.b16 %v216
    %v837 = vunpack.c.h.b16 %v216
    %v838 = vunpack.c.l.b16 %v217
    %v839 = vunpack.c.h.b16 %v217
    %v840 = vunpack.c.l.b16 %v218
    %v841 = vunpack.c.h.b16 %v218
    %v842 = vunpack.c.l.b16 %v219
    %v843 = vunpack.c.h.b16 %v219
    %v844 = vunpack.c.l.b16 %v220
    %v845 = vunpack.c.h.b16 %v220
    %v846 = vunpack.c.l.b16 %v221
    %v847 = vunpack.c.h.b16 %v221
    %v848 = vunpack.c.l.b16 %v222
    %v849 = vunpack.c.h.b16 %v222
    %v850 = vunpack.c.l.b16 %v223
    %v851 = vunpack.c.h.b16 %v223
    %v852 = vpack.c.b16 %v474, %v468
    %v853 = vpack.c.b16 %v475, %v469
    %v854 = vpack.c.b16 %v476, %v470
    %v855 = vpack.c.b16 %v477, %v471
    %v856 = vpack.c.b16 %v478, %v472
    %v857 = vpack.c.b16 %v479, %v473
    %v858 = vpack.c.b16 %v486, %v480
    %v859 = vpack.c.b16 %v487, %v481
    %v860 = vpack.c.b16 %v488, %v482
    %v861 = vpack.c.b16 %v489, %v483
    %v862 = vpack.c.b16 %v490, %v484
    %v863 = vpack.c.b16 %v491, %v485
    %v864 = vpack.c.b16 %v498, %v492
    %v865 = vpack.c.b16 %v499, %v493
    %v866 = vpack.c.b16 %v500, %v494
    %v867 = vpack.c.b16 %v501, %v495
    %v868 = vpack.c.b16 %v502, %v496
    %v869 = vpack.c.b16 %v503, %v497
    %v870 = vpack.c.b16 %v510, %v504
    %v871 = vpack.c.b16 %v511, %v505
    %v872 = vpack.c.b16 %v512, %v506
    %v873 = vpack.c.b16 %v513, %v507
    %v874 = vpack.c.b16 %v514, %v508
    %v875 = vpack.c.b16 %v515, %v509
    %v876 = vpack.c.b16 %v522, %v516
    %v877 = vpack.c.b16 %v523, %v517
    %v878 = vpack.c.b16 %v524, %v518
    %v879 = vpack.c.b16 %v525, %v519
    %v880 = vpack.c.b16 %v526, %v520
    %v881 = vpack.c.b16 %v527, %v521
    %v882 = vpack.c.b16 %v534, %v528
    %v883 = vpack.c.b16 %v535, %v529
    %v884 = vpack.c.b16 %v536, %v530
    %v885 = vpack.c.b16 %v537, %v531
    %v886 = vpack.c.b16 %v538, %v532
    %v887 = vpack.c.b16 %v539, %v533
    %v888 = vpack.c.b16 %v546, %v540
    %v889 = vpack.c.b16 %v547, %v541
    %v890 = vpack.c.b16 %v548, %v542
    %v891 = vpack.c.b16 %v549, %v543
    %v892 = vpack.c.b16 %v550, %v544
    %v893 = vpack.c.b16 %v551, %v545
    %v894 = vpack.c.b16 %v558, %v552
    %v895 = vpack.c.b16 %v559, %v553
    %v896 = vpack.c.b16 %v560, %v554
    %v897 = vpack.c.b16 %v561, %v555
    %v898 = vpack.c.b16 %v562, %v556
    %v899 = vpack.c.b16 %v563, %v557
    %v900 = vpack.c.b16 %v570, %v564
    %v901 = vpack.c.b16 %v571, %v565
    %v902 = vpack.c.b16 %v572, %v566
    %v903 = vpack.c.b16 %v573, %v567
    %v904 = vpack.c.b16 %v574, %v568
    %v905 = vpack.c.b16 %v575, %v569
    %v906 = vpack.c.b16 %v582, %v576
    %v907 = vpack.c.b16 %v583, %v577
    %v908 = vpack.c.b16 %v584, %v578
    %v909 = vpack.c.b16 %v585, %v579
    %v910 = vpack.c.b16 %v586, %v580
    %v911 = vpack.c.b16 %v587, %v581
    %v912 = vpack.c.b16 %v594, %v588
    %v913 = vpack.c.b16 %v595, %v589
    %v914 = vpack.c.b16 %v596, %v590
    %v915 = vpack.c.b16 %v597, %v591
    %v916 = vpack.c.b16 %v598, %v592
    %v917 = vpack.c.b16 %v599, %v593
    %v918 = vpack.c.b16 %v606, %v600
    %v919 = vpack.c.b16 %v607, %v601
    %v920 = vpack.c.b16 %v608, %v602
    %v921 = vpack.c.b16 %v609, %v603
    %v922 = vpack.c.b16 %v610, %v604
    %v923 = vpack.c.b16 %v611, %v605
    %v924 = vpack.c.b16 %v618, %v612
    %v925 = vpack.c.b16 %v619, %v613
    %v926 = vpack.c.b16 %v620, %v614
    %v927 = vpack.c.b16 %v621, %v615
    %v928 = vpack.c.b16 %v622, %v616
    %v929 = vpack.c.b16 %v623, %v617
    %v930 = vpack.c.b16 %v630, %v624
    %v931 = vpack.c.b16 %v631, %v625
    %v932 = vpack.c.b16 %v632, %v626
    %v933 = vpack.c.b16 %v633, %v627
    %v934 = vpack.c.b16 %v634, %v628
    %v935 = vpack.c.b16 %v635, %v629
    %v936 = vpack.c.b16 %v642, %v636
    %v937 = vpack.c.b16 %v643, %v637
    %v938 = vpack.c.b16 %v644, %v638
    %v939 = vpack.c.b16 %v645, %v639
    %v940 = vpack.c.b16 %v646, %v640
    %v941 = vpack.c.b16 %v647, %v641
    %v942 = vpack.c.b16 %v654, %v648
    %v943 = vpack.c.b16 %v655, %v649
    %v944 = vpack.c.b16 %v656, %v650
    %v945 = vpack.c.b16 %v657, %v651
    %v946 = vpack.c.b16 %v658, %v652
    %v947 = vpack.c.b16 %v659, %v653
    %v948 = vpack.c.b16 %v666, %v660
    %v949 = vpack.c.b16 %v667, %v661
    %v950 = vpack.c.b16 %v668, %v662
    %v951 = vpack.c.b16 %v669, %v663
    %v952 = vpack.c.b16 %v670, %v664
    %v953 = vpack.c.b16 %v671, %v665
    %v954 = vpack.c.b16 %v678, %v672
    %v955 = vpack.c.b16 %v679, %v673
    %v956 = vpack.c.b16 %v680, %v674
    %v957 = vpack.c.b16 %v681, %v675
    %v958 = vpack.c.b16 %v682, %v676
    %v959 = vpack.c.b16 %v683, %v677
    %v960 = vpack.c.b16 %v690, %v684
    %v961 = vpack.c.b16 %v691, %v685
    %v962 = vpack.c.b16 %v692, %v686
    %v963 = vpack.c.b16 %v693, %v687
    %v964 = vpack.c.b16 %v694, %v688
    %v965 = vpack.c.b16 %v695, %v689
    %v966 = vpack.c.b16 %v702, %v696
    %v967 = vpack.c.b16 %v703, %v697
    %v968 = vpack.c.b16 %v704, %v698
    %v969 = vpack.c.b16 %v705, %v699
    %v970 = vpack.c.b16 %v706, %v700
    %v971 = vpack.c.b16 %v707, %v701
    %v972 = vpack.c.b16 %v714, %v708
    %v973 = vpack.c.b16 %v715, %v709
    %v974 = vpack.c.b16 %v716, %v710
    %v975 = vpack.c.b16 %v717, %v711
    %v976 = vpack.c.b16 %v718, %v712
    %v977 = vpack.c.b16 %v719, %v713
    %v978 = vpack.c.b16 %v726, %v720
    %v979 = vpack.c.b16 %v727, %v721
    %v980 = vpack.c.b16 %v728, %v722
    %v981 = vpack.c.b16 %v729, %v723
    %v982 = vpack.c.b16 %v730, %v724
    %v983 = vpack.c.b16 %v731, %v725
    %v984 = vpack.c.b16 %v738, %v732
    %v985 = vpack.c.b16 %v739, %v733
    %v986 = vpack.c.b16 %v740, %v734
    %v987 = vpack.c.b16 %v741, %v735
    %v988 = vpack.c.b16 %v742, %v736
    %v989 = vpack.c.b16 %v743, %v737
    %v990 = vpack.c.b16 %v750, %v744
    %v991 = vpack.c.b16 %v751, %v745
    %v992 = vpack.c.b16 %v752, %v746
    %v993 = vpack.c.b16 %v753, %v747
    %v994 = vpack.c.b16 %v754, %v748
    %v995 = vpack.c.b16 %v755, %v749
    %v996 = vpack.c.b16 %v762, %v756
    %v997 = vpack.c.b16 %v763, %v757
    %v998 = vpack.c.b16 %v764, %v758
    %v999 = vpack.c.b16 %v765, %v759
    %v1000 = vpack.c.b16 %v766, %v760
    %v1001 = vpack.c.b16 %v767, %v761
    %v1002 = vpack.c.b16 %v774, %v768
    %v1003 = vpack.c.b16 %v775, %v769
    %v1004 = vpack.c.b16 %v776, %v770
    %v1005 = vpack.c.b16 %v777, %v771
    %v1006 = vpack.c.b16 %v778, %v772
    %v1007 = vpack.c.b16 %v779, %v773
    %v1008 = vpack.c.b16 %v786, %v780
    %v1009 = vpack.c.b16 %v787, %v781
    %v1010 = vpack.c.b16 %v788, %v782
    %v1011 = vpack.c.b16 %v789, %v783
    %v1012 = vpack.c.b16 %v790, %v784
    %v1013 = vpack.c.b16 %v791, %v785
    %v1014 = vpack.c.b16 %v798, %v792
    %v1015 = vpack.c.b16 %v799, %v793
    %v1016 = vpack.c.b16 %v800, %v794
    %v1017 = vpack.c.b16 %v801, %v795
    %v1018 = vpack.c.b16 %v802, %v796
    %v1019 = vpack.c.b16 %v803, %v797
    %v1020 = vpack.c.b16 %v810, %v804
    %v1021 = vpack.c.b16 %v811, %v805
    %v1022 = vpack.c.b16 %v812, %v806
    %v1023 = vpack.c.b16 %v813, %v807
    %v1024 = vpack.c.b16 %v814, %v808
    %v1025 = vpack.c.b16 %v815, %v809
    %v1026 = vpack.c.b16 %v822, %v816
    %v1027 = vpack.c.b16 %v823, %v817
    %v1028 = vpack.c.b16 %v824, %v818
    %v1029 = vpack.c.b16 %v825, %v819
    %v1030 = vpack.c.b16 %v826, %v820
    %v1031 = vpack.c.b16 %v827, %v821
    %v1032 = vpack.c.b16 %v834, %v828
    %v1033 = vpack.c.b16 %v835, %v829
    %v1034 = vpack.c.b16 %v836, %v830
    %v1035 = vpack.c.b16 %v837, %v831
    %v1036 = vpack.c.b16 %v838, %v832
    %v1037 = vpack.c.b16 %v839, %v833
    %v1038 = vpack.c.b16 %v846, %v840
    %v1039 = vpack.c.b16 %v847, %v841
    %v1040 = vpack.c.b16 %v848, %v842
    %v1041 = vpack.c.b16 %v849, %v843
    %v1042 = vpack.c.b16 %v850, %v844
    %v1043 = vpack.c.b16 %v851, %v845
    %1236 = vmatprep.subr.bf16.mxu0 %v895
    %1237 = vmatpush1.bf16.msra.mxu0 %v894
    %1238 = vmatprep.subr.bf16.mxu0 %v889
    %1239 = vmatpush1.bf16.msra.mxu0 %v888
    %1240 = vmatprep.subr.bf16.mxu0 %v883
    %1241 = vmatpush1.bf16.msra.mxu0 %v882
    %1242 = vmatprep.subr.bf16.mxu0 %v877
    %1243 = vmatpush1.bf16.msra.mxu0 %v876
    %1244 = vmatprep.subr.bf16.mxu0 %v871
    %1245 = vmatpush1.bf16.msra.mxu0 %v870
    %1246 = vmatprep.subr.bf16.mxu0 %v865
    %1247 = vmatpush1.bf16.msra.mxu0 %v864
    %1248 = vmatprep.subr.bf16.mxu0 %v859
    %1249 = vmatpush1.bf16.msra.mxu0 %v858
    %1250 = vmatprep.subr.bf16.mxu0 %v853
    %1251 = vmatpush1.bf16.msra.mxu0 %v852
    %1252 = vmatprep.subr.bf16.mxu0 %v943
    %1253 = vmatpush2.bf16.msra.mxu0 %v942
    %1254 = vmatprep.subr.bf16.mxu0 %v937
    %1255 = vmatpush2.bf16.msra.mxu0 %v936
    %1256 = vmatprep.subr.bf16.mxu0 %v931
    %1257 = vmatpush2.bf16.msra.mxu0 %v930
    %1258 = vmatprep.subr.bf16.mxu0 %v925
    %1259 = vmatpush2.bf16.msra.mxu0 %v924
    %1260 = vmatprep.subr.bf16.mxu0 %v919
    %1261 = vmatpush2.bf16.msra.mxu0 %v918
    %1262 = vmatprep.subr.bf16.mxu0 %v913
    %1263 = vmatpush2.bf16.msra.mxu0 %v912
    %1264 = vmatprep.subr.bf16.mxu0 %v907
    %1265 = vmatpush2.bf16.msra.mxu0 %v906
    %1266 = vmatprep.subr.bf16.mxu0 %v901
    %1267 = vmatpush2.bf16.msra.mxu0 %v900
    %1268 = vmatprep.mubr.bf16.mxu0 %v269
    %1269 = vmatmul.mubr.bf16.gmra.mxu0 %v268
    %v1270 = vpop.f32.mrf.mxu0
    %v1271 = vadd.f32 %v229, %v1270
    %v1272 = vpop.f32.mrf.mxu0
    %v1273 = vadd.f32 %v233, %v1272
    %v1274 = vpop.f32.mrf.mxu0
    %v1275 = vadd.f32 %v229, %v1274
    %v1276 = vpop.f32.mrf.mxu0
    %v1277 = vadd.f32 %v233, %v1276
    %1278 = vdwg.mxu0
    %1279 = vmatprep.subr.bf16.mxu0 %v991
    %1280 = vmatpush1.bf16.msra.mxu0 %v990
    %1281 = vmatprep.subr.bf16.mxu0 %v985
    %1282 = vmatpush1.bf16.msra.mxu0 %v984
    %1283 = vmatprep.subr.bf16.mxu0 %v979
    %1284 = vmatpush1.bf16.msra.mxu0 %v978
    %1285 = vmatprep.subr.bf16.mxu0 %v973
    %1286 = vmatpush1.bf16.msra.mxu0 %v972
    %1287 = vmatprep.subr.bf16.mxu0 %v967
    %1288 = vmatpush1.bf16.msra.mxu0 %v966
    %1289 = vmatprep.subr.bf16.mxu0 %v961
    %1290 = vmatpush1.bf16.msra.mxu0 %v960
    %1291 = vmatprep.subr.bf16.mxu0 %v955
    %1292 = vmatpush1.bf16.msra.mxu0 %v954
    %1293 = vmatprep.subr.bf16.mxu0 %v949
    %1294 = vmatpush1.bf16.msra.mxu0 %v948
    %1295 = vmatprep.subr.bf16.mxu0 %v1039
    %1296 = vmatpush2.bf16.msra.mxu0 %v1038
    %1297 = vmatprep.subr.bf16.mxu0 %v1033
    %1298 = vmatpush2.bf16.msra.mxu0 %v1032
    %1299 = vmatprep.subr.bf16.mxu0 %v1027
    %1300 = vmatpush2.bf16.msra.mxu0 %v1026
    %1301 = vmatprep.subr.bf16.mxu0 %v1021
    %1302 = vmatpush2.bf16.msra.mxu0 %v1020
    %1303 = vmatprep.subr.bf16.mxu0 %v1015
    %1304 = vmatpush2.bf16.msra.mxu0 %v1014
    %1305 = vmatprep.subr.bf16.mxu0 %v1009
    %1306 = vmatpush2.bf16.msra.mxu0 %v1008
    %1307 = vmatprep.subr.bf16.mxu0 %v1003
    %1308 = vmatpush2.bf16.msra.mxu0 %v1002
    %1309 = vmatprep.subr.bf16.mxu0 %v997
    %1310 = vmatpush2.bf16.msra.mxu0 %v996
    %1311 = vmatprep.mubr.bf16.mxu0 %v271
    %1312 = vmatmul.mubr.bf16.gmra.mxu0 %v270
    %v1313 = vpop.f32.mrf.mxu0
    %v1314 = vadd.f32 %v1271, %v1313
    %v1315 = vpop.f32.mrf.mxu0
    %v1316 = vadd.f32 %v1273, %v1315
    %v1317 = vpop.f32.mrf.mxu0
    %v1318 = vadd.f32 %v1275, %v1317
    %v1319 = vpop.f32.mrf.mxu0
    %v1320 = vadd.f32 %v1277, %v1319
    %1321 = vdwg.mxu0
    %1322 = vmatprep.subr.bf16.mxu0 %v897
    %1323 = vmatpush1.bf16.msra.mxu0 %v896
    %1324 = vmatprep.subr.bf16.mxu0 %v891
    %1325 = vmatpush1.bf16.msra.mxu0 %v890
    %1326 = vmatprep.subr.bf16.mxu0 %v885
    %1327 = vmatpush1.bf16.msra.mxu0 %v884
    %1328 = vmatprep.subr.bf16.mxu0 %v879
    %1329 = vmatpush1.bf16.msra.mxu0 %v878
    %1330 = vmatprep.subr.bf16.mxu0 %v873
    %1331 = vmatpush1.bf16.msra.mxu0 %v872
    %1332 = vmatprep.subr.bf16.mxu0 %v867
    %1333 = vmatpush1.bf16.msra.mxu0 %v866
    %1334 = vmatprep.subr.bf16.mxu0 %v861
    %1335 = vmatpush1.bf16.msra.mxu0 %v860
    %1336 = vmatprep.subr.bf16.mxu0 %v855
    %1337 = vmatpush1.bf16.msra.mxu0 %v854
    %1338 = vmatprep.subr.bf16.mxu0 %v945
    %1339 = vmatpush2.bf16.msra.mxu0 %v944
    %1340 = vmatprep.subr.bf16.mxu0 %v939
    %1341 = vmatpush2.bf16.msra.mxu0 %v938
    %1342 = vmatprep.subr.bf16.mxu0 %v933
    %1343 = vmatpush2.bf16.msra.mxu0 %v932
    %1344 = vmatprep.subr.bf16.mxu0 %v927
    %1345 = vmatpush2.bf16.msra.mxu0 %v926
    %1346 = vmatprep.subr.bf16.mxu0 %v921
    %1347 = vmatpush2.bf16.msra.mxu0 %v920
    %1348 = vmatprep.subr.bf16.mxu0 %v915
    %1349 = vmatpush2.bf16.msra.mxu0 %v914
    %1350 = vmatprep.subr.bf16.mxu0 %v909
    %1351 = vmatpush2.bf16.msra.mxu0 %v908
    %1352 = vmatprep.subr.bf16.mxu0 %v903
    %1353 = vmatpush2.bf16.msra.mxu0 %v902
    %1354 = vmatprep.mubr.bf16.mxu0 %v269
    %1355 = vmatmul.mubr.bf16.gmra.mxu0 %v268
    %v1356 = vpop.f32.mrf.mxu0
    %v1357 = vadd.f32 %v237, %v1356
    %v1358 = vpop.f32.mrf.mxu0
    %v1359 = vadd.f32 %v241, %v1358
    %v1360 = vpop.f32.mrf.mxu0
    %v1361 = vadd.f32 %v237, %v1360
    %v1362 = vpop.f32.mrf.mxu0
    %v1363 = vadd.f32 %v241, %v1362
    %1364 = vdwg.mxu0
    %1365 = vmatprep.subr.bf16.mxu0 %v993
    %1366 = vmatpush1.bf16.msra.mxu0 %v992
    %1367 = vmatprep.subr.bf16.mxu0 %v987
    %1368 = vmatpush1.bf16.msra.mxu0 %v986
    %1369 = vmatprep.subr.bf16.mxu0 %v981
    %1370 = vmatpush1.bf16.msra.mxu0 %v980
    %1371 = vmatprep.subr.bf16.mxu0 %v975
    %1372 = vmatpush1.bf16.msra.mxu0 %v974
    %1373 = vmatprep.subr.bf16.mxu0 %v969
    %1374 = vmatpush1.bf16.msra.mxu0 %v968
    %1375 = vmatprep.subr.bf16.mxu0 %v963
    %1376 = vmatpush1.bf16.msra.mxu0 %v962
    %1377 = vmatprep.subr.bf16.mxu0 %v957
    %1378 = vmatpush1.bf16.msra.mxu0 %v956
    %1379 = vmatprep.subr.bf16.mxu0 %v951
    %1380 = vmatpush1.bf16.msra.mxu0 %v950
    %1381 = vmatprep.subr.bf16.mxu0 %v1041
    %1382 = vmatpush2.bf16.msra.mxu0 %v1040
    %1383 = vmatprep.subr.bf16.mxu0 %v1035
    %1384 = vmatpush2.bf16.msra.mxu0 %v1034
    %1385 = vmatprep.subr.bf16.mxu0 %v1029
    %1386 = vmatpush2.bf16.msra.mxu0 %v1028
    %1387 = vmatprep.subr.bf16.mxu0 %v1023
    %1388 = vmatpush2.bf16.msra.mxu0 %v1022
    %1389 = vmatprep.subr.bf16.mxu0 %v1017
    %1390 = vmatpush2.bf16.msra.mxu0 %v1016
    %1391 = vmatprep.subr.bf16.mxu0 %v1011
    %1392 = vmatpush2.bf16.msra.mxu0 %v1010
    %1393 = vmatprep.subr.bf16.mxu0 %v1005
    %1394 = vmatpush2.bf16.msra.mxu0 %v1004
    %1395 = vmatprep.subr.bf16.mxu0 %v999
    %1396 = vmatpush2.bf16.msra.mxu0 %v998
    %1397 = vmatprep.mubr.bf16.mxu0 %v271
    %1398 = vmatmul.mubr.bf16.gmra.mxu0 %v270
    %v1399 = vpop.f32.mrf.mxu0
    %v1400 = vadd.f32 %v1357, %v1399
    %v1401 = vpop.f32.mrf.mxu0
    %v1402 = vadd.f32 %v1359, %v1401
    %v1403 = vpop.f32.mrf.mxu0
    %v1404 = vadd.f32 %v1361, %v1403
    %v1405 = vpop.f32.mrf.mxu0
    %v1406 = vadd.f32 %v1363, %v1405
    %1407 = vdwg.mxu0
    %1408 = vmatprep.subr.bf16.mxu0 %v899
    %1409 = vmatpush1.bf16.msra.mxu0 %v898
    %1410 = vmatprep.subr.bf16.mxu0 %v893
    %1411 = vmatpush1.bf16.msra.mxu0 %v892
    %1412 = vmatprep.subr.bf16.mxu0 %v887
    %1413 = vmatpush1.bf16.msra.mxu0 %v886
    %1414 = vmatprep.subr.bf16.mxu0 %v881
    %1415 = vmatpush1.bf16.msra.mxu0 %v880
    %1416 = vmatprep.subr.bf16.mxu0 %v875
    %1417 = vmatpush1.bf16.msra.mxu0 %v874
    %1418 = vmatprep.subr.bf16.mxu0 %v869
    %1419 = vmatpush1.bf16.msra.mxu0 %v868
    %1420 = vmatprep.subr.bf16.mxu0 %v863
    %1421 = vmatpush1.bf16.msra.mxu0 %v862
    %1422 = vmatprep.subr.bf16.mxu0 %v857
    %1423 = vmatpush1.bf16.msra.mxu0 %v856
    %1424 = vmatprep.subr.bf16.mxu0 %v947
    %1425 = vmatpush2.bf16.msra.mxu0 %v946
    %1426 = vmatprep.subr.bf16.mxu0 %v941
    %1427 = vmatpush2.bf16.msra.mxu0 %v940
    %1428 = vmatprep.subr.bf16.mxu0 %v935
    %1429 = vmatpush2.bf16.msra.mxu0 %v934
    %1430 = vmatprep.subr.bf16.mxu0 %v929
    %1431 = vmatpush2.bf16.msra.mxu0 %v928
    %1432 = vmatprep.subr.bf16.mxu0 %v923
    %1433 = vmatpush2.bf16.msra.mxu0 %v922
    %1434 = vmatprep.subr.bf16.mxu0 %v917
    %1435 = vmatpush2.bf16.msra.mxu0 %v916
    %1436 = vmatprep.subr.bf16.mxu0 %v911
    %1437 = vmatpush2.bf16.msra.mxu0 %v910
    %1438 = vmatprep.subr.bf16.mxu0 %v905
    %1439 = vmatpush2.bf16.msra.mxu0 %v904
    %1440 = vmatprep.mubr.bf16.mxu0 %v269
    %1441 = vmatmul.mubr.bf16.gmra.mxu0 %v268
    %v1442 = vpop.f32.mrf.mxu0
    %v1443 = vadd.f32 %v245, %v1442
    %v1444 = vpop.f32.mrf.mxu0
    %v1445 = vadd.f32 %v249, %v1444
    %v1446 = vpop.f32.mrf.mxu0
    %v1447 = vadd.f32 %v245, %v1446
    %v1448 = vpop.f32.mrf.mxu0
    %v1449 = vadd.f32 %v249, %v1448
    %1450 = vdwg.mxu0
    %1451 = vmatprep.subr.bf16.mxu0 %v995
    %1452 = vmatpush1.bf16.msra.mxu0 %v994
    %1453 = vmatprep.subr.bf16.mxu0 %v989
    %1454 = vmatpush1.bf16.msra.mxu0 %v988
    %1455 = vmatprep.subr.bf16.mxu0 %v983
    %1456 = vmatpush1.bf16.msra.mxu0 %v982
    %1457 = vmatprep.subr.bf16.mxu0 %v977
    %1458 = vmatpush1.bf16.msra.mxu0 %v976
    %1459 = vmatprep.subr.bf16.mxu0 %v971
    %1460 = vmatpush1.bf16.msra.mxu0 %v970
    %1461 = vmatprep.subr.bf16.mxu0 %v965
    %1462 = vmatpush1.bf16.msra.mxu0 %v964
    %1463 = vmatprep.subr.bf16.mxu0 %v959
    %1464 = vmatpush1.bf16.msra.mxu0 %v958
    %1465 = vmatprep.subr.bf16.mxu0 %v953
    %1466 = vmatpush1.bf16.msra.mxu0 %v952
    %1467 = vmatprep.subr.bf16.mxu0 %v1043
    %1468 = vmatpush2.bf16.msra.mxu0 %v1042
    %1469 = vmatprep.subr.bf16.mxu0 %v1037
    %1470 = vmatpush2.bf16.msra.mxu0 %v1036
    %1471 = vmatprep.subr.bf16.mxu0 %v1031
    %1472 = vmatpush2.bf16.msra.mxu0 %v1030
    %1473 = vmatprep.subr.bf16.mxu0 %v1025
    %1474 = vmatpush2.bf16.msra.mxu0 %v1024
    %1475 = vmatprep.subr.bf16.mxu0 %v1019
    %1476 = vmatpush2.bf16.msra.mxu0 %v1018
    %1477 = vmatprep.subr.bf16.mxu0 %v1013
    %1478 = vmatpush2.bf16.msra.mxu0 %v1012
    %1479 = vmatprep.subr.bf16.mxu0 %v1007
    %1480 = vmatpush2.bf16.msra.mxu0 %v1006
    %1481 = vmatprep.subr.bf16.mxu0 %v1001
    %1482 = vmatpush2.bf16.msra.mxu0 %v1000
    %1483 = vmatprep.mubr.bf16.mxu0 %v271
    %1484 = vmatmul.mubr.bf16.gmra.mxu0 %v270
    %v1485 = vpop.f32.mrf.mxu0
    %v1486 = vadd.f32 %v1443, %v1485
    %v1487 = vpop.f32.mrf.mxu0
    %v1488 = vadd.f32 %v1445, %v1487
    %v1489 = vpop.f32.mrf.mxu0
    %v1490 = vadd.f32 %v1447, %v1489
    %v1491 = vpop.f32.mrf.mxu0
    %v1492 = vadd.f32 %v1449, %v1491
    %1493 = vdwg.mxu0
    %v1494 = vmax.f32 %v1314, 0.0
    %v1495 = vmax.f32 %v1316, 0.0
    %v1496 = vmax.f32 %v1400, 0.0
    %v1497 = vmax.f32 %v1402, 0.0
    %v1498 = vmax.f32 %v1486, 0.0
    %v1499 = vmax.f32 %v1488, 0.0
    %v1500 = vmax.f32 %v1318, 0.0
    %v1501 = vmax.f32 %v1320, 0.0
    %v1502 = vmax.f32 %v1404, 0.0
    %v1503 = vmax.f32 %v1406, 0.0
    %v1504 = vmax.f32 %v1490, 0.0
    %v1505 = vmax.f32 %v1492, 0.0
    %v1506 = vpack.c.bf16 %v1500, %v1494
    %v1507 = vpack.c.bf16 %v1501, %v1495
    %v1508 = vpack.c.bf16 %v1502, %v1496
    %v1509 = vpack.c.bf16 %v1503, %v1497
    %v1510 = vpack.c.bf16 %v1504, %v1498
    %v1511 = vpack.c.bf16 %v1505, %v1499
    %v1512 = vld [vmem:[%s3] sm:$0xff]
    %v1513 = vld [vmem:[%s3 + $0x8] sm:$0xff]
    %v1514 = vld [vmem:[%s3 + $0x10] sm:$0xff]
    %v1515 = vld [vmem:[%s3 + $0x18] sm:$0xff]
    %v1516 = vld [vmem:[%s3 + $0x20] sm:$0xff]
    %v1517 = vld [vmem:[%s3 + $0x28] sm:$0xff]
    %v1518 = vld [vmem:[%s3 + $0x30] sm:$0xff]
    %v1519 = vld [vmem:[%s3 + $0x38] sm:$0xff]
    %v1520 = vld [vmem:[%s3 + $0x40] sm:$0xff]
    %v1521 = vld [vmem:[%s3 + $0x48] sm:$0xff]
    %v1522 = vld [vmem:[%s3 + $0x50] sm:$0xff]
    %v1523 = vld [vmem:[%s3 + $0x58] sm:$0xff]
    %v1524 = vld [vmem:[%s3 + $0x60] sm:$0xff]
    %v1525 = vld [vmem:[%s3 + $0x68] sm:$0xff]
    %v1526 = vld [vmem:[%s3 + $0x70] sm:$0xff]
    %v1527 = vld [vmem:[%s3 + $0x78] sm:$0xff]
    %v1528 = vld [vmem:[%s3 + $0x80] sm:$0xff]
    %v1529 = vld [vmem:[%s3 + $0x88] sm:$0xff]
    %v1530 = vld [vmem:[%s3 + $0x90] sm:$0xff]
    %v1531 = vld [vmem:[%s3 + $0x98] sm:$0xff]
    %v1532 = vld [vmem:[%s3 + $0xa0] sm:$0xff]
    %v1533 = vld [vmem:[%s3 + $0xa8] sm:$0xff]
    %v1534 = vld [vmem:[%s3 + $0xb0] sm:$0xff]
    %v1535 = vld [vmem:[%s3 + $0xb8] sm:$0xff]
    %v1536 = vld [vmem:[%s3 + $0xc0] sm:$0xff]
    %v1537 = vld [vmem:[%s3 + $0xc8] sm:$0xff]
    %v1538 = vld [vmem:[%s3 + $0xd0] sm:$0xff]
    %v1539 = vld [vmem:[%s3 + $0xd8] sm:$0xff]
    %v1540 = vld [vmem:[%s3 + $0xe0] sm:$0xff]
    %v1541 = vld [vmem:[%s3 + $0xe8] sm:$0xff]
    %v1542 = vld [vmem:[%s3 + $0xf0] sm:$0xff]
    %v1543 = vld [vmem:[%s3 + $0xf8] sm:$0xff]
    %v1544 = vld [vmem:[%s3 + $0x100] sm:$0xff]
    %v1545 = vld [vmem:[%s3 + $0x108] sm:$0xff]
    %v1546 = vld [vmem:[%s3 + $0x110] sm:$0xff]
    %v1547 = vld [vmem:[%s3 + $0x118] sm:$0xff]
    %v1548 = vld [vmem:[%s3 + $0x120] sm:$0xff]
    %v1549 = vld [vmem:[%s3 + $0x128] sm:$0xff]
    %v1550 = vld [vmem:[%s3 + $0x130] sm:$0xff]
    %v1551 = vld [vmem:[%s3 + $0x138] sm:$0xff]
    %v1552 = vld [vmem:[%s3 + $0x140] sm:$0xff]
    %v1553 = vld [vmem:[%s3 + $0x148] sm:$0xff]
    %v1554 = vld [vmem:[%s3 + $0x150] sm:$0xff]
    %v1555 = vld [vmem:[%s3 + $0x158] sm:$0xff]
    %v1556 = vld [vmem:[%s3 + $0x160] sm:$0xff]
    %v1557 = vld [vmem:[%s3 + $0x168] sm:$0xff]
    %v1558 = vld [vmem:[%s3 + $0x170] sm:$0xff]
    %v1559 = vld [vmem:[%s3 + $0x178] sm:$0xff]
    %v1560 = vld [vmem:[%s3 + $0x180] sm:$0xff]
    %v1561 = vld [vmem:[%s3 + $0x188] sm:$0xff]
    %v1562 = vld [vmem:[%s3 + $0x190] sm:$0xff]
    %v1563 = vld [vmem:[%s3 + $0x198] sm:$0xff]
    %v1564 = vld [vmem:[%s3 + $0x1a0] sm:$0xff]
    %v1565 = vld [vmem:[%s3 + $0x1a8] sm:$0xff]
    %v1566 = vld [vmem:[%s3 + $0x1b0] sm:$0xff]
    %v1567 = vld [vmem:[%s3 + $0x1b8] sm:$0xff]
    %v1568 = vld [vmem:[%s3 + $0x1c0] sm:$0xff]
    %v1569 = vld [vmem:[%s3 + $0x1c8] sm:$0xff]
    %v1570 = vld [vmem:[%s3 + $0x1d0] sm:$0xff]
    %v1571 = vld [vmem:[%s3 + $0x1d8] sm:$0xff]
    %v1572 = vld [vmem:[%s3 + $0x1e0] sm:$0xff]
    %v1573 = vld [vmem:[%s3 + $0x1e8] sm:$0xff]
    %v1574 = vld [vmem:[%s3 + $0x1f0] sm:$0xff]
    %v1575 = vld [vmem:[%s3 + $0x1f8] sm:$0xff]
    %v1576 = vld [vmem:[%s3 + $0x200] sm:$0xff]
    %v1577 = vld [vmem:[%s3 + $0x208] sm:$0xff]
    %v1578 = vld [vmem:[%s3 + $0x210] sm:$0xff]
    %v1579 = vld [vmem:[%s3 + $0x218] sm:$0xff]
    %v1580 = vld [vmem:[%s3 + $0x220] sm:$0xff]
    %v1581 = vld [vmem:[%s3 + $0x228] sm:$0xff]
    %v1582 = vld [vmem:[%s3 + $0x230] sm:$0xff]
    %v1583 = vld [vmem:[%s3 + $0x238] sm:$0xff]
    %v1584 = vld [vmem:[%s3 + $0x240] sm:$0xff]
    %v1585 = vld [vmem:[%s3 + $0x248] sm:$0xff]
    %v1586 = vld [vmem:[%s3 + $0x250] sm:$0xff]
    %v1587 = vld [vmem:[%s3 + $0x258] sm:$0xff]
    %v1588 = vld [vmem:[%s3 + $0x260] sm:$0xff]
    %v1589 = vld [vmem:[%s3 + $0x268] sm:$0xff]
    %v1590 = vld [vmem:[%s3 + $0x270] sm:$0xff]
    %v1591 = vld [vmem:[%s3 + $0x278] sm:$0xff]
    %v1592 = vld [vmem:[%s3 + $0x280] sm:$0xff]
    %v1593 = vld [vmem:[%s3 + $0x288] sm:$0xff]
    %v1594 = vld [vmem:[%s3 + $0x290] sm:$0xff]
    %v1595 = vld [vmem:[%s3 + $0x298] sm:$0xff]
    %v1596 = vld [vmem:[%s3 + $0x2a0] sm:$0xff]
    %v1597 = vld [vmem:[%s3 + $0x2a8] sm:$0xff]
    %v1598 = vld [vmem:[%s3 + $0x2b0] sm:$0xff]
    %v1599 = vld [vmem:[%s3 + $0x2b8] sm:$0xff]
    %v1600 = vld [vmem:[%s3 + $0x2c0] sm:$0xff]
    %v1601 = vld [vmem:[%s3 + $0x2c8] sm:$0xff]
    %v1602 = vld [vmem:[%s3 + $0x2d0] sm:$0xff]
    %v1603 = vld [vmem:[%s3 + $0x2d8] sm:$0xff]
    %v1604 = vld [vmem:[%s3 + $0x2e0] sm:$0xff]
    %v1605 = vld [vmem:[%s3 + $0x2e8] sm:$0xff]
    %v1606 = vld [vmem:[%s3 + $0x2f0] sm:$0xff]
    %v1607 = vld [vmem:[%s3 + $0x2f8] sm:$0xff]
    %v1608 = vld [vmem:[%s3 + $0x300] sm:$0xff]
    %v1609 = vld [vmem:[%s3 + $0x308] sm:$0xff]
    %v1610 = vld [vmem:[%s3 + $0x310] sm:$0xff]
    %v1611 = vld [vmem:[%s3 + $0x318] sm:$0xff]
    %v1612 = vld [vmem:[%s3 + $0x320] sm:$0xff]
    %v1613 = vld [vmem:[%s3 + $0x328] sm:$0xff]
    %v1614 = vld [vmem:[%s3 + $0x330] sm:$0xff]
    %v1615 = vld [vmem:[%s3 + $0x338] sm:$0xff]
    %v1616 = vld [vmem:[%s3 + $0x340] sm:$0xff]
    %v1617 = vld [vmem:[%s3 + $0x348] sm:$0xff]
    %v1618 = vld [vmem:[%s3 + $0x350] sm:$0xff]
    %v1619 = vld [vmem:[%s3 + $0x358] sm:$0xff]
    %v1620 = vld [vmem:[%s3 + $0x360] sm:$0xff]
    %v1621 = vld [vmem:[%s3 + $0x368] sm:$0xff]
    %v1622 = vld [vmem:[%s3 + $0x370] sm:$0xff]
    %v1623 = vld [vmem:[%s3 + $0x378] sm:$0xff]
    %v1624 = vld [vmem:[%s3 + $0x380] sm:$0xff]
    %v1625 = vld [vmem:[%s3 + $0x388] sm:$0xff]
    %v1626 = vld [vmem:[%s3 + $0x390] sm:$0xff]
    %v1627 = vld [vmem:[%s3 + $0x398] sm:$0xff]
    %v1628 = vld [vmem:[%s3 + $0x3a0] sm:$0xff]
    %v1629 = vld [vmem:[%s3 + $0x3a8] sm:$0xff]
    %v1630 = vld [vmem:[%s3 + $0x3b0] sm:$0xff]
    %v1631 = vld [vmem:[%s3 + $0x3b8] sm:$0xff]
    %v1632 = vld [vmem:[%s3 + $0x3c0] sm:$0xff]
    %v1633 = vld [vmem:[%s3 + $0x3c8] sm:$0xff]
    %v1634 = vld [vmem:[%s3 + $0x3d0] sm:$0xff]
    %v1635 = vld [vmem:[%s3 + $0x3d8] sm:$0xff]
    %v1636 = vld [vmem:[%s3 + $0x3e0] sm:$0xff]
    %v1637 = vld [vmem:[%s3 + $0x3e8] sm:$0xff]
    %v1638 = vld [vmem:[%s3 + $0x3f0] sm:$0xff]
    %v1639 = vld [vmem:[%s3 + $0x3f8] sm:$0xff]
    %v1640 = vld [vmem:[%s3 + $0x400] sm:$0xff]
    %v1641 = vld [vmem:[%s3 + $0x408] sm:$0xff]
    %v1642 = vld [vmem:[%s3 + $0x410] sm:$0xff]
    %v1643 = vld [vmem:[%s3 + $0x418] sm:$0xff]
    %v1644 = vld [vmem:[%s3 + $0x420] sm:$0xff]
    %v1645 = vld [vmem:[%s3 + $0x428] sm:$0xff]
    %v1646 = vld [vmem:[%s3 + $0x430] sm:$0xff]
    %v1647 = vld [vmem:[%s3 + $0x438] sm:$0xff]
    %v1648 = vld [vmem:[%s3 + $0x440] sm:$0xff]
    %v1649 = vld [vmem:[%s3 + $0x448] sm:$0xff]
    %v1650 = vld [vmem:[%s3 + $0x450] sm:$0xff]
    %v1651 = vld [vmem:[%s3 + $0x458] sm:$0xff]
    %v1652 = vld [vmem:[%s3 + $0x460] sm:$0xff]
    %v1653 = vld [vmem:[%s3 + $0x468] sm:$0xff]
    %v1654 = vld [vmem:[%s3 + $0x470] sm:$0xff]
    %v1655 = vld [vmem:[%s3 + $0x478] sm:$0xff]
    %v1656 = vld [vmem:[%s3 + $0x480] sm:$0xff]
    %v1657 = vld [vmem:[%s3 + $0x488] sm:$0xff]
    %v1658 = vld [vmem:[%s3 + $0x490] sm:$0xff]
    %v1659 = vld [vmem:[%s3 + $0x498] sm:$0xff]
    %v1660 = vld [vmem:[%s3 + $0x4a0] sm:$0xff]
    %v1661 = vld [vmem:[%s3 + $0x4a8] sm:$0xff]
    %v1662 = vld [vmem:[%s3 + $0x4b0] sm:$0xff]
    %v1663 = vld [vmem:[%s3 + $0x4b8] sm:$0xff]
    %v1664 = vld [vmem:[%s3 + $0x4c0] sm:$0xff]
    %v1665 = vld [vmem:[%s3 + $0x4c8] sm:$0xff]
    %v1666 = vld [vmem:[%s3 + $0x4d0] sm:$0xff]
    %v1667 = vld [vmem:[%s3 + $0x4d8] sm:$0xff]
    %v1668 = vld [vmem:[%s3 + $0x4e0] sm:$0xff]
    %v1669 = vld [vmem:[%s3 + $0x4e8] sm:$0xff]
    %v1670 = vld [vmem:[%s3 + $0x4f0] sm:$0xff]
    %v1671 = vld [vmem:[%s3 + $0x4f8] sm:$0xff]
    %v1672 = vld [vmem:[%s3 + $0x500] sm:$0xff]
    %v1673 = vld [vmem:[%s3 + $0x508] sm:$0xff]
    %v1674 = vld [vmem:[%s3 + $0x510] sm:$0xff]
    %v1675 = vld [vmem:[%s3 + $0x518] sm:$0xff]
    %v1676 = vld [vmem:[%s3 + $0x520] sm:$0xff]
    %v1677 = vld [vmem:[%s3 + $0x528] sm:$0xff]
    %v1678 = vld [vmem:[%s3 + $0x530] sm:$0xff]
    %v1679 = vld [vmem:[%s3 + $0x538] sm:$0xff]
    %v1680 = vld [vmem:[%s3 + $0x540] sm:$0xff]
    %v1681 = vld [vmem:[%s3 + $0x548] sm:$0xff]
    %v1682 = vld [vmem:[%s3 + $0x550] sm:$0xff]
    %v1683 = vld [vmem:[%s3 + $0x558] sm:$0xff]
    %v1684 = vld [vmem:[%s3 + $0x560] sm:$0xff]
    %v1685 = vld [vmem:[%s3 + $0x568] sm:$0xff]
    %v1686 = vld [vmem:[%s3 + $0x570] sm:$0xff]
    %v1687 = vld [vmem:[%s3 + $0x578] sm:$0xff]
    %v1688 = vld [vmem:[%s3 + $0x580] sm:$0xff]
    %v1689 = vld [vmem:[%s3 + $0x588] sm:$0xff]
    %v1690 = vld [vmem:[%s3 + $0x590] sm:$0xff]
    %v1691 = vld [vmem:[%s3 + $0x598] sm:$0xff]
    %v1692 = vld [vmem:[%s3 + $0x5a0] sm:$0xff]
    %v1693 = vld [vmem:[%s3 + $0x5a8] sm:$0xff]
    %v1694 = vld [vmem:[%s3 + $0x5b0] sm:$0xff]
    %v1695 = vld [vmem:[%s3 + $0x5b8] sm:$0xff]
    %v1696 = vld [vmem:[%s3 + $0x5c0] sm:$0xff]
    %v1697 = vld [vmem:[%s3 + $0x5c8] sm:$0xff]
    %v1698 = vld [vmem:[%s3 + $0x5d0] sm:$0xff]
    %v1699 = vld [vmem:[%s3 + $0x5d8] sm:$0xff]
    %v1700 = vld [vmem:[%s3 + $0x5e0] sm:$0xff]
    %v1701 = vld [vmem:[%s3 + $0x5e8] sm:$0xff]
    %v1702 = vld [vmem:[%s3 + $0x5f0] sm:$0xff]
    %v1703 = vld [vmem:[%s3 + $0x5f8] sm:$0xff]
    %v1704 = vld [vmem:[%s3 + $0x600] sm:$0xff]
    %v1705 = vld [vmem:[%s3 + $0x608] sm:$0xff]
    %v1706 = vld [vmem:[%s3 + $0x610] sm:$0xff]
    %v1707 = vld [vmem:[%s3 + $0x618] sm:$0xff]
    %v1708 = vld [vmem:[%s3 + $0x620] sm:$0xff]
    %v1709 = vld [vmem:[%s3 + $0x628] sm:$0xff]
    %v1710 = vld [vmem:[%s3 + $0x630] sm:$0xff]
    %v1711 = vld [vmem:[%s3 + $0x638] sm:$0xff]
    %v1712 = vld [vmem:[%s3 + $0x640] sm:$0xff]
    %v1713 = vld [vmem:[%s3 + $0x648] sm:$0xff]
    %v1714 = vld [vmem:[%s3 + $0x650] sm:$0xff]
    %v1715 = vld [vmem:[%s3 + $0x658] sm:$0xff]
    %v1716 = vld [vmem:[%s3 + $0x660] sm:$0xff]
    %v1717 = vld [vmem:[%s3 + $0x668] sm:$0xff]
    %v1718 = vld [vmem:[%s3 + $0x670] sm:$0xff]
    %v1719 = vld [vmem:[%s3 + $0x678] sm:$0xff]
    %v1720 = vld [vmem:[%s3 + $0x680] sm:$0xff]
    %v1721 = vld [vmem:[%s3 + $0x688] sm:$0xff]
    %v1722 = vld [vmem:[%s3 + $0x690] sm:$0xff]
    %v1723 = vld [vmem:[%s3 + $0x698] sm:$0xff]
    %v1724 = vld [vmem:[%s3 + $0x6a0] sm:$0xff]
    %v1725 = vld [vmem:[%s3 + $0x6a8] sm:$0xff]
    %v1726 = vld [vmem:[%s3 + $0x6b0] sm:$0xff]
    %v1727 = vld [vmem:[%s3 + $0x6b8] sm:$0xff]
    %v1728 = vld [vmem:[%s3 + $0x6c0] sm:$0xff]
    %v1729 = vld [vmem:[%s3 + $0x6c8] sm:$0xff]
    %v1730 = vld [vmem:[%s3 + $0x6d0] sm:$0xff]
    %v1731 = vld [vmem:[%s3 + $0x6d8] sm:$0xff]
    %v1732 = vld [vmem:[%s3 + $0x6e0] sm:$0xff]
    %v1733 = vld [vmem:[%s3 + $0x6e8] sm:$0xff]
    %v1734 = vld [vmem:[%s3 + $0x6f0] sm:$0xff]
    %v1735 = vld [vmem:[%s3 + $0x6f8] sm:$0xff]
    %v1736 = vld [vmem:[%s3 + $0x700] sm:$0xff]
    %v1737 = vld [vmem:[%s3 + $0x708] sm:$0xff]
    %v1738 = vld [vmem:[%s3 + $0x710] sm:$0xff]
    %v1739 = vld [vmem:[%s3 + $0x718] sm:$0xff]
    %v1740 = vld [vmem:[%s3 + $0x720] sm:$0xff]
    %v1741 = vld [vmem:[%s3 + $0x728] sm:$0xff]
    %v1742 = vld [vmem:[%s3 + $0x730] sm:$0xff]
    %v1743 = vld [vmem:[%s3 + $0x738] sm:$0xff]
    %v1744 = vld [vmem:[%s3 + $0x740] sm:$0xff]
    %v1745 = vld [vmem:[%s3 + $0x748] sm:$0xff]
    %v1746 = vld [vmem:[%s3 + $0x750] sm:$0xff]
    %v1747 = vld [vmem:[%s3 + $0x758] sm:$0xff]
    %v1748 = vld [vmem:[%s3 + $0x760] sm:$0xff]
    %v1749 = vld [vmem:[%s3 + $0x768] sm:$0xff]
    %v1750 = vld [vmem:[%s3 + $0x770] sm:$0xff]
    %v1751 = vld [vmem:[%s3 + $0x778] sm:$0xff]
    %v1752 = vld [vmem:[%s3 + $0x780] sm:$0xff]
    %v1753 = vld [vmem:[%s3 + $0x788] sm:$0xff]
    %v1754 = vld [vmem:[%s3 + $0x790] sm:$0xff]
    %v1755 = vld [vmem:[%s3 + $0x798] sm:$0xff]
    %v1756 = vld [vmem:[%s3 + $0x7a0] sm:$0xff]
    %v1757 = vld [vmem:[%s3 + $0x7a8] sm:$0xff]
    %v1758 = vld [vmem:[%s3 + $0x7b0] sm:$0xff]
    %v1759 = vld [vmem:[%s3 + $0x7b8] sm:$0xff]
    %v1760 = vld [vmem:[%s3 + $0x7c0] sm:$0xff]
    %v1761 = vld [vmem:[%s3 + $0x7c8] sm:$0xff]
    %v1762 = vld [vmem:[%s3 + $0x7d0] sm:$0xff]
    %v1763 = vld [vmem:[%s3 + $0x7d8] sm:$0xff]
    %v1764 = vld [vmem:[%s3 + $0x7e0] sm:$0xff]
    %v1765 = vld [vmem:[%s3 + $0x7e8] sm:$0xff]
    %v1766 = vld [vmem:[%s3 + $0x7f0] sm:$0xff]
    %v1767 = vld [vmem:[%s3 + $0x7f8] sm:$0xff]
    %v1768 = vld [vmem:[%s3 + $0x800] sm:$0xff]
    %v1769 = vld [vmem:[%s3 + $0x808] sm:$0xff]
    %v1770 = vld [vmem:[%s3 + $0x810] sm:$0xff]
    %v1771 = vld [vmem:[%s3 + $0x818] sm:$0xff]
    %v1772 = vld [vmem:[%s3 + $0x820] sm:$0xff]
    %v1773 = vld [vmem:[%s3 + $0x828] sm:$0xff]
    %v1774 = vld [vmem:[%s3 + $0x830] sm:$0xff]
    %v1775 = vld [vmem:[%s3 + $0x838] sm:$0xff]
    %v1776 = vld [vmem:[%s3 + $0x840] sm:$0xff]
    %v1777 = vld [vmem:[%s3 + $0x848] sm:$0xff]
    %v1778 = vld [vmem:[%s3 + $0x850] sm:$0xff]
    %v1779 = vld [vmem:[%s3 + $0x858] sm:$0xff]
    %v1780 = vld [vmem:[%s3 + $0x860] sm:$0xff]
    %v1781 = vld [vmem:[%s3 + $0x868] sm:$0xff]
    %v1782 = vld [vmem:[%s3 + $0x870] sm:$0xff]
    %v1783 = vld [vmem:[%s3 + $0x878] sm:$0xff]
    %v1784 = vld [vmem:[%s3 + $0x880] sm:$0xff]
    %v1785 = vld [vmem:[%s3 + $0x888] sm:$0xff]
    %v1786 = vld [vmem:[%s3 + $0x890] sm:$0xff]
    %v1787 = vld [vmem:[%s3 + $0x898] sm:$0xff]
    %v1788 = vld [vmem:[%s3 + $0x8a0] sm:$0xff]
    %v1789 = vld [vmem:[%s3 + $0x8a8] sm:$0xff]
    %v1790 = vld [vmem:[%s3 + $0x8b0] sm:$0xff]
    %v1791 = vld [vmem:[%s3 + $0x8b8] sm:$0xff]
    %v1792 = vld [vmem:[%s3 + $0x8c0] sm:$0xff]
    %v1793 = vld [vmem:[%s3 + $0x8c8] sm:$0xff]
    %v1794 = vld [vmem:[%s3 + $0x8d0] sm:$0xff]
    %v1795 = vld [vmem:[%s3 + $0x8d8] sm:$0xff]
    %v1796 = vld [vmem:[%s3 + $0x8e0] sm:$0xff]
    %v1797 = vld [vmem:[%s3 + $0x8e8] sm:$0xff]
    %v1798 = vld [vmem:[%s3 + $0x8f0] sm:$0xff]
    %v1799 = vld [vmem:[%s3 + $0x8f8] sm:$0xff]
    %v1800 = vld [vmem:[%s4] sm:$0x3f]
    %v1802 = vlaneseq
    %v1803 = vshrl.u32 %v1802, 7
    %v1804 = vsub.s32 0, %v1803
    %v1805 = vrot.slane %v1800, %v1804
    %v1806 = vlaneseq
    %v1807 = vshrl.u32 %v1806, 7
    %v1808 = vsub.s32 1, %v1807
    %v1809 = vrot.slane %v1800, %v1808
    %v1810 = vlaneseq
    %v1811 = vshrl.u32 %v1810, 7
    %v1812 = vsub.s32 2, %v1811
    %v1813 = vrot.slane %v1800, %v1812
    %v1814 = vlaneseq
    %v1815 = vshrl.u32 %v1814, 7
    %v1816 = vsub.s32 3, %v1815
    %v1817 = vrot.slane %v1800, %v1816
    %v1818 = vlaneseq
    %v1819 = vshrl.u32 %v1818, 7
    %v1820 = vsub.s32 4, %v1819
    %v1821 = vrot.slane %v1800, %v1820
    %v1822 = vlaneseq
    %v1823 = vshrl.u32 %v1822, 7
    %v1824 = vsub.s32 5, %v1823
    %v1825 = vrot.slane %v1800, %v1824
    %v2120 = vunpack.c.l.b16 %v1512
    %v2121 = vunpack.c.h.b16 %v1512
    %v2122 = vunpack.c.l.b16 %v1513
    %v2123 = vunpack.c.h.b16 %v1513
    %v2124 = vunpack.c.l.b16 %v1514
    %v2125 = vunpack.c.h.b16 %v1514
    %v2126 = vunpack.c.l.b16 %v1515
    %v2127 = vunpack.c.h.b16 %v1515
    %v2128 = vunpack.c.l.b16 %v1516
    %v2129 = vunpack.c.h.b16 %v1516
    %v2130 = vunpack.c.l.b16 %v1517
    %v2131 = vunpack.c.h.b16 %v1517
    %v2132 = vunpack.c.l.b16 %v1518
    %v2133 = vunpack.c.h.b16 %v1518
    %v2134 = vunpack.c.l.b16 %v1519
    %v2135 = vunpack.c.h.b16 %v1519
    %v2136 = vunpack.c.l.b16 %v1520
    %v2137 = vunpack.c.h.b16 %v1520
    %v2138 = vunpack.c.l.b16 %v1521
    %v2139 = vunpack.c.h.b16 %v1521
    %v2140 = vunpack.c.l.b16 %v1522
    %v2141 = vunpack.c.h.b16 %v1522
    %v2142 = vunpack.c.l.b16 %v1523
    %v2143 = vunpack.c.h.b16 %v1523
    %v2144 = vunpack.c.l.b16 %v1524
    %v2145 = vunpack.c.h.b16 %v1524
    %v2146 = vunpack.c.l.b16 %v1525
    %v2147 = vunpack.c.h.b16 %v1525
    %v2148 = vunpack.c.l.b16 %v1526
    %v2149 = vunpack.c.h.b16 %v1526
    %v2150 = vunpack.c.l.b16 %v1527
    %v2151 = vunpack.c.h.b16 %v1527
    %v2152 = vunpack.c.l.b16 %v1528
    %v2153 = vunpack.c.h.b16 %v1528
    %v2154 = vunpack.c.l.b16 %v1529
    %v2155 = vunpack.c.h.b16 %v1529
    %v2156 = vunpack.c.l.b16 %v1530
    %v2157 = vunpack.c.h.b16 %v1530
    %v2158 = vunpack.c.l.b16 %v1531
    %v2159 = vunpack.c.h.b16 %v1531
    %v2160 = vunpack.c.l.b16 %v1532
    %v2161 = vunpack.c.h.b16 %v1532
    %v2162 = vunpack.c.l.b16 %v1533
    %v2163 = vunpack.c.h.b16 %v1533
    %v2164 = vunpack.c.l.b16 %v1534
    %v2165 = vunpack.c.h.b16 %v1534
    %v2166 = vunpack.c.l.b16 %v1535
    %v2167 = vunpack.c.h.b16 %v1535
    %v2168 = vunpack.c.l.b16 %v1536
    %v2169 = vunpack.c.h.b16 %v1536
    %v2170 = vunpack.c.l.b16 %v1537
    %v2171 = vunpack.c.h.b16 %v1537
    %v2172 = vunpack.c.l.b16 %v1538
    %v2173 = vunpack.c.h.b16 %v1538
    %v2174 = vunpack.c.l.b16 %v1539
    %v2175 = vunpack.c.h.b16 %v1539
    %v2176 = vunpack.c.l.b16 %v1540
    %v2177 = vunpack.c.h.b16 %v1540
    %v2178 = vunpack.c.l.b16 %v1541
    %v2179 = vunpack.c.h.b16 %v1541
    %v2180 = vunpack.c.l.b16 %v1542
    %v2181 = vunpack.c.h.b16 %v1542
    %v2182 = vunpack.c.l.b16 %v1543
    %v2183 = vunpack.c.h.b16 %v1543
    %v2184 = vunpack.c.l.b16 %v1544
    %v2185 = vunpack.c.h.b16 %v1544
    %v2186 = vunpack.c.l.b16 %v1545
    %v2187 = vunpack.c.h.b16 %v1545
    %v2188 = vunpack.c.l.b16 %v1546
    %v2189 = vunpack.c.h.b16 %v1546
    %v2190 = vunpack.c.l.b16 %v1547
    %v2191 = vunpack.c.h.b16 %v1547
    %v2192 = vunpack.c.l.b16 %v1548
    %v2193 = vunpack.c.h.b16 %v1548
    %v2194 = vunpack.c.l.b16 %v1549
    %v2195 = vunpack.c.h.b16 %v1549
    %v2196 = vunpack.c.l.b16 %v1550
    %v2197 = vunpack.c.h.b16 %v1550
    %v2198 = vunpack.c.l.b16 %v1551
    %v2199 = vunpack.c.h.b16 %v1551
    %v2200 = vunpack.c.l.b16 %v1552
    %v2201 = vunpack.c.h.b16 %v1552
    %v2202 = vunpack.c.l.b16 %v1553
    %v2203 = vunpack.c.h.b16 %v1553
    %v2204 = vunpack.c.l.b16 %v1554
    %v2205 = vunpack.c.h.b16 %v1554
    %v2206 = vunpack.c.l.b16 %v1555
    %v2207 = vunpack.c.h.b16 %v1555
    %v2208 = vunpack.c.l.b16 %v1556
    %v2209 = vunpack.c.h.b16 %v1556
    %v2210 = vunpack.c.l.b16 %v1557
    %v2211 = vunpack.c.h.b16 %v1557
    %v2212 = vunpack.c.l.b16 %v1558
    %v2213 = vunpack.c.h.b16 %v1558
    %v2214 = vunpack.c.l.b16 %v1559
    %v2215 = vunpack.c.h.b16 %v1559
    %v2216 = vunpack.c.l.b16 %v1560
    %v2217 = vunpack.c.h.b16 %v1560
    %v2218 = vunpack.c.l.b16 %v1561
    %v2219 = vunpack.c.h.b16 %v1561
    %v2220 = vunpack.c.l.b16 %v1562
    %v2221 = vunpack.c.h.b16 %v1562
    %v2222 = vunpack.c.l.b16 %v1563
    %v2223 = vunpack.c.h.b16 %v1563
    %v2224 = vunpack.c.l.b16 %v1564
    %v2225 = vunpack.c.h.b16 %v1564
    %v2226 = vunpack.c.l.b16 %v1565
    %v2227 = vunpack.c.h.b16 %v1565
    %v2228 = vunpack.c.l.b16 %v1566
    %v2229 = vunpack.c.h.b16 %v1566
    %v2230 = vunpack.c.l.b16 %v1567
    %v2231 = vunpack.c.h.b16 %v1567
    %v2232 = vunpack.c.l.b16 %v1568
    %v2233 = vunpack.c.h.b16 %v1568
    %v2234 = vunpack.c.l.b16 %v1569
    %v2235 = vunpack.c.h.b16 %v1569
    %v2236 = vunpack.c.l.b16 %v1570
    %v2237 = vunpack.c.h.b16 %v1570
    %v2238 = vunpack.c.l.b16 %v1571
    %v2239 = vunpack.c.h.b16 %v1571
    %v2240 = vunpack.c.l.b16 %v1572
    %v2241 = vunpack.c.h.b16 %v1572
    %v2242 = vunpack.c.l.b16 %v1573
    %v2243 = vunpack.c.h.b16 %v1573
    %v2244 = vunpack.c.l.b16 %v1574
    %v2245 = vunpack.c.h.b16 %v1574
    %v2246 = vunpack.c.l.b16 %v1575
    %v2247 = vunpack.c.h.b16 %v1575
    %v2248 = vunpack.c.l.b16 %v1576
    %v2249 = vunpack.c.h.b16 %v1576
    %v2250 = vunpack.c.l.b16 %v1577
    %v2251 = vunpack.c.h.b16 %v1577
    %v2252 = vunpack.c.l.b16 %v1578
    %v2253 = vunpack.c.h.b16 %v1578
    %v2254 = vunpack.c.l.b16 %v1579
    %v2255 = vunpack.c.h.b16 %v1579
    %v2256 = vunpack.c.l.b16 %v1580
    %v2257 = vunpack.c.h.b16 %v1580
    %v2258 = vunpack.c.l.b16 %v1581
    %v2259 = vunpack.c.h.b16 %v1581
    %v2260 = vunpack.c.l.b16 %v1582
    %v2261 = vunpack.c.h.b16 %v1582
    %v2262 = vunpack.c.l.b16 %v1583
    %v2263 = vunpack.c.h.b16 %v1583
    %v2264 = vunpack.c.l.b16 %v1584
    %v2265 = vunpack.c.h.b16 %v1584
    %v2266 = vunpack.c.l.b16 %v1585
    %v2267 = vunpack.c.h.b16 %v1585
    %v2268 = vunpack.c.l.b16 %v1586
    %v2269 = vunpack.c.h.b16 %v1586
    %v2270 = vunpack.c.l.b16 %v1587
    %v2271 = vunpack.c.h.b16 %v1587
    %v2272 = vunpack.c.l.b16 %v1588
    %v2273 = vunpack.c.h.b16 %v1588
    %v2274 = vunpack.c.l.b16 %v1589
    %v2275 = vunpack.c.h.b16 %v1589
    %v2276 = vunpack.c.l.b16 %v1590
    %v2277 = vunpack.c.h.b16 %v1590
    %v2278 = vunpack.c.l.b16 %v1591
    %v2279 = vunpack.c.h.b16 %v1591
    %v2280 = vunpack.c.l.b16 %v1592
    %v2281 = vunpack.c.h.b16 %v1592
    %v2282 = vunpack.c.l.b16 %v1593
    %v2283 = vunpack.c.h.b16 %v1593
    %v2284 = vunpack.c.l.b16 %v1594
    %v2285 = vunpack.c.h.b16 %v1594
    %v2286 = vunpack.c.l.b16 %v1595
    %v2287 = vunpack.c.h.b16 %v1595
    %v2288 = vunpack.c.l.b16 %v1596
    %v2289 = vunpack.c.h.b16 %v1596
    %v2290 = vunpack.c.l.b16 %v1597
    %v2291 = vunpack.c.h.b16 %v1597
    %v2292 = vunpack.c.l.b16 %v1598
    %v2293 = vunpack.c.h.b16 %v1598
    %v2294 = vunpack.c.l.b16 %v1599
    %v2295 = vunpack.c.h.b16 %v1599
    %v2296 = vunpack.c.l.b16 %v1600
    %v2297 = vunpack.c.h.b16 %v1600
    %v2298 = vunpack.c.l.b16 %v1601
    %v2299 = vunpack.c.h.b16 %v1601
    %v2300 = vunpack.c.l.b16 %v1602
    %v2301 = vunpack.c.h.b16 %v1602
    %v2302 = vunpack.c.l.b16 %v1603
    %v2303 = vunpack.c.h.b16 %v1603
    %v2304 = vunpack.c.l.b16 %v1604
    %v2305 = vunpack.c.h.b16 %v1604
    %v2306 = vunpack.c.l.b16 %v1605
    %v2307 = vunpack.c.h.b16 %v1605
    %v2308 = vunpack.c.l.b16 %v1606
    %v2309 = vunpack.c.h.b16 %v1606
    %v2310 = vunpack.c.l.b16 %v1607
    %v2311 = vunpack.c.h.b16 %v1607
    %v2312 = vunpack.c.l.b16 %v1608
    %v2313 = vunpack.c.h.b16 %v1608
    %v2314 = vunpack.c.l.b16 %v1609
    %v2315 = vunpack.c.h.b16 %v1609
    %v2316 = vunpack.c.l.b16 %v1610
    %v2317 = vunpack.c.h.b16 %v1610
    %v2318 = vunpack.c.l.b16 %v1611
    %v2319 = vunpack.c.h.b16 %v1611
    %v2320 = vunpack.c.l.b16 %v1612
    %v2321 = vunpack.c.h.b16 %v1612
    %v2322 = vunpack.c.l.b16 %v1613
    %v2323 = vunpack.c.h.b16 %v1613
    %v2324 = vunpack.c.l.b16 %v1614
    %v2325 = vunpack.c.h.b16 %v1614
    %v2326 = vunpack.c.l.b16 %v1615
    %v2327 = vunpack.c.h.b16 %v1615
    %v2328 = vunpack.c.l.b16 %v1616
    %v2329 = vunpack.c.h.b16 %v1616
    %v2330 = vunpack.c.l.b16 %v1617
    %v2331 = vunpack.c.h.b16 %v1617
    %v2332 = vunpack.c.l.b16 %v1618
    %v2333 = vunpack.c.h.b16 %v1618
    %v2334 = vunpack.c.l.b16 %v1619
    %v2335 = vunpack.c.h.b16 %v1619
    %v2336 = vunpack.c.l.b16 %v1620
    %v2337 = vunpack.c.h.b16 %v1620
    %v2338 = vunpack.c.l.b16 %v1621
    %v2339 = vunpack.c.h.b16 %v1621
    %v2340 = vunpack.c.l.b16 %v1622
    %v2341 = vunpack.c.h.b16 %v1622
    %v2342 = vunpack.c.l.b16 %v1623
    %v2343 = vunpack.c.h.b16 %v1623
    %v2344 = vunpack.c.l.b16 %v1624
    %v2345 = vunpack.c.h.b16 %v1624
    %v2346 = vunpack.c.l.b16 %v1625
    %v2347 = vunpack.c.h.b16 %v1625
    %v2348 = vunpack.c.l.b16 %v1626
    %v2349 = vunpack.c.h.b16 %v1626
    %v2350 = vunpack.c.l.b16 %v1627
    %v2351 = vunpack.c.h.b16 %v1627
    %v2352 = vunpack.c.l.b16 %v1628
    %v2353 = vunpack.c.h.b16 %v1628
    %v2354 = vunpack.c.l.b16 %v1629
    %v2355 = vunpack.c.h.b16 %v1629
    %v2356 = vunpack.c.l.b16 %v1630
    %v2357 = vunpack.c.h.b16 %v1630
    %v2358 = vunpack.c.l.b16 %v1631
    %v2359 = vunpack.c.h.b16 %v1631
    %v2360 = vunpack.c.l.b16 %v1632
    %v2361 = vunpack.c.h.b16 %v1632
    %v2362 = vunpack.c.l.b16 %v1633
    %v2363 = vunpack.c.h.b16 %v1633
    %v2364 = vunpack.c.l.b16 %v1634
    %v2365 = vunpack.c.h.b16 %v1634
    %v2366 = vunpack.c.l.b16 %v1635
    %v2367 = vunpack.c.h.b16 %v1635
    %v2368 = vunpack.c.l.b16 %v1636
    %v2369 = vunpack.c.h.b16 %v1636
    %v2370 = vunpack.c.l.b16 %v1637
    %v2371 = vunpack.c.h.b16 %v1637
    %v2372 = vunpack.c.l.b16 %v1638
    %v2373 = vunpack.c.h.b16 %v1638
    %v2374 = vunpack.c.l.b16 %v1639
    %v2375 = vunpack.c.h.b16 %v1639
    %v2376 = vunpack.c.l.b16 %v1640
    %v2377 = vunpack.c.h.b16 %v1640
    %v2378 = vunpack.c.l.b16 %v1641
    %v2379 = vunpack.c.h.b16 %v1641
    %v2380 = vunpack.c.l.b16 %v1642
    %v2381 = vunpack.c.h.b16 %v1642
    %v2382 = vunpack.c.l.b16 %v1643
    %v2383 = vunpack.c.h.b16 %v1643
    %v2384 = vunpack.c.l.b16 %v1644
    %v2385 = vunpack.c.h.b16 %v1644
    %v2386 = vunpack.c.l.b16 %v1645
    %v2387 = vunpack.c.h.b16 %v1645
    %v2388 = vunpack.c.l.b16 %v1646
    %v2389 = vunpack.c.h.b16 %v1646
    %v2390 = vunpack.c.l.b16 %v1647
    %v2391 = vunpack.c.h.b16 %v1647
    %v2392 = vunpack.c.l.b16 %v1648
    %v2393 = vunpack.c.h.b16 %v1648
    %v2394 = vunpack.c.l.b16 %v1649
    %v2395 = vunpack.c.h.b16 %v1649
    %v2396 = vunpack.c.l.b16 %v1650
    %v2397 = vunpack.c.h.b16 %v1650
    %v2398 = vunpack.c.l.b16 %v1651
    %v2399 = vunpack.c.h.b16 %v1651
    %v2400 = vunpack.c.l.b16 %v1652
    %v2401 = vunpack.c.h.b16 %v1652
    %v2402 = vunpack.c.l.b16 %v1653
    %v2403 = vunpack.c.h.b16 %v1653
    %v2404 = vunpack.c.l.b16 %v1654
    %v2405 = vunpack.c.h.b16 %v1654
    %v2406 = vunpack.c.l.b16 %v1655
    %v2407 = vunpack.c.h.b16 %v1655
    %v2408 = vunpack.c.l.b16 %v1656
    %v2409 = vunpack.c.h.b16 %v1656
    %v2410 = vunpack.c.l.b16 %v1657
    %v2411 = vunpack.c.h.b16 %v1657
    %v2412 = vunpack.c.l.b16 %v1658
    %v2413 = vunpack.c.h.b16 %v1658
    %v2414 = vunpack.c.l.b16 %v1659
    %v2415 = vunpack.c.h.b16 %v1659
    %v2416 = vunpack.c.l.b16 %v1660
    %v2417 = vunpack.c.h.b16 %v1660
    %v2418 = vunpack.c.l.b16 %v1661
    %v2419 = vunpack.c.h.b16 %v1661
    %v2420 = vunpack.c.l.b16 %v1662
    %v2421 = vunpack.c.h.b16 %v1662
    %v2422 = vunpack.c.l.b16 %v1663
    %v2423 = vunpack.c.h.b16 %v1663
    %v2424 = vunpack.c.l.b16 %v1664
    %v2425 = vunpack.c.h.b16 %v1664
    %v2426 = vunpack.c.l.b16 %v1665
    %v2427 = vunpack.c.h.b16 %v1665
    %v2428 = vunpack.c.l.b16 %v1666
    %v2429 = vunpack.c.h.b16 %v1666
    %v2430 = vunpack.c.l.b16 %v1667
    %v2431 = vunpack.c.h.b16 %v1667
    %v2432 = vunpack.c.l.b16 %v1668
    %v2433 = vunpack.c.h.b16 %v1668
    %v2434 = vunpack.c.l.b16 %v1669
    %v2435 = vunpack.c.h.b16 %v1669
    %v2436 = vunpack.c.l.b16 %v1670
    %v2437 = vunpack.c.h.b16 %v1670
    %v2438 = vunpack.c.l.b16 %v1671
    %v2439 = vunpack.c.h.b16 %v1671
    %v2440 = vunpack.c.l.b16 %v1672
    %v2441 = vunpack.c.h.b16 %v1672
    %v2442 = vunpack.c.l.b16 %v1673
    %v2443 = vunpack.c.h.b16 %v1673
    %v2444 = vunpack.c.l.b16 %v1674
    %v2445 = vunpack.c.h.b16 %v1674
    %v2446 = vunpack.c.l.b16 %v1675
    %v2447 = vunpack.c.h.b16 %v1675
    %v2448 = vunpack.c.l.b16 %v1676
    %v2449 = vunpack.c.h.b16 %v1676
    %v2450 = vunpack.c.l.b16 %v1677
    %v2451 = vunpack.c.h.b16 %v1677
    %v2452 = vunpack.c.l.b16 %v1678
    %v2453 = vunpack.c.h.b16 %v1678
    %v2454 = vunpack.c.l.b16 %v1679
    %v2455 = vunpack.c.h.b16 %v1679
    %v2456 = vunpack.c.l.b16 %v1680
    %v2457 = vunpack.c.h.b16 %v1680
    %v2458 = vunpack.c.l.b16 %v1681
    %v2459 = vunpack.c.h.b16 %v1681
    %v2460 = vunpack.c.l.b16 %v1682
    %v2461 = vunpack.c.h.b16 %v1682
    %v2462 = vunpack.c.l.b16 %v1683
    %v2463 = vunpack.c.h.b16 %v1683
    %v2464 = vunpack.c.l.b16 %v1684
    %v2465 = vunpack.c.h.b16 %v1684
    %v2466 = vunpack.c.l.b16 %v1685
    %v2467 = vunpack.c.h.b16 %v1685
    %v2468 = vunpack.c.l.b16 %v1686
    %v2469 = vunpack.c.h.b16 %v1686
    %v2470 = vunpack.c.l.b16 %v1687
    %v2471 = vunpack.c.h.b16 %v1687
    %v2472 = vunpack.c.l.b16 %v1688
    %v2473 = vunpack.c.h.b16 %v1688
    %v2474 = vunpack.c.l.b16 %v1689
    %v2475 = vunpack.c.h.b16 %v1689
    %v2476 = vunpack.c.l.b16 %v1690
    %v2477 = vunpack.c.h.b16 %v1690
    %v2478 = vunpack.c.l.b16 %v1691
    %v2479 = vunpack.c.h.b16 %v1691
    %v2480 = vunpack.c.l.b16 %v1692
    %v2481 = vunpack.c.h.b16 %v1692
    %v2482 = vunpack.c.l.b16 %v1693
    %v2483 = vunpack.c.h.b16 %v1693
    %v2484 = vunpack.c.l.b16 %v1694
    %v2485 = vunpack.c.h.b16 %v1694
    %v2486 = vunpack.c.l.b16 %v1695
    %v2487 = vunpack.c.h.b16 %v1695
    %v2488 = vunpack.c.l.b16 %v1696
    %v2489 = vunpack.c.h.b16 %v1696
    %v2490 = vunpack.c.l.b16 %v1697
    %v2491 = vunpack.c.h.b16 %v1697
    %v2492 = vunpack.c.l.b16 %v1698
    %v2493 = vunpack.c.h.b16 %v1698
    %v2494 = vunpack.c.l.b16 %v1699
    %v2495 = vunpack.c.h.b16 %v1699
    %v2496 = vunpack.c.l.b16 %v1700
    %v2497 = vunpack.c.h.b16 %v1700
    %v2498 = vunpack.c.l.b16 %v1701
    %v2499 = vunpack.c.h.b16 %v1701
    %v2500 = vunpack.c.l.b16 %v1702
    %v2501 = vunpack.c.h.b16 %v1702
    %v2502 = vunpack.c.l.b16 %v1703
    %v2503 = vunpack.c.h.b16 %v1703
    %v2504 = vunpack.c.l.b16 %v1704
    %v2505 = vunpack.c.h.b16 %v1704
    %v2506 = vunpack.c.l.b16 %v1705
    %v2507 = vunpack.c.h.b16 %v1705
    %v2508 = vunpack.c.l.b16 %v1706
    %v2509 = vunpack.c.h.b16 %v1706
    %v2510 = vunpack.c.l.b16 %v1707
    %v2511 = vunpack.c.h.b16 %v1707
    %v2512 = vunpack.c.l.b16 %v1708
    %v2513 = vunpack.c.h.b16 %v1708
    %v2514 = vunpack.c.l.b16 %v1709
    %v2515 = vunpack.c.h.b16 %v1709
    %v2516 = vunpack.c.l.b16 %v1710
    %v2517 = vunpack.c.h.b16 %v1710
    %v2518 = vunpack.c.l.b16 %v1711
    %v2519 = vunpack.c.h.b16 %v1711
    %v2520 = vunpack.c.l.b16 %v1712
    %v2521 = vunpack.c.h.b16 %v1712
    %v2522 = vunpack.c.l.b16 %v1713
    %v2523 = vunpack.c.h.b16 %v1713
    %v2524 = vunpack.c.l.b16 %v1714
    %v2525 = vunpack.c.h.b16 %v1714
    %v2526 = vunpack.c.l.b16 %v1715
    %v2527 = vunpack.c.h.b16 %v1715
    %v2528 = vunpack.c.l.b16 %v1716
    %v2529 = vunpack.c.h.b16 %v1716
    %v2530 = vunpack.c.l.b16 %v1717
    %v2531 = vunpack.c.h.b16 %v1717
    %v2532 = vunpack.c.l.b16 %v1718
    %v2533 = vunpack.c.h.b16 %v1718
    %v2534 = vunpack.c.l.b16 %v1719
    %v2535 = vunpack.c.h.b16 %v1719
    %v2536 = vunpack.c.l.b16 %v1720
    %v2537 = vunpack.c.h.b16 %v1720
    %v2538 = vunpack.c.l.b16 %v1721
    %v2539 = vunpack.c.h.b16 %v1721
    %v2540 = vunpack.c.l.b16 %v1722
    %v2541 = vunpack.c.h.b16 %v1722
    %v2542 = vunpack.c.l.b16 %v1723
    %v2543 = vunpack.c.h.b16 %v1723
    %v2544 = vunpack.c.l.b16 %v1724
    %v2545 = vunpack.c.h.b16 %v1724
    %v2546 = vunpack.c.l.b16 %v1725
    %v2547 = vunpack.c.h.b16 %v1725
    %v2548 = vunpack.c.l.b16 %v1726
    %v2549 = vunpack.c.h.b16 %v1726
    %v2550 = vunpack.c.l.b16 %v1727
    %v2551 = vunpack.c.h.b16 %v1727
    %v2552 = vunpack.c.l.b16 %v1728
    %v2553 = vunpack.c.h.b16 %v1728
    %v2554 = vunpack.c.l.b16 %v1729
    %v2555 = vunpack.c.h.b16 %v1729
    %v2556 = vunpack.c.l.b16 %v1730
    %v2557 = vunpack.c.h.b16 %v1730
    %v2558 = vunpack.c.l.b16 %v1731
    %v2559 = vunpack.c.h.b16 %v1731
    %v2560 = vunpack.c.l.b16 %v1732
    %v2561 = vunpack.c.h.b16 %v1732
    %v2562 = vunpack.c.l.b16 %v1733
    %v2563 = vunpack.c.h.b16 %v1733
    %v2564 = vunpack.c.l.b16 %v1734
    %v2565 = vunpack.c.h.b16 %v1734
    %v2566 = vunpack.c.l.b16 %v1735
    %v2567 = vunpack.c.h.b16 %v1735
    %v2568 = vunpack.c.l.b16 %v1736
    %v2569 = vunpack.c.h.b16 %v1736
    %v2570 = vunpack.c.l.b16 %v1737
    %v2571 = vunpack.c.h.b16 %v1737
    %v2572 = vunpack.c.l.b16 %v1738
    %v2573 = vunpack.c.h.b16 %v1738
    %v2574 = vunpack.c.l.b16 %v1739
    %v2575 = vunpack.c.h.b16 %v1739
    %v2576 = vunpack.c.l.b16 %v1740
    %v2577 = vunpack.c.h.b16 %v1740
    %v2578 = vunpack.c.l.b16 %v1741
    %v2579 = vunpack.c.h.b16 %v1741
    %v2580 = vunpack.c.l.b16 %v1742
    %v2581 = vunpack.c.h.b16 %v1742
    %v2582 = vunpack.c.l.b16 %v1743
    %v2583 = vunpack.c.h.b16 %v1743
    %v2584 = vunpack.c.l.b16 %v1744
    %v2585 = vunpack.c.h.b16 %v1744
    %v2586 = vunpack.c.l.b16 %v1745
    %v2587 = vunpack.c.h.b16 %v1745
    %v2588 = vunpack.c.l.b16 %v1746
    %v2589 = vunpack.c.h.b16 %v1746
    %v2590 = vunpack.c.l.b16 %v1747
    %v2591 = vunpack.c.h.b16 %v1747
    %v2592 = vunpack.c.l.b16 %v1748
    %v2593 = vunpack.c.h.b16 %v1748
    %v2594 = vunpack.c.l.b16 %v1749
    %v2595 = vunpack.c.h.b16 %v1749
    %v2596 = vunpack.c.l.b16 %v1750
    %v2597 = vunpack.c.h.b16 %v1750
    %v2598 = vunpack.c.l.b16 %v1751
    %v2599 = vunpack.c.h.b16 %v1751
    %v2600 = vunpack.c.l.b16 %v1752
    %v2601 = vunpack.c.h.b16 %v1752
    %v2602 = vunpack.c.l.b16 %v1753
    %v2603 = vunpack.c.h.b16 %v1753
    %v2604 = vunpack.c.l.b16 %v1754
    %v2605 = vunpack.c.h.b16 %v1754
    %v2606 = vunpack.c.l.b16 %v1755
    %v2607 = vunpack.c.h.b16 %v1755
    %v2608 = vunpack.c.l.b16 %v1756
    %v2609 = vunpack.c.h.b16 %v1756
    %v2610 = vunpack.c.l.b16 %v1757
    %v2611 = vunpack.c.h.b16 %v1757
    %v2612 = vunpack.c.l.b16 %v1758
    %v2613 = vunpack.c.h.b16 %v1758
    %v2614 = vunpack.c.l.b16 %v1759
    %v2615 = vunpack.c.h.b16 %v1759
    %v2616 = vunpack.c.l.b16 %v1760
    %v2617 = vunpack.c.h.b16 %v1760
    %v2618 = vunpack.c.l.b16 %v1761
    %v2619 = vunpack.c.h.b16 %v1761
    %v2620 = vunpack.c.l.b16 %v1762
    %v2621 = vunpack.c.h.b16 %v1762
    %v2622 = vunpack.c.l.b16 %v1763
    %v2623 = vunpack.c.h.b16 %v1763
    %v2624 = vunpack.c.l.b16 %v1764
    %v2625 = vunpack.c.h.b16 %v1764
    %v2626 = vunpack.c.l.b16 %v1765
    %v2627 = vunpack.c.h.b16 %v1765
    %v2628 = vunpack.c.l.b16 %v1766
    %v2629 = vunpack.c.h.b16 %v1766
    %v2630 = vunpack.c.l.b16 %v1767
    %v2631 = vunpack.c.h.b16 %v1767
    %v2632 = vunpack.c.l.b16 %v1768
    %v2633 = vunpack.c.h.b16 %v1768
    %v2634 = vunpack.c.l.b16 %v1769
    %v2635 = vunpack.c.h.b16 %v1769
    %v2636 = vunpack.c.l.b16 %v1770
    %v2637 = vunpack.c.h.b16 %v1770
    %v2638 = vunpack.c.l.b16 %v1771
    %v2639 = vunpack.c.h.b16 %v1771
    %v2640 = vunpack.c.l.b16 %v1772
    %v2641 = vunpack.c.h.b16 %v1772
    %v2642 = vunpack.c.l.b16 %v1773
    %v2643 = vunpack.c.h.b16 %v1773
    %v2644 = vunpack.c.l.b16 %v1774
    %v2645 = vunpack.c.h.b16 %v1774
    %v2646 = vunpack.c.l.b16 %v1775
    %v2647 = vunpack.c.h.b16 %v1775
    %v2648 = vunpack.c.l.b16 %v1776
    %v2649 = vunpack.c.h.b16 %v1776
    %v2650 = vunpack.c.l.b16 %v1777
    %v2651 = vunpack.c.h.b16 %v1777
    %v2652 = vunpack.c.l.b16 %v1778
    %v2653 = vunpack.c.h.b16 %v1778
    %v2654 = vunpack.c.l.b16 %v1779
    %v2655 = vunpack.c.h.b16 %v1779
    %v2656 = vunpack.c.l.b16 %v1780
    %v2657 = vunpack.c.h.b16 %v1780
    %v2658 = vunpack.c.l.b16 %v1781
    %v2659 = vunpack.c.h.b16 %v1781
    %v2660 = vunpack.c.l.b16 %v1782
    %v2661 = vunpack.c.h.b16 %v1782
    %v2662 = vunpack.c.l.b16 %v1783
    %v2663 = vunpack.c.h.b16 %v1783
    %v2664 = vunpack.c.l.b16 %v1784
    %v2665 = vunpack.c.h.b16 %v1784
    %v2666 = vunpack.c.l.b16 %v1785
    %v2667 = vunpack.c.h.b16 %v1785
    %v2668 = vunpack.c.l.b16 %v1786
    %v2669 = vunpack.c.h.b16 %v1786
    %v2670 = vunpack.c.l.b16 %v1787
    %v2671 = vunpack.c.h.b16 %v1787
    %v2672 = vunpack.c.l.b16 %v1788
    %v2673 = vunpack.c.h.b16 %v1788
    %v2674 = vunpack.c.l.b16 %v1789
    %v2675 = vunpack.c.h.b16 %v1789
    %v2676 = vunpack.c.l.b16 %v1790
    %v2677 = vunpack.c.h.b16 %v1790
    %v2678 = vunpack.c.l.b16 %v1791
    %v2679 = vunpack.c.h.b16 %v1791
    %v2680 = vunpack.c.l.b16 %v1792
    %v2681 = vunpack.c.h.b16 %v1792
    %v2682 = vunpack.c.l.b16 %v1793
    %v2683 = vunpack.c.h.b16 %v1793
    %v2684 = vunpack.c.l.b16 %v1794
    %v2685 = vunpack.c.h.b16 %v1794
    %v2686 = vunpack.c.l.b16 %v1795
    %v2687 = vunpack.c.h.b16 %v1795
    %v2688 = vunpack.c.l.b16 %v1796
    %v2689 = vunpack.c.h.b16 %v1796
    %v2690 = vunpack.c.l.b16 %v1797
    %v2691 = vunpack.c.h.b16 %v1797
    %v2692 = vunpack.c.l.b16 %v1798
    %v2693 = vunpack.c.h.b16 %v1798
    %v2694 = vunpack.c.l.b16 %v1799
    %v2695 = vunpack.c.h.b16 %v1799
    %v2696 = vpack.c.b16 %v2126, %v2120
    %v2697 = vpack.c.b16 %v2127, %v2121
    %v2698 = vpack.c.b16 %v2128, %v2122
    %v2699 = vpack.c.b16 %v2129, %v2123
    %v2700 = vpack.c.b16 %v2130, %v2124
    %v2701 = vpack.c.b16 %v2131, %v2125
    %v2702 = vpack.c.b16 %v2138, %v2132
    %v2703 = vpack.c.b16 %v2139, %v2133
    %v2704 = vpack.c.b16 %v2140, %v2134
    %v2705 = vpack.c.b16 %v2141, %v2135
    %v2706 = vpack.c.b16 %v2142, %v2136
    %v2707 = vpack.c.b16 %v2143, %v2137
    %v2708 = vpack.c.b16 %v2150, %v2144
    %v2709 = vpack.c.b16 %v2151, %v2145
    %v2710 = vpack.c.b16 %v2152, %v2146
    %v2711 = vpack.c.b16 %v2153, %v2147
    %v2712 = vpack.c.b16 %v2154, %v2148
    %v2713 = vpack.c.b16 %v2155, %v2149
    %v2714 = vpack.c.b16 %v2162, %v2156
    %v2715 = vpack.c.b16 %v2163, %v2157
    %v2716 = vpack.c.b16 %v2164, %v2158
    %v2717 = vpack.c.b16 %v2165, %v2159
    %v2718 = vpack.c.b16 %v2166, %v2160
    %v2719 = vpack.c.b16 %v2167, %v2161
    %v2720 = vpack.c.b16 %v2174, %v2168
    %v2721 = vpack.c.b16 %v2175, %v2169
    %v2722 = vpack.c.b16 %v2176, %v2170
    %v2723 = vpack.c.b16 %v2177, %v2171
    %v2724 = vpack.c.b16 %v2178, %v2172
    %v2725 = vpack.c.b16 %v2179, %v2173
    %v2726 = vpack.c.b16 %v2186, %v2180
    %v2727 = vpack.c.b16 %v2187, %v2181
    %v2728 = vpack.c.b16 %v2188, %v2182
    %v2729 = vpack.c.b16 %v2189, %v2183
    %v2730 = vpack.c.b16 %v2190, %v2184
    %v2731 = vpack.c.b16 %v2191, %v2185
    %v2732 = vpack.c.b16 %v2198, %v2192
    %v2733 = vpack.c.b16 %v2199, %v2193
    %v2734 = vpack.c.b16 %v2200, %v2194
    %v2735 = vpack.c.b16 %v2201, %v2195
    %v2736 = vpack.c.b16 %v2202, %v2196
    %v2737 = vpack.c.b16 %v2203, %v2197
    %v2738 = vpack.c.b16 %v2210, %v2204
    %v2739 = vpack.c.b16 %v2211, %v2205
    %v2740 = vpack.c.b16 %v2212, %v2206
    %v2741 = vpack.c.b16 %v2213, %v2207
    %v2742 = vpack.c.b16 %v2214, %v2208
    %v2743 = vpack.c.b16 %v2215, %v2209
    %v2744 = vpack.c.b16 %v2222, %v2216
    %v2745 = vpack.c.b16 %v2223, %v2217
    %v2746 = vpack.c.b16 %v2224, %v2218
    %v2747 = vpack.c.b16 %v2225, %v2219
    %v2748 = vpack.c.b16 %v2226, %v2220
    %v2749 = vpack.c.b16 %v2227, %v2221
    %v2750 = vpack.c.b16 %v2234, %v2228
    %v2751 = vpack.c.b16 %v2235, %v2229
    %v2752 = vpack.c.b16 %v2236, %v2230
    %v2753 = vpack.c.b16 %v2237, %v2231
    %v2754 = vpack.c.b16 %v2238, %v2232
    %v2755 = vpack.c.b16 %v2239, %v2233
    %v2756 = vpack.c.b16 %v2246, %v2240
    %v2757 = vpack.c.b16 %v2247, %v2241
    %v2758 = vpack.c.b16 %v2248, %v2242
    %v2759 = vpack.c.b16 %v2249, %v2243
    %v2760 = vpack.c.b16 %v2250, %v2244
    %v2761 = vpack.c.b16 %v2251, %v2245
    %v2762 = vpack.c.b16 %v2258, %v2252
    %v2763 = vpack.c.b16 %v2259, %v2253
    %v2764 = vpack.c.b16 %v2260, %v2254
    %v2765 = vpack.c.b16 %v2261, %v2255
    %v2766 = vpack.c.b16 %v2262, %v2256
    %v2767 = vpack.c.b16 %v2263, %v2257
    %v2768 = vpack.c.b16 %v2270, %v2264
    %v2769 = vpack.c.b16 %v2271, %v2265
    %v2770 = vpack.c.b16 %v2272, %v2266
    %v2771 = vpack.c.b16 %v2273, %v2267
    %v2772 = vpack.c.b16 %v2274, %v2268
    %v2773 = vpack.c.b16 %v2275, %v2269
    %v2774 = vpack.c.b16 %v2282, %v2276
    %v2775 = vpack.c.b16 %v2283, %v2277
    %v2776 = vpack.c.b16 %v2284, %v2278
    %v2777 = vpack.c.b16 %v2285, %v2279
    %v2778 = vpack.c.b16 %v2286, %v2280
    %v2779 = vpack.c.b16 %v2287, %v2281
    %v2780 = vpack.c.b16 %v2294, %v2288
    %v2781 = vpack.c.b16 %v2295, %v2289
    %v2782 = vpack.c.b16 %v2296, %v2290
    %v2783 = vpack.c.b16 %v2297, %v2291
    %v2784 = vpack.c.b16 %v2298, %v2292
    %v2785 = vpack.c.b16 %v2299, %v2293
    %v2786 = vpack.c.b16 %v2306, %v2300
    %v2787 = vpack.c.b16 %v2307, %v2301
    %v2788 = vpack.c.b16 %v2308, %v2302
    %v2789 = vpack.c.b16 %v2309, %v2303
    %v2790 = vpack.c.b16 %v2310, %v2304
    %v2791 = vpack.c.b16 %v2311, %v2305
    %v2792 = vpack.c.b16 %v2318, %v2312
    %v2793 = vpack.c.b16 %v2319, %v2313
    %v2794 = vpack.c.b16 %v2320, %v2314
    %v2795 = vpack.c.b16 %v2321, %v2315
    %v2796 = vpack.c.b16 %v2322, %v2316
    %v2797 = vpack.c.b16 %v2323, %v2317
    %v2798 = vpack.c.b16 %v2330, %v2324
    %v2799 = vpack.c.b16 %v2331, %v2325
    %v2800 = vpack.c.b16 %v2332, %v2326
    %v2801 = vpack.c.b16 %v2333, %v2327
    %v2802 = vpack.c.b16 %v2334, %v2328
    %v2803 = vpack.c.b16 %v2335, %v2329
    %v2804 = vpack.c.b16 %v2342, %v2336
    %v2805 = vpack.c.b16 %v2343, %v2337
    %v2806 = vpack.c.b16 %v2344, %v2338
    %v2807 = vpack.c.b16 %v2345, %v2339
    %v2808 = vpack.c.b16 %v2346, %v2340
    %v2809 = vpack.c.b16 %v2347, %v2341
    %v2810 = vpack.c.b16 %v2354, %v2348
    %v2811 = vpack.c.b16 %v2355, %v2349
    %v2812 = vpack.c.b16 %v2356, %v2350
    %v2813 = vpack.c.b16 %v2357, %v2351
    %v2814 = vpack.c.b16 %v2358, %v2352
    %v2815 = vpack.c.b16 %v2359, %v2353
    %v2816 = vpack.c.b16 %v2366, %v2360
    %v2817 = vpack.c.b16 %v2367, %v2361
    %v2818 = vpack.c.b16 %v2368, %v2362
    %v2819 = vpack.c.b16 %v2369, %v2363
    %v2820 = vpack.c.b16 %v2370, %v2364
    %v2821 = vpack.c.b16 %v2371, %v2365
    %v2822 = vpack.c.b16 %v2378, %v2372
    %v2823 = vpack.c.b16 %v2379, %v2373
    %v2824 = vpack.c.b16 %v2380, %v2374
    %v2825 = vpack.c.b16 %v2381, %v2375
    %v2826 = vpack.c.b16 %v2382, %v2376
    %v2827 = vpack.c.b16 %v2383, %v2377
    %v2828 = vpack.c.b16 %v2390, %v2384
    %v2829 = vpack.c.b16 %v2391, %v2385
    %v2830 = vpack.c.b16 %v2392, %v2386
    %v2831 = vpack.c.b16 %v2393, %v2387
    %v2832 = vpack.c.b16 %v2394, %v2388
    %v2833 = vpack.c.b16 %v2395, %v2389
    %v2834 = vpack.c.b16 %v2402, %v2396
    %v2835 = vpack.c.b16 %v2403, %v2397
    %v2836 = vpack.c.b16 %v2404, %v2398
    %v2837 = vpack.c.b16 %v2405, %v2399
    %v2838 = vpack.c.b16 %v2406, %v2400
    %v2839 = vpack.c.b16 %v2407, %v2401
    %v2840 = vpack.c.b16 %v2414, %v2408
    %v2841 = vpack.c.b16 %v2415, %v2409
    %v2842 = vpack.c.b16 %v2416, %v2410
    %v2843 = vpack.c.b16 %v2417, %v2411
    %v2844 = vpack.c.b16 %v2418, %v2412
    %v2845 = vpack.c.b16 %v2419, %v2413
    %v2846 = vpack.c.b16 %v2426, %v2420
    %v2847 = vpack.c.b16 %v2427, %v2421
    %v2848 = vpack.c.b16 %v2428, %v2422
    %v2849 = vpack.c.b16 %v2429, %v2423
    %v2850 = vpack.c.b16 %v2430, %v2424
    %v2851 = vpack.c.b16 %v2431, %v2425
    %v2852 = vpack.c.b16 %v2438, %v2432
    %v2853 = vpack.c.b16 %v2439, %v2433
    %v2854 = vpack.c.b16 %v2440, %v2434
    %v2855 = vpack.c.b16 %v2441, %v2435
    %v2856 = vpack.c.b16 %v2442, %v2436
    %v2857 = vpack.c.b16 %v2443, %v2437
    %v2858 = vpack.c.b16 %v2450, %v2444
    %v2859 = vpack.c.b16 %v2451, %v2445
    %v2860 = vpack.c.b16 %v2452, %v2446
    %v2861 = vpack.c.b16 %v2453, %v2447
    %v2862 = vpack.c.b16 %v2454, %v2448
    %v2863 = vpack.c.b16 %v2455, %v2449
    %v2864 = vpack.c.b16 %v2462, %v2456
    %v2865 = vpack.c.b16 %v2463, %v2457
    %v2866 = vpack.c.b16 %v2464, %v2458
    %v2867 = vpack.c.b16 %v2465, %v2459
    %v2868 = vpack.c.b16 %v2466, %v2460
    %v2869 = vpack.c.b16 %v2467, %v2461
    %v2870 = vpack.c.b16 %v2474, %v2468
    %v2871 = vpack.c.b16 %v2475, %v2469
    %v2872 = vpack.c.b16 %v2476, %v2470
    %v2873 = vpack.c.b16 %v2477, %v2471
    %v2874 = vpack.c.b16 %v2478, %v2472
    %v2875 = vpack.c.b16 %v2479, %v2473
    %v2876 = vpack.c.b16 %v2486, %v2480
    %v2877 = vpack.c.b16 %v2487, %v2481
    %v2878 = vpack.c.b16 %v2488, %v2482
    %v2879 = vpack.c.b16 %v2489, %v2483
    %v2880 = vpack.c.b16 %v2490, %v2484
    %v2881 = vpack.c.b16 %v2491, %v2485
    %v2882 = vpack.c.b16 %v2498, %v2492
    %v2883 = vpack.c.b16 %v2499, %v2493
    %v2884 = vpack.c.b16 %v2500, %v2494
    %v2885 = vpack.c.b16 %v2501, %v2495
    %v2886 = vpack.c.b16 %v2502, %v2496
    %v2887 = vpack.c.b16 %v2503, %v2497
    %v2888 = vpack.c.b16 %v2510, %v2504
    %v2889 = vpack.c.b16 %v2511, %v2505
    %v2890 = vpack.c.b16 %v2512, %v2506
    %v2891 = vpack.c.b16 %v2513, %v2507
    %v2892 = vpack.c.b16 %v2514, %v2508
    %v2893 = vpack.c.b16 %v2515, %v2509
    %v2894 = vpack.c.b16 %v2522, %v2516
    %v2895 = vpack.c.b16 %v2523, %v2517
    %v2896 = vpack.c.b16 %v2524, %v2518
    %v2897 = vpack.c.b16 %v2525, %v2519
    %v2898 = vpack.c.b16 %v2526, %v2520
    %v2899 = vpack.c.b16 %v2527, %v2521
    %v2900 = vpack.c.b16 %v2534, %v2528
    %v2901 = vpack.c.b16 %v2535, %v2529
    %v2902 = vpack.c.b16 %v2536, %v2530
    %v2903 = vpack.c.b16 %v2537, %v2531
    %v2904 = vpack.c.b16 %v2538, %v2532
    %v2905 = vpack.c.b16 %v2539, %v2533
    %v2906 = vpack.c.b16 %v2546, %v2540
    %v2907 = vpack.c.b16 %v2547, %v2541
    %v2908 = vpack.c.b16 %v2548, %v2542
    %v2909 = vpack.c.b16 %v2549, %v2543
    %v2910 = vpack.c.b16 %v2550, %v2544
    %v2911 = vpack.c.b16 %v2551, %v2545
    %v2912 = vpack.c.b16 %v2558, %v2552
    %v2913 = vpack.c.b16 %v2559, %v2553
    %v2914 = vpack.c.b16 %v2560, %v2554
    %v2915 = vpack.c.b16 %v2561, %v2555
    %v2916 = vpack.c.b16 %v2562, %v2556
    %v2917 = vpack.c.b16 %v2563, %v2557
    %v2918 = vpack.c.b16 %v2570, %v2564
    %v2919 = vpack.c.b16 %v2571, %v2565
    %v2920 = vpack.c.b16 %v2572, %v2566
    %v2921 = vpack.c.b16 %v2573, %v2567
    %v2922 = vpack.c.b16 %v2574, %v2568
    %v2923 = vpack.c.b16 %v2575, %v2569
    %v2924 = vpack.c.b16 %v2582, %v2576
    %v2925 = vpack.c.b16 %v2583, %v2577
    %v2926 = vpack.c.b16 %v2584, %v2578
    %v2927 = vpack.c.b16 %v2585, %v2579
    %v2928 = vpack.c.b16 %v2586, %v2580
    %v2929 = vpack.c.b16 %v2587, %v2581
    %v2930 = vpack.c.b16 %v2594, %v2588
    %v2931 = vpack.c.b16 %v2595, %v2589
    %v2932 = vpack.c.b16 %v2596, %v2590
    %v2933 = vpack.c.b16 %v2597, %v2591
    %v2934 = vpack.c.b16 %v2598, %v2592
    %v2935 = vpack.c.b16 %v2599, %v2593
    %v2936 = vpack.c.b16 %v2606, %v2600
    %v2937 = vpack.c.b16 %v2607, %v2601
    %v2938 = vpack.c.b16 %v2608, %v2602
    %v2939 = vpack.c.b16 %v2609, %v2603
    %v2940 = vpack.c.b16 %v2610, %v2604
    %v2941 = vpack.c.b16 %v2611, %v2605
    %v2942 = vpack.c.b16 %v2618, %v2612
    %v2943 = vpack.c.b16 %v2619, %v2613
    %v2944 = vpack.c.b16 %v2620, %v2614
    %v2945 = vpack.c.b16 %v2621, %v2615
    %v2946 = vpack.c.b16 %v2622, %v2616
    %v2947 = vpack.c.b16 %v2623, %v2617
    %v2948 = vpack.c.b16 %v2630, %v2624
    %v2949 = vpack.c.b16 %v2631, %v2625
    %v2950 = vpack.c.b16 %v2632, %v2626
    %v2951 = vpack.c.b16 %v2633, %v2627
    %v2952 = vpack.c.b16 %v2634, %v2628
    %v2953 = vpack.c.b16 %v2635, %v2629
    %v2954 = vpack.c.b16 %v2642, %v2636
    %v2955 = vpack.c.b16 %v2643, %v2637
    %v2956 = vpack.c.b16 %v2644, %v2638
    %v2957 = vpack.c.b16 %v2645, %v2639
    %v2958 = vpack.c.b16 %v2646, %v2640
    %v2959 = vpack.c.b16 %v2647, %v2641
    %v2960 = vpack.c.b16 %v2654, %v2648
    %v2961 = vpack.c.b16 %v2655, %v2649
    %v2962 = vpack.c.b16 %v2656, %v2650
    %v2963 = vpack.c.b16 %v2657, %v2651
    %v2964 = vpack.c.b16 %v2658, %v2652
    %v2965 = vpack.c.b16 %v2659, %v2653
    %v2966 = vpack.c.b16 %v2666, %v2660
    %v2967 = vpack.c.b16 %v2667, %v2661
    %v2968 = vpack.c.b16 %v2668, %v2662
    %v2969 = vpack.c.b16 %v2669, %v2663
    %v2970 = vpack.c.b16 %v2670, %v2664
    %v2971 = vpack.c.b16 %v2671, %v2665
    %v2972 = vpack.c.b16 %v2678, %v2672
    %v2973 = vpack.c.b16 %v2679, %v2673
    %v2974 = vpack.c.b16 %v2680, %v2674
    %v2975 = vpack.c.b16 %v2681, %v2675
    %v2976 = vpack.c.b16 %v2682, %v2676
    %v2977 = vpack.c.b16 %v2683, %v2677
    %v2978 = vpack.c.b16 %v2690, %v2684
    %v2979 = vpack.c.b16 %v2691, %v2685
    %v2980 = vpack.c.b16 %v2692, %v2686
    %v2981 = vpack.c.b16 %v2693, %v2687
    %v2982 = vpack.c.b16 %v2694, %v2688
    %v2983 = vpack.c.b16 %v2695, %v2689
    %3272 = vmatprep.subr.bf16.mxu0 %v2739
    %3273 = vmatpush1.bf16.msra.mxu0 %v2738
    %3274 = vmatprep.subr.bf16.mxu0 %v2733
    %3275 = vmatpush1.bf16.msra.mxu0 %v2732
    %3276 = vmatprep.subr.bf16.mxu0 %v2727
    %3277 = vmatpush1.bf16.msra.mxu0 %v2726
    %3278 = vmatprep.subr.bf16.mxu0 %v2721
    %3279 = vmatpush1.bf16.msra.mxu0 %v2720
    %3280 = vmatprep.subr.bf16.mxu0 %v2715
    %3281 = vmatpush1.bf16.msra.mxu0 %v2714
    %3282 = vmatprep.subr.bf16.mxu0 %v2709
    %3283 = vmatpush1.bf16.msra.mxu0 %v2708
    %3284 = vmatprep.subr.bf16.mxu0 %v2703
    %3285 = vmatpush1.bf16.msra.mxu0 %v2702
    %3286 = vmatprep.subr.bf16.mxu0 %v2697
    %3287 = vmatpush1.bf16.msra.mxu0 %v2696
    %3288 = vmatprep.subr.bf16.mxu0 %v2787
    %3289 = vmatpush2.bf16.msra.mxu0 %v2786
    %3290 = vmatprep.subr.bf16.mxu0 %v2781
    %3291 = vmatpush2.bf16.msra.mxu0 %v2780
    %3292 = vmatprep.subr.bf16.mxu0 %v2775
    %3293 = vmatpush2.bf16.msra.mxu0 %v2774
    %3294 = vmatprep.subr.bf16.mxu0 %v2769
    %3295 = vmatpush2.bf16.msra.mxu0 %v2768
    %3296 = vmatprep.subr.bf16.mxu0 %v2763
    %3297 = vmatpush2.bf16.msra.mxu0 %v2762
    %3298 = vmatprep.subr.bf16.mxu0 %v2757
    %3299 = vmatpush2.bf16.msra.mxu0 %v2756
    %3300 = vmatprep.subr.bf16.mxu0 %v2751
    %3301 = vmatpush2.bf16.msra.mxu0 %v2750
    %3302 = vmatprep.subr.bf16.mxu0 %v2745
    %3303 = vmatpush2.bf16.msra.mxu0 %v2744
    %3304 = vmatprep.mubr.bf16.mxu0 %v1507
    %3305 = vmatmul.mubr.bf16.gmra.mxu0 %v1506
    %v3306 = vpop.f32.mrf.mxu0
    %v3307 = vadd.f32 %v1805, %v3306
    %v3308 = vpop.f32.mrf.mxu0
    %v3309 = vadd.f32 %v1809, %v3308
    %v3310 = vpop.f32.mrf.mxu0
    %v3311 = vadd.f32 %v1805, %v3310
    %v3312 = vpop.f32.mrf.mxu0
    %v3313 = vadd.f32 %v1809, %v3312
    %3314 = vdwg.mxu0
    %3315 = vmatprep.subr.bf16.mxu0 %v2835
    %3316 = vmatpush1.bf16.msra.mxu0 %v2834
    %3317 = vmatprep.subr.bf16.mxu0 %v2829
    %3318 = vmatpush1.bf16.msra.mxu0 %v2828
    %3319 = vmatprep.subr.bf16.mxu0 %v2823
    %3320 = vmatpush1.bf16.msra.mxu0 %v2822
    %3321 = vmatprep.subr.bf16.mxu0 %v2817
    %3322 = vmatpush1.bf16.msra.mxu0 %v2816
    %3323 = vmatprep.subr.bf16.mxu0 %v2811
    %3324 = vmatpush1.bf16.msra.mxu0 %v2810
    %3325 = vmatprep.subr.bf16.mxu0 %v2805
    %3326 = vmatpush1.bf16.msra.mxu0 %v2804
    %3327 = vmatprep.subr.bf16.mxu0 %v2799
    %3328 = vmatpush1.bf16.msra.mxu0 %v2798
    %3329 = vmatprep.subr.bf16.mxu0 %v2793
    %3330 = vmatpush1.bf16.msra.mxu0 %v2792
    %3331 = vmatprep.subr.bf16.mxu0 %v2883
    %3332 = vmatpush2.bf16.msra.mxu0 %v2882
    %3333 = vmatprep.subr.bf16.mxu0 %v2877
    %3334 = vmatpush2.bf16.msra.mxu0 %v2876
    %3335 = vmatprep.subr.bf16.mxu0 %v2871
    %3336 = vmatpush2.bf16.msra.mxu0 %v2870
    %3337 = vmatprep.subr.bf16.mxu0 %v2865
    %3338 = vmatpush2.bf16.msra.mxu0 %v2864
    %3339 = vmatprep.subr.bf16.mxu0 %v2859
    %3340 = vmatpush2.bf16.msra.mxu0 %v2858
    %3341 = vmatprep.subr.bf16.mxu0 %v2853
    %3342 = vmatpush2.bf16.msra.mxu0 %v2852
    %3343 = vmatprep.subr.bf16.mxu0 %v2847
    %3344 = vmatpush2.bf16.msra.mxu0 %v2846
    %3345 = vmatprep.subr.bf16.mxu0 %v2841
    %3346 = vmatpush2.bf16.msra.mxu0 %v2840
    %3347 = vmatprep.mubr.bf16.mxu0 %v1509
    %3348 = vmatmul.mubr.bf16.gmra.mxu0 %v1508
    %v3349 = vpop.f32.mrf.mxu0
    %v3350 = vadd.f32 %v3307, %v3349
    %v3351 = vpop.f32.mrf.mxu0
    %v3352 = vadd.f32 %v3309, %v3351
    %v3353 = vpop.f32.mrf.mxu0
    %v3354 = vadd.f32 %v3311, %v3353
    %v3355 = vpop.f32.mrf.mxu0
    %v3356 = vadd.f32 %v3313, %v3355
    %3357 = vdwg.mxu0
    %3358 = vmatprep.subr.bf16.mxu0 %v2931
    %3359 = vmatpush1.bf16.msra.mxu0 %v2930
    %3360 = vmatprep.subr.bf16.mxu0 %v2925
    %3361 = vmatpush1.bf16.msra.mxu0 %v2924
    %3362 = vmatprep.subr.bf16.mxu0 %v2919
    %3363 = vmatpush1.bf16.msra.mxu0 %v2918
    %3364 = vmatprep.subr.bf16.mxu0 %v2913
    %3365 = vmatpush1.bf16.msra.mxu0 %v2912
    %3366 = vmatprep.subr.bf16.mxu0 %v2907
    %3367 = vmatpush1.bf16.msra.mxu0 %v2906
    %3368 = vmatprep.subr.bf16.mxu0 %v2901
    %3369 = vmatpush1.bf16.msra.mxu0 %v2900
    %3370 = vmatprep.subr.bf16.mxu0 %v2895
    %3371 = vmatpush1.bf16.msra.mxu0 %v2894
    %3372 = vmatprep.subr.bf16.mxu0 %v2889
    %3373 = vmatpush1.bf16.msra.mxu0 %v2888
    %3374 = vmatprep.subr.bf16.mxu0 %v2979
    %3375 = vmatpush2.bf16.msra.mxu0 %v2978
    %3376 = vmatprep.subr.bf16.mxu0 %v2973
    %3377 = vmatpush2.bf16.msra.mxu0 %v2972
    %3378 = vmatprep.subr.bf16.mxu0 %v2967
    %3379 = vmatpush2.bf16.msra.mxu0 %v2966
    %3380 = vmatprep.subr.bf16.mxu0 %v2961
    %3381 = vmatpush2.bf16.msra.mxu0 %v2960
    %3382 = vmatprep.subr.bf16.mxu0 %v2955
    %3383 = vmatpush2.bf16.msra.mxu0 %v2954
    %3384 = vmatprep.subr.bf16.mxu0 %v2949
    %3385 = vmatpush2.bf16.msra.mxu0 %v2948
    %3386 = vmatprep.subr.bf16.mxu0 %v2943
    %3387 = vmatpush2.bf16.msra.mxu0 %v2942
    %3388 = vmatprep.subr.bf16.mxu0 %v2937
    %3389 = vmatpush2.bf16.msra.mxu0 %v2936
    %3390 = vmatprep.mubr.bf16.mxu0 %v1511
    %3391 = vmatmul.mubr.bf16.gmra.mxu0 %v1510
    %v3392 = vpop.f32.mrf.mxu0
    %v3393 = vadd.f32 %v3350, %v3392
    %v3394 = vpop.f32.mrf.mxu0
    %v3395 = vadd.f32 %v3352, %v3394
    %v3396 = vpop.f32.mrf.mxu0
    %v3397 = vadd.f32 %v3354, %v3396
    %v3398 = vpop.f32.mrf.mxu0
    %v3399 = vadd.f32 %v3356, %v3398
    %3400 = vdwg.mxu0
    %3401 = vmatprep.subr.bf16.mxu0 %v2741
    %3402 = vmatpush1.bf16.msra.mxu0 %v2740
    %3403 = vmatprep.subr.bf16.mxu0 %v2735
    %3404 = vmatpush1.bf16.msra.mxu0 %v2734
    %3405 = vmatprep.subr.bf16.mxu0 %v2729
    %3406 = vmatpush1.bf16.msra.mxu0 %v2728
    %3407 = vmatprep.subr.bf16.mxu0 %v2723
    %3408 = vmatpush1.bf16.msra.mxu0 %v2722
    %3409 = vmatprep.subr.bf16.mxu0 %v2717
    %3410 = vmatpush1.bf16.msra.mxu0 %v2716
    %3411 = vmatprep.subr.bf16.mxu0 %v2711
    %3412 = vmatpush1.bf16.msra.mxu0 %v2710
    %3413 = vmatprep.subr.bf16.mxu0 %v2705
    %3414 = vmatpush1.bf16.msra.mxu0 %v2704
    %3415 = vmatprep.subr.bf16.mxu0 %v2699
    %3416 = vmatpush1.bf16.msra.mxu0 %v2698
    %3417 = vmatprep.subr.bf16.mxu0 %v2789
    %3418 = vmatpush2.bf16.msra.mxu0 %v2788
    %3419 = vmatprep.subr.bf16.mxu0 %v2783
    %3420 = vmatpush2.bf16.msra.mxu0 %v2782
    %3421 = vmatprep.subr.bf16.mxu0 %v2777
    %3422 = vmatpush2.bf16.msra.mxu0 %v2776
    %3423 = vmatprep.subr.bf16.mxu0 %v2771
    %3424 = vmatpush2.bf16.msra.mxu0 %v2770
    %3425 = vmatprep.subr.bf16.mxu0 %v2765
    %3426 = vmatpush2.bf16.msra.mxu0 %v2764
    %3427 = vmatprep.subr.bf16.mxu0 %v2759
    %3428 = vmatpush2.bf16.msra.mxu0 %v2758
    %3429 = vmatprep.subr.bf16.mxu0 %v2753
    %3430 = vmatpush2.bf16.msra.mxu0 %v2752
    %3431 = vmatprep.subr.bf16.mxu0 %v2747
    %3432 = vmatpush2.bf16.msra.mxu0 %v2746
    %3433 = vmatprep.mubr.bf16.mxu0 %v1507
    %3434 = vmatmul.mubr.bf16.gmra.mxu0 %v1506
    %v3435 = vpop.f32.mrf.mxu0
    %v3436 = vadd.f32 %v1813, %v3435
    %v3437 = vpop.f32.mrf.mxu0
    %v3438 = vadd.f32 %v1817, %v3437
    %v3439 = vpop.f32.mrf.mxu0
    %v3440 = vadd.f32 %v1813, %v3439
    %v3441 = vpop.f32.mrf.mxu0
    %v3442 = vadd.f32 %v1817, %v3441
    %3443 = vdwg.mxu0
    %3444 = vmatprep.subr.bf16.mxu0 %v2837
    %3445 = vmatpush1.bf16.msra.mxu0 %v2836
    %3446 = vmatprep.subr.bf16.mxu0 %v2831
    %3447 = vmatpush1.bf16.msra.mxu0 %v2830
    %3448 = vmatprep.subr.bf16.mxu0 %v2825
    %3449 = vmatpush1.bf16.msra.mxu0 %v2824
    %3450 = vmatprep.subr.bf16.mxu0 %v2819
    %3451 = vmatpush1.bf16.msra.mxu0 %v2818
    %3452 = vmatprep.subr.bf16.mxu0 %v2813
    %3453 = vmatpush1.bf16.msra.mxu0 %v2812
    %3454 = vmatprep.subr.bf16.mxu0 %v2807
    %3455 = vmatpush1.bf16.msra.mxu0 %v2806
    %3456 = vmatprep.subr.bf16.mxu0 %v2801
    %3457 = vmatpush1.bf16.msra.mxu0 %v2800
    %3458 = vmatprep.subr.bf16.mxu0 %v2795
    %3459 = vmatpush1.bf16.msra.mxu0 %v2794
    %3460 = vmatprep.subr.bf16.mxu0 %v2885
    %3461 = vmatpush2.bf16.msra.mxu0 %v2884
    %3462 = vmatprep.subr.bf16.mxu0 %v2879
    %3463 = vmatpush2.bf16.msra.mxu0 %v2878
    %3464 = vmatprep.subr.bf16.mxu0 %v2873
    %3465 = vmatpush2.bf16.msra.mxu0 %v2872
    %3466 = vmatprep.subr.bf16.mxu0 %v2867
    %3467 = vmatpush2.bf16.msra.mxu0 %v2866
    %3468 = vmatprep.subr.bf16.mxu0 %v2861
    %3469 = vmatpush2.bf16.msra.mxu0 %v2860
    %3470 = vmatprep.subr.bf16.mxu0 %v2855
    %3471 = vmatpush2.bf16.msra.mxu0 %v2854
    %3472 = vmatprep.subr.bf16.mxu0 %v2849
    %3473 = vmatpush2.bf16.msra.mxu0 %v2848
    %3474 = vmatprep.subr.bf16.mxu0 %v2843
    %3475 = vmatpush2.bf16.msra.mxu0 %v2842
    %3476 = vmatprep.mubr.bf16.mxu0 %v1509
    %3477 = vmatmul.mubr.bf16.gmra.mxu0 %v1508
    %v3478 = vpop.f32.mrf.mxu0
    %v3479 = vadd.f32 %v3436, %v3478
    %v3480 = vpop.f32.mrf.mxu0
    %v3481 = vadd.f32 %v3438, %v3480
    %v3482 = vpop.f32.mrf.mxu0
    %v3483 = vadd.f32 %v3440, %v3482
    %v3484 = vpop.f32.mrf.mxu0
    %v3485 = vadd.f32 %v3442, %v3484
    %3486 = vdwg.mxu0
    %3487 = vmatprep.subr.bf16.mxu0 %v2933
    %3488 = vmatpush1.bf16.msra.mxu0 %v2932
    %3489 = vmatprep.subr.bf16.mxu0 %v2927
    %3490 = vmatpush1.bf16.msra.mxu0 %v2926
    %3491 = vmatprep.subr.bf16.mxu0 %v2921
    %3492 = vmatpush1.bf16.msra.mxu0 %v2920
    %3493 = vmatprep.subr.bf16.mxu0 %v2915
    %3494 = vmatpush1.bf16.msra.mxu0 %v2914
    %3495 = vmatprep.subr.bf16.mxu0 %v2909
    %3496 = vmatpush1.bf16.msra.mxu0 %v2908
    %3497 = vmatprep.subr.bf16.mxu0 %v2903
    %3498 = vmatpush1.bf16.msra.mxu0 %v2902
    %3499 = vmatprep.subr.bf16.mxu0 %v2897
    %3500 = vmatpush1.bf16.msra.mxu0 %v2896
    %3501 = vmatprep.subr.bf16.mxu0 %v2891
    %3502 = vmatpush1.bf16.msra.mxu0 %v2890
    %3503 = vmatprep.subr.bf16.mxu0 %v2981
    %3504 = vmatpush2.bf16.msra.mxu0 %v2980
    %3505 = vmatprep.subr.bf16.mxu0 %v2975
    %3506 = vmatpush2.bf16.msra.mxu0 %v2974
    %3507 = vmatprep.subr.bf16.mxu0 %v2969
    %3508 = vmatpush2.bf16.msra.mxu0 %v2968
    %3509 = vmatprep.subr.bf16.mxu0 %v2963
    %3510 = vmatpush2.bf16.msra.mxu0 %v2962
    %3511 = vmatprep.subr.bf16.mxu0 %v2957
    %3512 = vmatpush2.bf16.msra.mxu0 %v2956
    %3513 = vmatprep.subr.bf16.mxu0 %v2951
    %3514 = vmatpush2.bf16.msra.mxu0 %v2950
    %3515 = vmatprep.subr.bf16.mxu0 %v2945
    %3516 = vmatpush2.bf16.msra.mxu0 %v2944
    %3517 = vmatprep.subr.bf16.mxu0 %v2939
    %3518 = vmatpush2.bf16.msra.mxu0 %v2938
    %3519 = vmatprep.mubr.bf16.mxu0 %v1511
    %3520 = vmatmul.mubr.bf16.gmra.mxu0 %v1510
    %v3521 = vpop.f32.mrf.mxu0
    %v3522 = vadd.f32 %v3479, %v3521
    %v3523 = vpop.f32.mrf.mxu0
    %v3524 = vadd.f32 %v3481, %v3523
    %v3525 = vpop.f32.mrf.mxu0
    %v3526 = vadd.f32 %v3483, %v3525
    %v3527 = vpop.f32.mrf.mxu0
    %v3528 = vadd.f32 %v3485, %v3527
    %3529 = vdwg.mxu0
    %3530 = vmatprep.subr.bf16.mxu0 %v2743
    %3531 = vmatpush1.bf16.msra.mxu0 %v2742
    %3532 = vmatprep.subr.bf16.mxu0 %v2737
    %3533 = vmatpush1.bf16.msra.mxu0 %v2736
    %3534 = vmatprep.subr.bf16.mxu0 %v2731
    %3535 = vmatpush1.bf16.msra.mxu0 %v2730
    %3536 = vmatprep.subr.bf16.mxu0 %v2725
    %3537 = vmatpush1.bf16.msra.mxu0 %v2724
    %3538 = vmatprep.subr.bf16.mxu0 %v2719
    %3539 = vmatpush1.bf16.msra.mxu0 %v2718
    %3540 = vmatprep.subr.bf16.mxu0 %v2713
    %3541 = vmatpush1.bf16.msra.mxu0 %v2712
    %3542 = vmatprep.subr.bf16.mxu0 %v2707
    %3543 = vmatpush1.bf16.msra.mxu0 %v2706
    %3544 = vmatprep.subr.bf16.mxu0 %v2701
    %3545 = vmatpush1.bf16.msra.mxu0 %v2700
    %3546 = vmatprep.subr.bf16.mxu0 %v2791
    %3547 = vmatpush2.bf16.msra.mxu0 %v2790
    %3548 = vmatprep.subr.bf16.mxu0 %v2785
    %3549 = vmatpush2.bf16.msra.mxu0 %v2784
    %3550 = vmatprep.subr.bf16.mxu0 %v2779
    %3551 = vmatpush2.bf16.msra.mxu0 %v2778
    %3552 = vmatprep.subr.bf16.mxu0 %v2773
    %3553 = vmatpush2.bf16.msra.mxu0 %v2772
    %3554 = vmatprep.subr.bf16.mxu0 %v2767
    %3555 = vmatpush2.bf16.msra.mxu0 %v2766
    %3556 = vmatprep.subr.bf16.mxu0 %v2761
    %3557 = vmatpush2.bf16.msra.mxu0 %v2760
    %3558 = vmatprep.subr.bf16.mxu0 %v2755
    %3559 = vmatpush2.bf16.msra.mxu0 %v2754
    %3560 = vmatprep.subr.bf16.mxu0 %v2749
    %3561 = vmatpush2.bf16.msra.mxu0 %v2748
    %3562 = vmatprep.mubr.bf16.mxu0 %v1507
    %3563 = vmatmul.mubr.bf16.gmra.mxu0 %v1506
    %v3564 = vpop.f32.mrf.mxu0
    %v3565 = vadd.f32 %v1821, %v3564
    %v3566 = vpop.f32.mrf.mxu0
    %v3567 = vadd.f32 %v1825, %v3566
    %v3568 = vpop.f32.mrf.mxu0
    %v3569 = vadd.f32 %v1821, %v3568
    %v3570 = vpop.f32.mrf.mxu0
    %v3571 = vadd.f32 %v1825, %v3570
    %3572 = vdwg.mxu0
    %3573 = vmatprep.subr.bf16.mxu0 %v2839
    %3574 = vmatpush1.bf16.msra.mxu0 %v2838
    %3575 = vmatprep.subr.bf16.mxu0 %v2833
    %3576 = vmatpush1.bf16.msra.mxu0 %v2832
    %3577 = vmatprep.subr.bf16.mxu0 %v2827
    %3578 = vmatpush1.bf16.msra.mxu0 %v2826
    %3579 = vmatprep.subr.bf16.mxu0 %v2821
    %3580 = vmatpush1.bf16.msra.mxu0 %v2820
    %3581 = vmatprep.subr.bf16.mxu0 %v2815
    %3582 = vmatpush1.bf16.msra.mxu0 %v2814
    %3583 = vmatprep.subr.bf16.mxu0 %v2809
    %3584 = vmatpush1.bf16.msra.mxu0 %v2808
    %3585 = vmatprep.subr.bf16.mxu0 %v2803
    %3586 = vmatpush1.bf16.msra.mxu0 %v2802
    %3587 = vmatprep.subr.bf16.mxu0 %v2797
    %3588 = vmatpush1.bf16.msra.mxu0 %v2796
    %3589 = vmatprep.subr.bf16.mxu0 %v2887
    %3590 = vmatpush2.bf16.msra.mxu0 %v2886
    %3591 = vmatprep.subr.bf16.mxu0 %v2881
    %3592 = vmatpush2.bf16.msra.mxu0 %v2880
    %3593 = vmatprep.subr.bf16.mxu0 %v2875
    %3594 = vmatpush2.bf16.msra.mxu0 %v2874
    %3595 = vmatprep.subr.bf16.mxu0 %v2869
    %3596 = vmatpush2.bf16.msra.mxu0 %v2868
    %3597 = vmatprep.subr.bf16.mxu0 %v2863
    %3598 = vmatpush2.bf16.msra.mxu0 %v2862
    %3599 = vmatprep.subr.bf16.mxu0 %v2857
    %3600 = vmatpush2.bf16.msra.mxu0 %v2856
    %3601 = vmatprep.subr.bf16.mxu0 %v2851
    %3602 = vmatpush2.bf16.msra.mxu0 %v2850
    %3603 = vmatprep.subr.bf16.mxu0 %v2845
    %3604 = vmatpush2.bf16.msra.mxu0 %v2844
    %3605 = vmatprep.mubr.bf16.mxu0 %v1509
    %3606 = vmatmul.mubr.bf16.gmra.mxu0 %v1508
    %v3607 = vpop.f32.mrf.mxu0
    %v3608 = vadd.f32 %v3565, %v3607
    %v3609 = vpop.f32.mrf.mxu0
    %v3610 = vadd.f32 %v3567, %v3609
    %v3611 = vpop.f32.mrf.mxu0
    %v3612 = vadd.f32 %v3569, %v3611
    %v3613 = vpop.f32.mrf.mxu0
    %v3614 = vadd.f32 %v3571, %v3613
    %3615 = vdwg.mxu0
    %3616 = vmatprep.subr.bf16.mxu0 %v2935
    %3617 = vmatpush1.bf16.msra.mxu0 %v2934
    %3618 = vmatprep.subr.bf16.mxu0 %v2929
    %3619 = vmatpush1.bf16.msra.mxu0 %v2928
    %3620 = vmatprep.subr.bf16.mxu0 %v2923
    %3621 = vmatpush1.bf16.msra.mxu0 %v2922
    %3622 = vmatprep.subr.bf16.mxu0 %v2917
    %3623 = vmatpush1.bf16.msra.mxu0 %v2916
    %3624 = vmatprep.subr.bf16.mxu0 %v2911
    %3625 = vmatpush1.bf16.msra.mxu0 %v2910
    %3626 = vmatprep.subr.bf16.mxu0 %v2905
    %3627 = vmatpush1.bf16.msra.mxu0 %v2904
    %3628 = vmatprep.subr.bf16.mxu0 %v2899
    %3629 = vmatpush1.bf16.msra.mxu0 %v2898
    %3630 = vmatprep.subr.bf16.mxu0 %v2893
    %3631 = vmatpush1.bf16.msra.mxu0 %v2892
    %3632 = vmatprep.subr.bf16.mxu0 %v2983
    %3633 = vmatpush2.bf16.msra.mxu0 %v2982
    %3634 = vmatprep.subr.bf16.mxu0 %v2977
    %3635 = vmatpush2.bf16.msra.mxu0 %v2976
    %3636 = vmatprep.subr.bf16.mxu0 %v2971
    %3637 = vmatpush2.bf16.msra.mxu0 %v2970
    %3638 = vmatprep.subr.bf16.mxu0 %v2965
    %3639 = vmatpush2.bf16.msra.mxu0 %v2964
    %3640 = vmatprep.subr.bf16.mxu0 %v2959
    %3641 = vmatpush2.bf16.msra.mxu0 %v2958
    %3642 = vmatprep.subr.bf16.mxu0 %v2953
    %3643 = vmatpush2.bf16.msra.mxu0 %v2952
    %3644 = vmatprep.subr.bf16.mxu0 %v2947
    %3645 = vmatpush2.bf16.msra.mxu0 %v2946
    %3646 = vmatprep.subr.bf16.mxu0 %v2941
    %3647 = vmatpush2.bf16.msra.mxu0 %v2940
    %3648 = vmatprep.mubr.bf16.mxu0 %v1511
    %3649 = vmatmul.mubr.bf16.gmra.mxu0 %v1510
    %v3650 = vpop.f32.mrf.mxu0
    %v3651 = vadd.f32 %v3608, %v3650
    %v3652 = vpop.f32.mrf.mxu0
    %v3653 = vadd.f32 %v3610, %v3652
    %v3654 = vpop.f32.mrf.mxu0
    %v3655 = vadd.f32 %v3612, %v3654
    %v3656 = vpop.f32.mrf.mxu0
    %v3657 = vadd.f32 %v3614, %v3656
    %3658 = vdwg.mxu0
    %v3659 = vmax.f32 %v3393, 0.0
    %v3660 = vmax.f32 %v3395, 0.0
    %v3661 = vmax.f32 %v3522, 0.0
    %v3662 = vmax.f32 %v3524, 0.0
    %v3663 = vmax.f32 %v3651, 0.0
    %v3664 = vmax.f32 %v3653, 0.0
    %v3665 = vmax.f32 %v3397, 0.0
    %v3666 = vmax.f32 %v3399, 0.0
    %v3667 = vmax.f32 %v3526, 0.0
    %v3668 = vmax.f32 %v3528, 0.0
    %v3669 = vmax.f32 %v3655, 0.0
    %v3670 = vmax.f32 %v3657, 0.0
    %v3671 = vpack.c.bf16 %v3665, %v3659
    %v3672 = vpack.c.bf16 %v3666, %v3660
    %v3673 = vpack.c.bf16 %v3667, %v3661
    %v3674 = vpack.c.bf16 %v3668, %v3662
    %v3675 = vpack.c.bf16 %v3669, %v3663
    %v3676 = vpack.c.bf16 %v3670, %v3664
    %v3677 = vld [vmem:[%s5] sm:$0xf]
    %v3678 = vld [vmem:[%s5 + $0x4] sm:$0xf]
    %v3679 = vld [vmem:[%s5 + $0x8] sm:$0xf]
    %v3680 = vld [vmem:[%s5 + $0xc] sm:$0xf]
    %v3681 = vld [vmem:[%s5 + $0x10] sm:$0xf]
    %v3682 = vld [vmem:[%s5 + $0x14] sm:$0xf]
    %v3683 = vld [vmem:[%s5 + $0x18] sm:$0xf]
    %v3684 = vld [vmem:[%s5 + $0x1c] sm:$0xf]
    %v3685 = vld [vmem:[%s5 + $0x20] sm:$0xf]
    %v3686 = vld [vmem:[%s5 + $0x24] sm:$0xf]
    %v3687 = vld [vmem:[%s5 + $0x28] sm:$0xf]
    %v3688 = vld [vmem:[%s5 + $0x2c] sm:$0xf]
    %v3689 = vld [vmem:[%s5 + $0x30] sm:$0xf]
    %v3690 = vld [vmem:[%s5 + $0x34] sm:$0xf]
    %v3691 = vld [vmem:[%s5 + $0x38] sm:$0xf]
    %v3692 = vld [vmem:[%s5 + $0x3c] sm:$0xf]
    %v3693 = vld [vmem:[%s5 + $0x40] sm:$0xf]
    %v3694 = vld [vmem:[%s5 + $0x44] sm:$0xf]
    %v3695 = vld [vmem:[%s5 + $0x48] sm:$0xf]
    %v3696 = vld [vmem:[%s5 + $0x4c] sm:$0xf]
    %v3697 = vld [vmem:[%s5 + $0x50] sm:$0xf]
    %v3698 = vld [vmem:[%s5 + $0x54] sm:$0xf]
    %v3699 = vld [vmem:[%s5 + $0x58] sm:$0xf]
    %v3700 = vld [vmem:[%s5 + $0x5c] sm:$0xf]
    %v3701 = vld [vmem:[%s5 + $0x60] sm:$0xf]
    %v3702 = vld [vmem:[%s5 + $0x64] sm:$0xf]
    %v3703 = vld [vmem:[%s5 + $0x68] sm:$0xf]
    %v3704 = vld [vmem:[%s5 + $0x6c] sm:$0xf]
    %v3705 = vld [vmem:[%s5 + $0x70] sm:$0xf]
    %v3706 = vld [vmem:[%s5 + $0x74] sm:$0xf]
    %v3707 = vld [vmem:[%s5 + $0x78] sm:$0xf]
    %v3708 = vld [vmem:[%s5 + $0x7c] sm:$0xf]
    %v3709 = vld [vmem:[%s5 + $0x80] sm:$0xf]
    %v3710 = vld [vmem:[%s5 + $0x84] sm:$0xf]
    %v3711 = vld [vmem:[%s5 + $0x88] sm:$0xf]
    %v3712 = vld [vmem:[%s5 + $0x8c] sm:$0xf]
    %v3713 = vld [vmem:[%s5 + $0x90] sm:$0xf]
    %v3714 = vld [vmem:[%s5 + $0x94] sm:$0xf]
    %v3715 = vld [vmem:[%s5 + $0x98] sm:$0xf]
    %v3716 = vld [vmem:[%s5 + $0x9c] sm:$0xf]
    %v3717 = vld [vmem:[%s5 + $0xa0] sm:$0xf]
    %v3718 = vld [vmem:[%s5 + $0xa4] sm:$0xf]
    %v3719 = vld [vmem:[%s5 + $0xa8] sm:$0xf]
    %v3720 = vld [vmem:[%s5 + $0xac] sm:$0xf]
    %v3721 = vld [vmem:[%s5 + $0xb0] sm:$0xf]
    %v3722 = vld [vmem:[%s5 + $0xb4] sm:$0xf]
    %v3723 = vld [vmem:[%s5 + $0xb8] sm:$0xf]
    %v3724 = vld [vmem:[%s5 + $0xbc] sm:$0xf]
    %v3725 = vld [vmem:[%s5 + $0xc0] sm:$0xf]
    %v3726 = vld [vmem:[%s5 + $0xc4] sm:$0xf]
    %v3727 = vld [vmem:[%s5 + $0xc8] sm:$0xf]
    %v3728 = vld [vmem:[%s5 + $0xcc] sm:$0xf]
    %v3729 = vld [vmem:[%s5 + $0xd0] sm:$0xf]
    %v3730 = vld [vmem:[%s5 + $0xd4] sm:$0xf]
    %v3731 = vld [vmem:[%s5 + $0xd8] sm:$0xf]
    %v3732 = vld [vmem:[%s5 + $0xdc] sm:$0xf]
    %v3733 = vld [vmem:[%s5 + $0xe0] sm:$0xf]
    %v3734 = vld [vmem:[%s5 + $0xe4] sm:$0xf]
    %v3735 = vld [vmem:[%s5 + $0xe8] sm:$0xf]
    %v3736 = vld [vmem:[%s5 + $0xec] sm:$0xf]
    %v3737 = vld [vmem:[%s5 + $0xf0] sm:$0xf]
    %v3738 = vld [vmem:[%s5 + $0xf4] sm:$0xf]
    %v3739 = vld [vmem:[%s5 + $0xf8] sm:$0xf]
    %v3740 = vld [vmem:[%s5 + $0xfc] sm:$0xf]
    %v3741 = vld [vmem:[%s5 + $0x100] sm:$0xf]
    %v3742 = vld [vmem:[%s5 + $0x104] sm:$0xf]
    %v3743 = vld [vmem:[%s5 + $0x108] sm:$0xf]
    %v3744 = vld [vmem:[%s5 + $0x10c] sm:$0xf]
    %v3745 = vld [vmem:[%s5 + $0x110] sm:$0xf]
    %v3746 = vld [vmem:[%s5 + $0x114] sm:$0xf]
    %v3747 = vld [vmem:[%s5 + $0x118] sm:$0xf]
    %v3748 = vld [vmem:[%s5 + $0x11c] sm:$0xf]
    %v3749 = vld [vmem:[%s5 + $0x120] sm:$0xf]
    %v3750 = vld [vmem:[%s5 + $0x124] sm:$0xf]
    %v3751 = vld [vmem:[%s5 + $0x128] sm:$0xf]
    %v3752 = vld [vmem:[%s5 + $0x12c] sm:$0xf]
    %v3753 = vld [vmem:[%s5 + $0x130] sm:$0xf]
    %v3754 = vld [vmem:[%s5 + $0x134] sm:$0xf]
    %v3755 = vld [vmem:[%s5 + $0x138] sm:$0xf]
    %v3756 = vld [vmem:[%s5 + $0x13c] sm:$0xf]
    %v3757 = vld [vmem:[%s5 + $0x140] sm:$0xf]
    %v3758 = vld [vmem:[%s5 + $0x144] sm:$0xf]
    %v3759 = vld [vmem:[%s5 + $0x148] sm:$0xf]
    %v3760 = vld [vmem:[%s5 + $0x14c] sm:$0xf]
    %v3761 = vld [vmem:[%s5 + $0x150] sm:$0xf]
    %v3762 = vld [vmem:[%s5 + $0x154] sm:$0xf]
    %v3763 = vld [vmem:[%s5 + $0x158] sm:$0xf]
    %v3764 = vld [vmem:[%s5 + $0x15c] sm:$0xf]
    %v3765 = vld [vmem:[%s5 + $0x160] sm:$0xf]
    %v3766 = vld [vmem:[%s5 + $0x164] sm:$0xf]
    %v3767 = vld [vmem:[%s5 + $0x168] sm:$0xf]
    %v3768 = vld [vmem:[%s5 + $0x16c] sm:$0xf]
    %v3769 = vld [vmem:[%s5 + $0x170] sm:$0xf]
    %v3770 = vld [vmem:[%s5 + $0x174] sm:$0xf]
    %v3771 = vld [vmem:[%s5 + $0x178] sm:$0xf]
    %v3772 = vld [vmem:[%s5 + $0x17c] sm:$0xf]
    %v3773 = vld [vmem:[%s6] sm:$0x1]
    %v3775 = vlaneseq
    %v3776 = vshrl.u32 %v3775, 7
    %v3777 = vsub.s32 0, %v3776
    %v3778 = vrot.slane %v3773, %v3777
    %v3876 = vunpack.c.l.b16 %v3677
    %v3877 = vunpack.c.l.b16 %v3678
    %v3878 = vunpack.c.l.b16 %v3679
    %v3879 = vunpack.c.l.b16 %v3680
    %v3880 = vunpack.c.l.b16 %v3681
    %v3881 = vunpack.c.l.b16 %v3682
    %v3882 = vunpack.c.l.b16 %v3683
    %v3883 = vunpack.c.l.b16 %v3684
    %v3884 = vunpack.c.l.b16 %v3685
    %v3885 = vunpack.c.l.b16 %v3686
    %v3886 = vunpack.c.l.b16 %v3687
    %v3887 = vunpack.c.l.b16 %v3688
    %v3888 = vunpack.c.l.b16 %v3689
    %v3889 = vunpack.c.l.b16 %v3690
    %v3890 = vunpack.c.l.b16 %v3691
    %v3891 = vunpack.c.l.b16 %v3692
    %v3892 = vunpack.c.l.b16 %v3693
    %v3893 = vunpack.c.l.b16 %v3694
    %v3894 = vunpack.c.l.b16 %v3695
    %v3895 = vunpack.c.l.b16 %v3696
    %v3896 = vunpack.c.l.b16 %v3697
    %v3897 = vunpack.c.l.b16 %v3698
    %v3898 = vunpack.c.l.b16 %v3699
    %v3899 = vunpack.c.l.b16 %v3700
    %v3900 = vunpack.c.l.b16 %v3701
    %v3901 = vunpack.c.l.b16 %v3702
    %v3902 = vunpack.c.l.b16 %v3703
    %v3903 = vunpack.c.l.b16 %v3704
    %v3904 = vunpack.c.l.b16 %v3705
    %v3905 = vunpack.c.l.b16 %v3706
    %v3906 = vunpack.c.l.b16 %v3707
    %v3907 = vunpack.c.l.b16 %v3708
    %v3908 = vunpack.c.l.b16 %v3709
    %v3909 = vunpack.c.l.b16 %v3710
    %v3910 = vunpack.c.l.b16 %v3711
    %v3911 = vunpack.c.l.b16 %v3712
    %v3912 = vunpack.c.l.b16 %v3713
    %v3913 = vunpack.c.l.b16 %v3714
    %v3914 = vunpack.c.l.b16 %v3715
    %v3915 = vunpack.c.l.b16 %v3716
    %v3916 = vunpack.c.l.b16 %v3717
    %v3917 = vunpack.c.l.b16 %v3718
    %v3918 = vunpack.c.l.b16 %v3719
    %v3919 = vunpack.c.l.b16 %v3720
    %v3920 = vunpack.c.l.b16 %v3721
    %v3921 = vunpack.c.l.b16 %v3722
    %v3922 = vunpack.c.l.b16 %v3723
    %v3923 = vunpack.c.l.b16 %v3724
    %v3924 = vunpack.c.l.b16 %v3725
    %v3925 = vunpack.c.l.b16 %v3726
    %v3926 = vunpack.c.l.b16 %v3727
    %v3927 = vunpack.c.l.b16 %v3728
    %v3928 = vunpack.c.l.b16 %v3729
    %v3929 = vunpack.c.l.b16 %v3730
    %v3930 = vunpack.c.l.b16 %v3731
    %v3931 = vunpack.c.l.b16 %v3732
    %v3932 = vunpack.c.l.b16 %v3733
    %v3933 = vunpack.c.l.b16 %v3734
    %v3934 = vunpack.c.l.b16 %v3735
    %v3935 = vunpack.c.l.b16 %v3736
    %v3936 = vunpack.c.l.b16 %v3737
    %v3937 = vunpack.c.l.b16 %v3738
    %v3938 = vunpack.c.l.b16 %v3739
    %v3939 = vunpack.c.l.b16 %v3740
    %v3940 = vunpack.c.l.b16 %v3741
    %v3941 = vunpack.c.l.b16 %v3742
    %v3942 = vunpack.c.l.b16 %v3743
    %v3943 = vunpack.c.l.b16 %v3744
    %v3944 = vunpack.c.l.b16 %v3745
    %v3945 = vunpack.c.l.b16 %v3746
    %v3946 = vunpack.c.l.b16 %v3747
    %v3947 = vunpack.c.l.b16 %v3748
    %v3948 = vunpack.c.l.b16 %v3749
    %v3949 = vunpack.c.l.b16 %v3750
    %v3950 = vunpack.c.l.b16 %v3751
    %v3951 = vunpack.c.l.b16 %v3752
    %v3952 = vunpack.c.l.b16 %v3753
    %v3953 = vunpack.c.l.b16 %v3754
    %v3954 = vunpack.c.l.b16 %v3755
    %v3955 = vunpack.c.l.b16 %v3756
    %v3956 = vunpack.c.l.b16 %v3757
    %v3957 = vunpack.c.l.b16 %v3758
    %v3958 = vunpack.c.l.b16 %v3759
    %v3959 = vunpack.c.l.b16 %v3760
    %v3960 = vunpack.c.l.b16 %v3761
    %v3961 = vunpack.c.l.b16 %v3762
    %v3962 = vunpack.c.l.b16 %v3763
    %v3963 = vunpack.c.l.b16 %v3764
    %v3964 = vunpack.c.l.b16 %v3765
    %v3965 = vunpack.c.l.b16 %v3766
    %v3966 = vunpack.c.l.b16 %v3767
    %v3967 = vunpack.c.l.b16 %v3768
    %v3968 = vunpack.c.l.b16 %v3769
    %v3969 = vunpack.c.l.b16 %v3770
    %v3970 = vunpack.c.l.b16 %v3771
    %v3971 = vunpack.c.l.b16 %v3772
    %v3972 = vpack.c.b16 %v3877, %v3876
    %v3973 = vpack.c.b16 %v3879, %v3878
    %v3974 = vpack.c.b16 %v3881, %v3880
    %v3975 = vpack.c.b16 %v3883, %v3882
    %v3976 = vpack.c.b16 %v3885, %v3884
    %v3977 = vpack.c.b16 %v3887, %v3886
    %v3978 = vpack.c.b16 %v3889, %v3888
    %v3979 = vpack.c.b16 %v3891, %v3890
    %v3980 = vpack.c.b16 %v3893, %v3892
    %v3981 = vpack.c.b16 %v3895, %v3894
    %v3982 = vpack.c.b16 %v3897, %v3896
    %v3983 = vpack.c.b16 %v3899, %v3898
    %v3984 = vpack.c.b16 %v3901, %v3900
    %v3985 = vpack.c.b16 %v3903, %v3902
    %v3986 = vpack.c.b16 %v3905, %v3904
    %v3987 = vpack.c.b16 %v3907, %v3906
    %v3988 = vpack.c.b16 %v3909, %v3908
    %v3989 = vpack.c.b16 %v3911, %v3910
    %v3990 = vpack.c.b16 %v3913, %v3912
    %v3991 = vpack.c.b16 %v3915, %v3914
    %v3992 = vpack.c.b16 %v3917, %v3916
    %v3993 = vpack.c.b16 %v3919, %v3918
    %v3994 = vpack.c.b16 %v3921, %v3920
    %v3995 = vpack.c.b16 %v3923, %v3922
    %v3996 = vpack.c.b16 %v3925, %v3924
    %v3997 = vpack.c.b16 %v3927, %v3926
    %v3998 = vpack.c.b16 %v3929, %v3928
    %v3999 = vpack.c.b16 %v3931, %v3930
    %v4000 = vpack.c.b16 %v3933, %v3932
    %v4001 = vpack.c.b16 %v3935, %v3934
    %v4002 = vpack.c.b16 %v3937, %v3936
    %v4003 = vpack.c.b16 %v3939, %v3938
    %v4004 = vpack.c.b16 %v3941, %v3940
    %v4005 = vpack.c.b16 %v3943, %v3942
    %v4006 = vpack.c.b16 %v3945, %v3944
    %v4007 = vpack.c.b16 %v3947, %v3946
    %v4008 = vpack.c.b16 %v3949, %v3948
    %v4009 = vpack.c.b16 %v3951, %v3950
    %v4010 = vpack.c.b16 %v3953, %v3952
    %v4011 = vpack.c.b16 %v3955, %v3954
    %v4012 = vpack.c.b16 %v3957, %v3956
    %v4013 = vpack.c.b16 %v3959, %v3958
    %v4014 = vpack.c.b16 %v3961, %v3960
    %v4015 = vpack.c.b16 %v3963, %v3962
    %v4016 = vpack.c.b16 %v3965, %v3964
    %v4017 = vpack.c.b16 %v3967, %v3966
    %v4018 = vpack.c.b16 %v3969, %v3968
    %v4019 = vpack.c.b16 %v3971, %v3970
    %4068 = vmatprep.subr.bf16.mxu0 0
    %4069 = vmatpush1.bf16.msra.mxu0 %v3979
    %4070 = vmatprep.subr.bf16.mxu0 0
    %4071 = vmatpush1.bf16.msra.mxu0 %v3978
    %4072 = vmatprep.subr.bf16.mxu0 0
    %4073 = vmatpush1.bf16.msra.mxu0 %v3977
    %4074 = vmatprep.subr.bf16.mxu0 0
    %4075 = vmatpush1.bf16.msra.mxu0 %v3976
    %4076 = vmatprep.subr.bf16.mxu0 0
    %4077 = vmatpush1.bf16.msra.mxu0 %v3975
    %4078 = vmatprep.subr.bf16.mxu0 0
    %4079 = vmatpush1.bf16.msra.mxu0 %v3974
    %4080 = vmatprep.subr.bf16.mxu0 0
    %4081 = vmatpush1.bf16.msra.mxu0 %v3973
    %4082 = vmatprep.subr.bf16.mxu0 0
    %4083 = vmatpush1.bf16.msra.mxu0 %v3972
    %4084 = vmatprep.subr.bf16.mxu0 0
    %4085 = vmatpush2.bf16.msra.mxu0 %v3987
    %4086 = vmatprep.subr.bf16.mxu0 0
    %4087 = vmatpush2.bf16.msra.mxu0 %v3986
    %4088 = vmatprep.subr.bf16.mxu0 0
    %4089 = vmatpush2.bf16.msra.mxu0 %v3985
    %4090 = vmatprep.subr.bf16.mxu0 0
    %4091 = vmatpush2.bf16.msra.mxu0 %v3984
    %4092 = vmatprep.subr.bf16.mxu0 0
    %4093 = vmatpush2.bf16.msra.mxu0 %v3983
    %4094 = vmatprep.subr.bf16.mxu0 0
    %4095 = vmatpush2.bf16.msra.mxu0 %v3982
    %4096 = vmatprep.subr.bf16.mxu0 0
    %4097 = vmatpush2.bf16.msra.mxu0 %v3981
    %4098 = vmatprep.subr.bf16.mxu0 0
    %4099 = vmatpush2.bf16.msra.mxu0 %v3980
    %4100 = vmatprep.mubr.bf16.mxu0 %v3672
    %4101 = vmatmul.mubr.bf16.gmra.mxu0 %v3671
    %v4102 = vpop.f32.mrf.mxu0
    %v4103 = vadd.f32 %v3778, %v4102
    %v4104 = vpop.f32.mrf.mxu0
    %v4105 = vpop.f32.mrf.mxu0
    %v4106 = vadd.f32 %v3778, %v4105
    %v4107 = vpop.f32.mrf.mxu0
    %4108 = vdwg.mxu0
    %4109 = vmatprep.subr.bf16.mxu0 0
    %4110 = vmatpush1.bf16.msra.mxu0 %v3995
    %4111 = vmatprep.subr.bf16.mxu0 0
    %4112 = vmatpush1.bf16.msra.mxu0 %v3994
    %4113 = vmatprep.subr.bf16.mxu0 0
    %4114 = vmatpush1.bf16.msra.mxu0 %v3993
    %4115 = vmatprep.subr.bf16.mxu0 0
    %4116 = vmatpush1.bf16.msra.mxu0 %v3992
    %4117 = vmatprep.subr.bf16.mxu0 0
    %4118 = vmatpush1.bf16.msra.mxu0 %v3991
    %4119 = vmatprep.subr.bf16.mxu0 0
    %4120 = vmatpush1.bf16.msra.mxu0 %v3990
    %4121 = vmatprep.subr.bf16.mxu0 0
    %4122 = vmatpush1.bf16.msra.mxu0 %v3989
    %4123 = vmatprep.subr.bf16.mxu0 0
    %4124 = vmatpush1.bf16.msra.mxu0 %v3988
    %4125 = vmatprep.subr.bf16.mxu0 0
    %4126 = vmatpush2.bf16.msra.mxu0 %v4003
    %4127 = vmatprep.subr.bf16.mxu0 0
    %4128 = vmatpush2.bf16.msra.mxu0 %v4002
    %4129 = vmatprep.subr.bf16.mxu0 0
    %4130 = vmatpush2.bf16.msra.mxu0 %v4001
    %4131 = vmatprep.subr.bf16.mxu0 0
    %4132 = vmatpush2.bf16.msra.mxu0 %v4000
    %4133 = vmatprep.subr.bf16.mxu0 0
    %4134 = vmatpush2.bf16.msra.mxu0 %v3999
    %4135 = vmatprep.subr.bf16.mxu0 0
    %4136 = vmatpush2.bf16.msra.mxu0 %v3998
    %4137 = vmatprep.subr.bf16.mxu0 0
    %4138 = vmatpush2.bf16.msra.mxu0 %v3997
    %4139 = vmatprep.subr.bf16.mxu0 0
    %4140 = vmatpush2.bf16.msra.mxu0 %v3996
    %4141 = vmatprep.mubr.bf16.mxu0 %v3674
    %4142 = vmatmul.mubr.bf16.gmra.mxu0 %v3673
    %v4143 = vpop.f32.mrf.mxu0
    %v4144 = vadd.f32 %v4103, %v4143
    %v4145 = vpop.f32.mrf.mxu0
    %v4146 = vpop.f32.mrf.mxu0
    %v4147 = vadd.f32 %v4106, %v4146
    %v4148 = vpop.f32.mrf.mxu0
    %4149 = vdwg.mxu0
    %4150 = vmatprep.subr.bf16.mxu0 0
    %4151 = vmatpush1.bf16.msra.mxu0 %v4011
    %4152 = vmatprep.subr.bf16.mxu0 0
    %4153 = vmatpush1.bf16.msra.mxu0 %v4010
    %4154 = vmatprep.subr.bf16.mxu0 0
    %4155 = vmatpush1.bf16.msra.mxu0 %v4009
    %4156 = vmatprep.subr.bf16.mxu0 0
    %4157 = vmatpush1.bf16.msra.mxu0 %v4008
    %4158 = vmatprep.subr.bf16.mxu0 0
    %4159 = vmatpush1.bf16.msra.mxu0 %v4007
    %4160 = vmatprep.subr.bf16.mxu0 0
    %4161 = vmatpush1.bf16.msra.mxu0 %v4006
    %4162 = vmatprep.subr.bf16.mxu0 0
    %4163 = vmatpush1.bf16.msra.mxu0 %v4005
    %4164 = vmatprep.subr.bf16.mxu0 0
    %4165 = vmatpush1.bf16.msra.mxu0 %v4004
    %4166 = vmatprep.subr.bf16.mxu0 0
    %4167 = vmatpush2.bf16.msra.mxu0 %v4019
    %4168 = vmatprep.subr.bf16.mxu0 0
    %4169 = vmatpush2.bf16.msra.mxu0 %v4018
    %4170 = vmatprep.subr.bf16.mxu0 0
    %4171 = vmatpush2.bf16.msra.mxu0 %v4017
    %4172 = vmatprep.subr.bf16.mxu0 0
    %4173 = vmatpush2.bf16.msra.mxu0 %v4016
    %4174 = vmatprep.subr.bf16.mxu0 0
    %4175 = vmatpush2.bf16.msra.mxu0 %v4015
    %4176 = vmatprep.subr.bf16.mxu0 0
    %4177 = vmatpush2.bf16.msra.mxu0 %v4014
    %4178 = vmatprep.subr.bf16.mxu0 0
    %4179 = vmatpush2.bf16.msra.mxu0 %v4013
    %4180 = vmatprep.subr.bf16.mxu0 0
    %4181 = vmatpush2.bf16.msra.mxu0 %v4012
    %4182 = vmatprep.mubr.bf16.mxu0 %v3676
    %4183 = vmatmul.mubr.bf16.gmra.mxu0 %v3675
    %v4184 = vpop.f32.mrf.mxu0
    %v4185 = vadd.f32 %v4144, %v4184
    %v4186 = vpop.f32.mrf.mxu0
    %v4187 = vpop.f32.mrf.mxu0
    %v4188 = vadd.f32 %v4147, %v4187
    %v4189 = vpop.f32.mrf.mxu0
    %4190 = vdwg.mxu0
    %4191 = vst [vmem:[#allocation2] sm:$0xff] %v4185
    %4192 = vst [vmem:[#allocation2 + $0x8] sm:$0xff] %v4188
    // Predicated region
    $region30: #{_forward_core.1} parent=1 // pred_check
      _
    $region31: #{_forward_core.1} parent=1 // pred_check_branch
      %4194 = sbr.rel (0) target = $region33
    $region32: #{_forward_core.1} parent=1 // pred_region
      %s4196 = ssub.s32 256, 256
      %4197 = vsyncadd [#allocation3], %s4196
      %s4198 = sshll.u32 [#allocation2], 4
      %s4199 = int_to_ptr.vmem [resolvable:$true] %s4198
      %4204 = dma.vmem_to_hbm [thread:$0]  %s4199, 256, %s7, [#allocation3], 128, 128, 8
    $region33: #{_forward_core.1} parent=1 // pred_fallthru
      _
    // Predicated region
    $region34: #{_forward_core.1} parent=1 // pred_check
      _
    $region35: #{_forward_core.1} parent=1 // pred_check_branch
      %4206 = sbr.rel (0) target = $region37
    $region36: #{_forward_core.1} parent=1 // pred_region
      %4207 = dma.done [#allocation3], 256
    $region37: #{_forward_core.1} parent=1 // pred_fallthru
      _
    %4208 = vsyncpa [#allocation3], 1

</llo_original>
